<compile_context>
chip_gen: v7x
topology: tpu7x:2x2x1
jax: 0.10.0
libtpu: 0.0.40
codegen_flags: <defaults>
</compile_context>

<pallas_src>
import functools

import jax
import jax.numpy as jnp
from jax import lax
from jax.experimental import pallas as pl
from jax.experimental.pallas import tpu as pltpu


def _round_up(x, m):
    return (x + m - 1) // m * m


# ------------------------------ fused kernel --------------------------------
def _cnn4_fused_kernel(pat_ref, w1_ref, b1_ref, w2_ref, b2_ref,
                       wf1_ref, bf1_ref, wf2_ref, bf2_ref,
                       o_ref, s_ref, *, alpha, oh1, ow1):
    """Whole forward pass for ONE image (grid is over the batch).

    pat_ref : (1, OH1*OW1, 16*C)  conv1 im2col patches.  Row order:
                                  cls*(OH1//2)*(OW1//2) + a*(OW1//2) + b with
                                  cls = (oh%2)*2 + (ow%2), oh = 2a+pr, ow = 2b+pc.
                                  Feature order: (kh*4 + kw)*C + c.
    w1_ref  : (16*C, C1)          conv1 weight, same feature order.
    w2_ref  : (4, 4*C1, C2)       conv2 weight  [kh, kw*C1 + c, c2].
    wf1_ref : (OH2*OW2, C2, L)    fc1 weight    [h*OW2 + w, c2, l].
    wf2_ref : (L, OUT)
    s_ref   : (2, n_srows, 2*C1)  VMEM scratch: conv1 activation, zero-padded
                                  by 1 on every side, split by padded-row
                                  parity and stored flat so that
                                  s[par, a*n_wp + wp, q*C1 + c]
                                    == act1_pad[2*a + par, 2*wp + q, c].
    """
    f32 = jnp.float32
    c1 = w1_ref.shape[1]
    c2 = w2_ref.shape[2]
    oh2, ow2 = oh1 // 2, ow1 // 2
    n_wp = ow1 // 2 + 1                    # column pairs per padded act1 row
    n_cls = (oh1 // 2) * (ow1 // 2)        # conv1 rows per parity class
    acc_rows = oh2 * n_wp                  # conv2 acc rows (last col per row = pad)

    def lrelu(v):
        return jnp.where(v >= 0, v, alpha * v)

    # -------- conv1: single im2col matmul + LeakyReLU ------------------------
    a1 = lrelu(jnp.dot(pat_ref[0], w1_ref[...], preferred_element_type=f32)
               + b1_ref[...])                                  # (OH1*OW1, C1)

    # -------- scatter conv1 activation into the conv2-ready scratch ----------
    s_ref[...] = jnp.zeros_like(s_ref)     # padding rows / cols stay 0
    for cls in range(4):
        pr, pc = cls // 2, cls % 2          # oh = 2a + pr, ow = 2b + pc
        par = 1 - pr                        # parity of padded row oh + 1
        lane0 = c1 if pc == 0 else 0        # parity of padded col ow + 1
        for a in range(oh1 // 2):
            r0 = (a + pr) * n_wp + pc
            src = a1[cls * n_cls + a * ow2: cls * n_cls + (a + 1) * ow2, :]
            s_ref[par, r0:r0 + ow2, lane0:lane0 + c1] = src

    # -------- conv2 (+LeakyReLU), batched over every output position ---------
    sp = (s_ref[0], s_ref[1])               # each (n_srows, 2*C1)
    accp = jnp.zeros((acc_rows, c2), f32)   # row = oh2*n_wp + j ; j == ow2 is pad
    for kh in range(4):
        blk = sp[kh % 2]
        off = (kh // 2) * n_wp
        wk = w2_ref[kh]                      # (4*C1, C2)
        # taps kw=0,1 come from pair j2 ; taps kw=2,3 from pair j2+1
        accp = accp + jnp.dot(blk[off:off + acc_rows, :], wk[0:2 * c1, :],
                              preferred_element_type=f32)
        accp = accp + jnp.dot(blk[off + 1:off + 1 + acc_rows, :], wk[2 * c1:, :],
                              preferred_element_type=f32)
    accp = lrelu(accp + b2_ref[...])

    # -------- fc1 (+LeakyReLU) and fc2 ----------------------------------------
    L = bf1_ref.shape[1]
    fc1 = jnp.zeros((1, L), f32)
    for i2 in range(oh2):
        for j2 in range(ow2):
            fc1 = fc1 + jnp.dot(accp[i2 * n_wp + j2:i2 * n_wp + j2 + 1, :],
                                wf1_ref[i2 * ow2 + j2],
                                preferred_element_type=f32)
    h = lrelu(fc1 + bf1_ref[...])
    out = jnp.dot(h, wf2_ref[...], preferred_element_type=f32) + bf2_ref[...]
    o_ref[0] = out.astype(o_ref.dtype)


# ---------------------- wrapper-side input preparation -----------------------
def _conv1_patches(x_nchw):
    """im2col for the 4x4 / stride-2 / pad-1 conv1, rows grouped by parity."""
    N, C, H, W = x_nchw.shape
    OH, OW = H // 2, W // 2
    x = jnp.transpose(x_nchw, (0, 2, 3, 1))                    # NHWC
    xp = jnp.pad(x, ((0, 0), (1, 1), (1, 1), (0, 0)))
    taps = [xp[:, kh:kh + 2 * OH:2, kw:kw + 2 * OW:2, :]
            for kh in range(4) for kw in range(4)]             # 16 x (N,OH,OW,C)
    p = jnp.stack(taps, axis=3).reshape(N, OH, OW, 16 * C)     # feat=(kh*4+kw)*C+c
    p = p.reshape(N, OH // 2, 2, OW // 2, 2, 16 * C)           # (N,a,pr,b,pc,F)
    p = jnp.transpose(p, (0, 2, 4, 1, 3, 5))                   # (N,pr,pc,a,b,F)
    return p.reshape(N, OH * OW, 16 * C)


# ------------------------------- full model ----------------------------------
def cnn_4layer_leaky_relu_forward(x_nchw, params, alpha=0.1):
    w1, b1, w2, b2, wf1, bf1, wf2, bf2 = params
    N, C, H, W = x_nchw.shape
    C1, C2 = w1.shape[0], w2.shape[0]
    L, OUT = wf1.shape[0], wf2.shape[0]
    assert w1.shape[2:] == (4, 4) and w2.shape[2:] == (4, 4)
    assert H % 4 == 0 and W % 4 == 0
    OH1, OW1 = H // 2, W // 2
    OH2, OW2 = OH1 // 2, OW1 // 2
    assert wf1.shape[1] == C2 * OH2 * OW2

    n_wp = OW1 // 2 + 1
    n_srows = _round_up((OH2 + 1) * n_wp + 1, 8)

    patches = _conv1_patches(x_nchw)                            # (N, OH1*OW1, 16*C)

    # weights re-laid-out once (tiny XLA ops, fused with the patch gather)
    w1_k = jnp.transpose(w1, (2, 3, 1, 0)).reshape(16 * C, C1)      # [(kh*4+kw)*C+c, c1]
    w2_k = jnp.transpose(w2, (2, 3, 1, 0)).reshape(4, 4 * C1, C2)   # [kh, kw*C1+c, c2]
    wf1_k = jnp.transpose(wf1.reshape(L, C2, OH2, OW2),
                          (2, 3, 1, 0)).reshape(OH2 * OW2, C2, L)   # [h*OW2+w, c2, l]
    wf2_k = wf2.T                                                   # (L, OUT)
    b1_k = b1.reshape(1, C1)
    b2_k = b2.reshape(1, C2)
    bf1_k = bf1.reshape(1, L)
    bf2_k = bf2.reshape(1, OUT)

    flops = 2 * N * (OH1 * OW1 * 16 * C * C1 + OH2 * OW2 * 16 * C1 * C2
                     + OH2 * OW2 * C2 * L + L * OUT)
    bytes_accessed = 4 * (patches.size + w1_k.size + w2_k.size + wf1_k.size
                          + wf2_k.size + C1 + C2 + L + OUT + N * OUT)

    kern = functools.partial(_cnn4_fused_kernel, alpha=alpha, oh1=OH1, ow1=OW1)
    out = pl.pallas_call(
        kern,
        out_shape=jax.ShapeDtypeStruct((N, 1, OUT), jnp.float32),
        grid_spec=pltpu.PrefetchScalarGridSpec(
            num_scalar_prefetch=0,
            grid=(N,),
            in_specs=[
                pl.BlockSpec((1, OH1 * OW1, 16 * C), lambda n: (n, 0, 0)),
                pl.BlockSpec((16 * C, C1), lambda n: (0, 0)),
                pl.BlockSpec((1, C1), lambda n: (0, 0)),
                pl.BlockSpec((4, 4 * C1, C2), lambda n: (0, 0, 0)),
                pl.BlockSpec((1, C2), lambda n: (0, 0)),
                pl.BlockSpec((OH2 * OW2, C2, L), lambda n: (0, 0, 0)),
                pl.BlockSpec((1, L), lambda n: (0, 0)),
                pl.BlockSpec((L, OUT), lambda n: (0, 0)),
                pl.BlockSpec((1, OUT), lambda n: (0, 0)),
            ],
            out_specs=pl.BlockSpec((1, 1, OUT), lambda n: (n, 0, 0)),
            scratch_shapes=[pltpu.VMEM((2, n_srows, 2 * C1), jnp.float32)],
        ),
        compiler_params=pltpu.CompilerParams(
            dimension_semantics=("parallel",)),
        cost_estimate=pl.CostEstimate(flops=flops, transcendentals=0,
                                      bytes_accessed=bytes_accessed),
    )(patches, w1_k, b1_k, w2_k, b2_k, wf1_k, bf1_k, wf2_k, bf2_k)
    return out.reshape(N, OUT)


# --------------------------- pure-JAX reference ------------------------------
def reference_forward(x, params, alpha=0.1):
    w1, b1, w2, b2, wf1, bf1, wf2, bf2 = params
    dn = ("NCHW", "OIHW", "NCHW")

    def conv(x, w, b):
        y = lax.conv_general_dilated(x, w, (2, 2), ((1, 1), (1, 1)),
                                     dimension_numbers=dn)
        return y + b[None, :, None, None]

    def lrelu(x):
        return jnp.where(x >= 0, x, alpha * x)

    x = lrelu(conv(x, w1, b1))
    x = lrelu(conv(x, w2, b2))
    x = x.reshape(x.shape[0], -1)
    x = lrelu(x @ wf1.T + bf1)
    return x @ wf2.T + bf2


# ---------------------------------- main -------------------------------------
if __name__ == "__main__":
    # Small shapes consistent with the module: in_ch=4, in_dim=16, width=2,
    # linear_size=32, batch=2.
    batch, in_ch, in_dim, width, linear_size, alpha = 2, 4, 16, 2, 32, 0.1
    c1, c2 = 4 * width, 8 * width
    flat = c2 * (in_dim // 4) * (in_dim // 4)

    key = jax.random.PRNGKey(0)
    ks = jax.random.split(key, 9)
    params = (
        jax.random.normal(ks[0], (c1, in_ch, 4, 4), jnp.float32) * 0.1,     # conv1.w
        jax.random.normal(ks[1], (c1,), jnp.float32) * 0.1,                 # conv1.b
        jax.random.normal(ks[2], (c2, c1, 4, 4), jnp.float32) * 0.1,        # conv2.w
        jax.random.normal(ks[3], (c2,), jnp.float32) * 0.1,                 # conv2.b
        jax.random.normal(ks[4], (linear_size, flat), jnp.float32) * 0.05,  # fc1.w
        jax.random.normal(ks[5], (linear_size,), jnp.float32) * 0.1,        # fc1.b
        jax.random.normal(ks[6], (10, linear_size), jnp.float32) * 0.1,     # fc2.w
        jax.random.normal(ks[7], (10,), jnp.float32) * 0.1,                 # fc2.b
    )
    x = jax.random.normal(ks[8], (batch, in_ch, in_dim, in_dim), jnp.float32)

    fwd = jax.jit(lambda xx, pp: cnn_4layer_leaky_relu_forward(xx, pp, alpha=alpha))
    out = jax.block_until_ready(fwd(x, params))

    ref = reference_forward(x, params, alpha=alpha)
    assert out.shape == (batch, 10)
    assert jnp.allclose(out, ref, atol=1e-3, rtol=1e-3), \
        float(jnp.max(jnp.abs(out - ref)))

    print("KERNEL_OK")
</pallas_src>

<mosaic_0001>
module attributes {stable_mosaic.version = 11 : i64} {
  func.func @_cnn4_fused_kernel(%arg0: i32, %arg1: memref<1x64x64xf32, #tpu.memory_space<vmem>>, %arg2: memref<64x8xf32, #tpu.memory_space<vmem>>, %arg3: memref<1x8xf32, #tpu.memory_space<vmem>>, %arg4: memref<4x32x16xf32, #tpu.memory_space<vmem>>, %arg5: memref<1x16xf32, #tpu.memory_space<vmem>>, %arg6: memref<16x16x32xf32, #tpu.memory_space<vmem>>, %arg7: memref<1x32xf32, #tpu.memory_space<vmem>>, %arg8: memref<32x10xf32, #tpu.memory_space<vmem>>, %arg9: memref<1x10xf32, #tpu.memory_space<vmem>>, %arg10: memref<1x1x10xf32, #tpu.memory_space<vmem>>, %arg11: memref<2x32x16xf32, #tpu.memory_space<vmem>>) attributes {dimension_semantics = [#tpu.dimension_semantics<parallel>], iteration_bounds = array<i64: 2>, scalar_prefetch = 0 : i64, scratch_operands = 1 : i64, tpu.core_type = #tpu.core_type<tc>, window_params = [{transform_indices = @transform_0, window_bounds = array<i64: 1, 64, 64>}, {pipeline_mode = #tpu.pipeline_mode<synchronous>, transform_indices = @transform_1, window_bounds = array<i64: 64, 8>}, {pipeline_mode = #tpu.pipeline_mode<synchronous>, transform_indices = @transform_2, window_bounds = array<i64: 1, 8>}, {pipeline_mode = #tpu.pipeline_mode<synchronous>, transform_indices = @transform_3, window_bounds = array<i64: 4, 32, 16>}, {pipeline_mode = #tpu.pipeline_mode<synchronous>, transform_indices = @transform_4, window_bounds = array<i64: 1, 16>}, {pipeline_mode = #tpu.pipeline_mode<synchronous>, transform_indices = @transform_5, window_bounds = array<i64: 16, 16, 32>}, {pipeline_mode = #tpu.pipeline_mode<synchronous>, transform_indices = @transform_6, window_bounds = array<i64: 1, 32>}, {pipeline_mode = #tpu.pipeline_mode<synchronous>, transform_indices = @transform_7, window_bounds = array<i64: 32, 10>}, {pipeline_mode = #tpu.pipeline_mode<synchronous>, transform_indices = @transform_8, window_bounds = array<i64: 1, 10>}, {transform_indices = @transform_9, window_bounds = array<i64: 1, 1, 10>}]} {
    %c0 = arith.constant 0 : index
    %c0_0 = arith.constant 0 : index
    %c0_1 = arith.constant 0 : index
    %0 = vector.load %arg1[%c0, %c0_0, %c0_1] : memref<1x64x64xf32, #tpu.memory_space<vmem>>, vector<1x64x64xf32>
    %1 = vector.shape_cast %0 : vector<1x64x64xf32> to vector<64x64xf32>
    %c0_2 = arith.constant 0 : index
    %c0_3 = arith.constant 0 : index
    %2 = vector.load %arg2[%c0_2, %c0_3] : memref<64x8xf32, #tpu.memory_space<vmem>>, vector<64x8xf32>
    %cst = arith.constant dense<0.000000e+00> : vector<64x8xf32>
    %3 = tpu.matmul %1, %2, %cst {dimension_numbers = #tpu.dot_dimension_numbers<[1], [0], [0], [1], [0, 0, 1, 1], [], []>} : vector<64x64xf32>, vector<64x8xf32>, vector<64x8xf32> -> vector<64x8xf32>
    %c0_4 = arith.constant 0 : index
    %c0_5 = arith.constant 0 : index
    %4 = vector.load %arg3[%c0_4, %c0_5] : memref<1x8xf32, #tpu.memory_space<vmem>>, vector<1x8xf32>
    %5 = vector.broadcast %4 : vector<1x8xf32> to vector<64x8xf32>
    %6 = arith.addf %3, %5 : vector<64x8xf32>
    %cst_6 = arith.constant 0.000000e+00 : f32
    %7 = vector.broadcast %cst_6 : f32 to vector<64x8xf32>
    %8 = arith.cmpf oge, %6, %7 : vector<64x8xf32>
    %cst_7 = arith.constant 1.000000e-01 : f32
    %9 = vector.broadcast %cst_7 : f32 to vector<64x8xf32>
    %10 = arith.mulf %9, %6 : vector<64x8xf32>
    %11 = arith.select %8, %6, %10 : vector<64x8xi1>, vector<64x8xf32>
    %cst_8 = arith.constant 0.000000e+00 : f32
    %12 = vector.broadcast %cst_8 : f32 to vector<2x32x16xf32>
    %c0_9 = arith.constant 0 : index
    %c0_10 = arith.constant 0 : index
    %c0_11 = arith.constant 0 : index
    %13 = vector.load %arg11[%c0_9, %c0_10, %c0_11] : memref<2x32x16xf32, #tpu.memory_space<vmem>>, vector<2x32x16xf32>
    tpu.vector_store %arg11[%c0_9, %c0_10, %c0_11], %12 {strides = array<i32>} : memref<2x32x16xf32, #tpu.memory_space<vmem>>, vector<2x32x16xf32>,
    %14 = vector.extract_strided_slice %11 {offsets = [0, 0], sizes = [4, 8], strides = [1, 1]} : vector<64x8xf32> to vector<4x8xf32>
    %c1 = arith.constant 1 : index
    %c0_12 = arith.constant 0 : index
    %c8 = arith.constant 8 : index
    %15 = vector.load %arg11[%c1, %c0_12, %c8] : memref<2x32x16xf32, #tpu.memory_space<vmem>>, vector<1x4x8xf32>
    %16 = vector.shape_cast %15 : vector<1x4x8xf32> to vector<4x8xf32>
    %17 = vector.shape_cast %14 : vector<4x8xf32> to vector<1x4x8xf32>
    tpu.vector_store %arg11[%c1, %c0_12, %c8], %17 {strides = array<i32>} : memref<2x32x16xf32, #tpu.memory_space<vmem>>, vector<1x4x8xf32>,
    %18 = vector.extract_strided_slice %11 {offsets = [4, 0], sizes = [4, 8], strides = [1, 1]} : vector<64x8xf32> to vector<4x8xf32>
    %c1_13 = arith.constant 1 : index
    %c5 = arith.constant 5 : index
    %c8_14 = arith.constant 8 : index
    %19 = vector.load %arg11[%c1_13, %c5, %c8_14] : memref<2x32x16xf32, #tpu.memory_space<vmem>>, vector<1x4x8xf32>
    %20 = vector.shape_cast %19 : vector<1x4x8xf32> to vector<4x8xf32>
    %21 = vector.shape_cast %18 : vector<4x8xf32> to vector<1x4x8xf32>
    tpu.vector_store %arg11[%c1_13, %c5, %c8_14], %21 {strides = array<i32>} : memref<2x32x16xf32, #tpu.memory_space<vmem>>, vector<1x4x8xf32>,
    %22 = vector.extract_strided_slice %11 {offsets = [8, 0], sizes = [4, 8], strides = [1, 1]} : vector<64x8xf32> to vector<4x8xf32>
    %c1_15 = arith.constant 1 : index
    %c10 = arith.constant 10 : index
    %c8_16 = arith.constant 8 : index
    %23 = vector.load %arg11[%c1_15, %c10, %c8_16] : memref<2x32x16xf32, #tpu.memory_space<vmem>>, vector<1x4x8xf32>
    %24 = vector.shape_cast %23 : vector<1x4x8xf32> to vector<4x8xf32>
    %25 = vector.shape_cast %22 : vector<4x8xf32> to vector<1x4x8xf32>
    tpu.vector_store %arg11[%c1_15, %c10, %c8_16], %25 {strides = array<i32>} : memref<2x32x16xf32, #tpu.memory_space<vmem>>, vector<1x4x8xf32>,
    %26 = vector.extract_strided_slice %11 {offsets = [12, 0], sizes = [4, 8], strides = [1, 1]} : vector<64x8xf32> to vector<4x8xf32>
    %c1_17 = arith.constant 1 : index
    %c15 = arith.constant 15 : index
    %c8_18 = arith.constant 8 : index
    %27 = vector.load %arg11[%c1_17, %c15, %c8_18] : memref<2x32x16xf32, #tpu.memory_space<vmem>>, vector<1x4x8xf32>
    %28 = vector.shape_cast %27 : vector<1x4x8xf32> to vector<4x8xf32>
    %29 = vector.shape_cast %26 : vector<4x8xf32> to vector<1x4x8xf32>
    tpu.vector_store %arg11[%c1_17, %c15, %c8_18], %29 {strides = array<i32>} : memref<2x32x16xf32, #tpu.memory_space<vmem>>, vector<1x4x8xf32>,
    %30 = vector.extract_strided_slice %11 {offsets = [16, 0], sizes = [4, 8], strides = [1, 1]} : vector<64x8xf32> to vector<4x8xf32>
    %c1_19 = arith.constant 1 : index
    %c1_20 = arith.constant 1 : index
    %c0_21 = arith.constant 0 : index
    %31 = vector.load %arg11[%c1_19, %c1_20, %c0_21] : memref<2x32x16xf32, #tpu.memory_space<vmem>>, vector<1x4x8xf32>
    %32 = vector.shape_cast %31 : vector<1x4x8xf32> to vector<4x8xf32>
    %33 = vector.shape_cast %30 : vector<4x8xf32> to vector<1x4x8xf32>
    tpu.vector_store %arg11[%c1_19, %c1_20, %c0_21], %33 {strides = array<i32>} : memref<2x32x16xf32, #tpu.memory_space<vmem>>, vector<1x4x8xf32>,
    %34 = vector.extract_strided_slice %11 {offsets = [20, 0], sizes = [4, 8], strides = [1, 1]} : vector<64x8xf32> to vector<4x8xf32>
    %c1_22 = arith.constant 1 : index
    %c6 = arith.constant 6 : index
    %c0_23 = arith.constant 0 : index
    %35 = vector.load %arg11[%c1_22, %c6, %c0_23] : memref<2x32x16xf32, #tpu.memory_space<vmem>>, vector<1x4x8xf32>
    %36 = vector.shape_cast %35 : vector<1x4x8xf32> to vector<4x8xf32>
    %37 = vector.shape_cast %34 : vector<4x8xf32> to vector<1x4x8xf32>
    tpu.vector_store %arg11[%c1_22, %c6, %c0_23], %37 {strides = array<i32>} : memref<2x32x16xf32, #tpu.memory_space<vmem>>, vector<1x4x8xf32>,
    %38 = vector.extract_strided_slice %11 {offsets = [24, 0], sizes = [4, 8], strides = [1, 1]} : vector<64x8xf32> to vector<4x8xf32>
    %c1_24 = arith.constant 1 : index
    %c11 = arith.constant 11 : index
    %c0_25 = arith.constant 0 : index
    %39 = vector.load %arg11[%c1_24, %c11, %c0_25] : memref<2x32x16xf32, #tpu.memory_space<vmem>>, vector<1x4x8xf32>
    %40 = vector.shape_cast %39 : vector<1x4x8xf32> to vector<4x8xf32>
    %41 = vector.shape_cast %38 : vector<4x8xf32> to vector<1x4x8xf32>
    tpu.vector_store %arg11[%c1_24, %c11, %c0_25], %41 {strides = array<i32>} : memref<2x32x16xf32, #tpu.memory_space<vmem>>, vector<1x4x8xf32>,
    %42 = vector.extract_strided_slice %11 {offsets = [28, 0], sizes = [4, 8], strides = [1, 1]} : vector<64x8xf32> to vector<4x8xf32>
    %c1_26 = arith.constant 1 : index
    %c16 = arith.constant 16 : index
    %c0_27 = arith.constant 0 : index
    %43 = vector.load %arg11[%c1_26, %c16, %c0_27] : memref<2x32x16xf32, #tpu.memory_space<vmem>>, vector<1x4x8xf32>
    %44 = vector.shape_cast %43 : vector<1x4x8xf32> to vector<4x8xf32>
    %45 = vector.shape_cast %42 : vector<4x8xf32> to vector<1x4x8xf32>
    tpu.vector_store %arg11[%c1_26, %c16, %c0_27], %45 {strides = array<i32>} : memref<2x32x16xf32, #tpu.memory_space<vmem>>, vector<1x4x8xf32>,
    %46 = vector.extract_strided_slice %11 {offsets = [32, 0], sizes = [4, 8], strides = [1, 1]} : vector<64x8xf32> to vector<4x8xf32>
    %c0_28 = arith.constant 0 : index
    %c5_29 = arith.constant 5 : index
    %c8_30 = arith.constant 8 : index
    %47 = vector.load %arg11[%c0_28, %c5_29, %c8_30] : memref<2x32x16xf32, #tpu.memory_space<vmem>>, vector<1x4x8xf32>
    %48 = vector.shape_cast %47 : vector<1x4x8xf32> to vector<4x8xf32>
    %49 = vector.shape_cast %46 : vector<4x8xf32> to vector<1x4x8xf32>
    tpu.vector_store %arg11[%c0_28, %c5_29, %c8_30], %49 {strides = array<i32>} : memref<2x32x16xf32, #tpu.memory_space<vmem>>, vector<1x4x8xf32>,
    %50 = vector.extract_strided_slice %11 {offsets = [36, 0], sizes = [4, 8], strides = [1, 1]} : vector<64x8xf32> to vector<4x8xf32>
    %c0_31 = arith.constant 0 : index
    %c10_32 = arith.constant 10 : index
    %c8_33 = arith.constant 8 : index
    %51 = vector.load %arg11[%c0_31, %c10_32, %c8_33] : memref<2x32x16xf32, #tpu.memory_space<vmem>>, vector<1x4x8xf32>
    %52 = vector.shape_cast %51 : vector<1x4x8xf32> to vector<4x8xf32>
    %53 = vector.shape_cast %50 : vector<4x8xf32> to vector<1x4x8xf32>
    tpu.vector_store %arg11[%c0_31, %c10_32, %c8_33], %53 {strides = array<i32>} : memref<2x32x16xf32, #tpu.memory_space<vmem>>, vector<1x4x8xf32>,
    %54 = vector.extract_strided_slice %11 {offsets = [40, 0], sizes = [4, 8], strides = [1, 1]} : vector<64x8xf32> to vector<4x8xf32>
    %c0_34 = arith.constant 0 : index
    %c15_35 = arith.constant 15 : index
    %c8_36 = arith.constant 8 : index
    %55 = vector.load %arg11[%c0_34, %c15_35, %c8_36] : memref<2x32x16xf32, #tpu.memory_space<vmem>>, vector<1x4x8xf32>
    %56 = vector.shape_cast %55 : vector<1x4x8xf32> to vector<4x8xf32>
    %57 = vector.shape_cast %54 : vector<4x8xf32> to vector<1x4x8xf32>
    tpu.vector_store %arg11[%c0_34, %c15_35, %c8_36], %57 {strides = array<i32>} : memref<2x32x16xf32, #tpu.memory_space<vmem>>, vector<1x4x8xf32>,
    %58 = vector.extract_strided_slice %11 {offsets = [44, 0], sizes = [4, 8], strides = [1, 1]} : vector<64x8xf32> to vector<4x8xf32>
    %c0_37 = arith.constant 0 : index
    %c20 = arith.constant 20 : index
    %c8_38 = arith.constant 8 : index
    %59 = vector.load %arg11[%c0_37, %c20, %c8_38] : memref<2x32x16xf32, #tpu.memory_space<vmem>>, vector<1x4x8xf32>
    %60 = vector.shape_cast %59 : vector<1x4x8xf32> to vector<4x8xf32>
    %61 = vector.shape_cast %58 : vector<4x8xf32> to vector<1x4x8xf32>
    tpu.vector_store %arg11[%c0_37, %c20, %c8_38], %61 {strides = array<i32>} : memref<2x32x16xf32, #tpu.memory_space<vmem>>, vector<1x4x8xf32>,
    %62 = vector.extract_strided_slice %11 {offsets = [48, 0], sizes = [4, 8], strides = [1, 1]} : vector<64x8xf32> to vector<4x8xf32>
    %c0_39 = arith.constant 0 : index
    %c6_40 = arith.constant 6 : index
    %c0_41 = arith.constant 0 : index
    %63 = vector.load %arg11[%c0_39, %c6_40, %c0_41] : memref<2x32x16xf32, #tpu.memory_space<vmem>>, vector<1x4x8xf32>
    %64 = vector.shape_cast %63 : vector<1x4x8xf32> to vector<4x8xf32>
    %65 = vector.shape_cast %62 : vector<4x8xf32> to vector<1x4x8xf32>
    tpu.vector_store %arg11[%c0_39, %c6_40, %c0_41], %65 {strides = array<i32>} : memref<2x32x16xf32, #tpu.memory_space<vmem>>, vector<1x4x8xf32>,
    %66 = vector.extract_strided_slice %11 {offsets = [52, 0], sizes = [4, 8], strides = [1, 1]} : vector<64x8xf32> to vector<4x8xf32>
    %c0_42 = arith.constant 0 : index
    %c11_43 = arith.constant 11 : index
    %c0_44 = arith.constant 0 : index
    %67 = vector.load %arg11[%c0_42, %c11_43, %c0_44] : memref<2x32x16xf32, #tpu.memory_space<vmem>>, vector<1x4x8xf32>
    %68 = vector.shape_cast %67 : vector<1x4x8xf32> to vector<4x8xf32>
    %69 = vector.shape_cast %66 : vector<4x8xf32> to vector<1x4x8xf32>
    tpu.vector_store %arg11[%c0_42, %c11_43, %c0_44], %69 {strides = array<i32>} : memref<2x32x16xf32, #tpu.memory_space<vmem>>, vector<1x4x8xf32>,
    %70 = vector.extract_strided_slice %11 {offsets = [56, 0], sizes = [4, 8], strides = [1, 1]} : vector<64x8xf32> to vector<4x8xf32>
    %c0_45 = arith.constant 0 : index
    %c16_46 = arith.constant 16 : index
    %c0_47 = arith.constant 0 : index
    %71 = vector.load %arg11[%c0_45, %c16_46, %c0_47] : memref<2x32x16xf32, #tpu.memory_space<vmem>>, vector<1x4x8xf32>
    %72 = vector.shape_cast %71 : vector<1x4x8xf32> to vector<4x8xf32>
    %73 = vector.shape_cast %70 : vector<4x8xf32> to vector<1x4x8xf32>
    tpu.vector_store %arg11[%c0_45, %c16_46, %c0_47], %73 {strides = array<i32>} : memref<2x32x16xf32, #tpu.memory_space<vmem>>, vector<1x4x8xf32>,
    %74 = vector.extract_strided_slice %11 {offsets = [60, 0], sizes = [4, 8], strides = [1, 1]} : vector<64x8xf32> to vector<4x8xf32>
    %c0_48 = arith.constant 0 : index
    %c21 = arith.constant 21 : index
    %c0_49 = arith.constant 0 : index
    %75 = vector.load %arg11[%c0_48, %c21, %c0_49] : memref<2x32x16xf32, #tpu.memory_space<vmem>>, vector<1x4x8xf32>
    %76 = vector.shape_cast %75 : vector<1x4x8xf32> to vector<4x8xf32>
    %77 = vector.shape_cast %74 : vector<4x8xf32> to vector<1x4x8xf32>
    tpu.vector_store %arg11[%c0_48, %c21, %c0_49], %77 {strides = array<i32>} : memref<2x32x16xf32, #tpu.memory_space<vmem>>, vector<1x4x8xf32>,
    %c0_50 = arith.constant 0 : index
    %c0_51 = arith.constant 0 : index
    %c0_52 = arith.constant 0 : index
    %78 = vector.load %arg11[%c0_50, %c0_51, %c0_52] : memref<2x32x16xf32, #tpu.memory_space<vmem>>, vector<1x32x16xf32>
    %79 = vector.shape_cast %78 : vector<1x32x16xf32> to vector<32x16xf32>
    %c1_53 = arith.constant 1 : index
    %c0_54 = arith.constant 0 : index
    %c0_55 = arith.constant 0 : index
    %80 = vector.load %arg11[%c1_53, %c0_54, %c0_55] : memref<2x32x16xf32, #tpu.memory_space<vmem>>, vector<1x32x16xf32>
    %81 = vector.shape_cast %80 : vector<1x32x16xf32> to vector<32x16xf32>
    %cst_56 = arith.constant 0.000000e+00 : f32
    %82 = vector.broadcast %cst_56 : f32 to vector<20x16xf32>
    %c0_57 = arith.constant 0 : index
    %c0_58 = arith.constant 0 : index
    %c0_59 = arith.constant 0 : index
    %83 = vector.load %arg4[%c0_57, %c0_58, %c0_59] : memref<4x32x16xf32, #tpu.memory_space<vmem>>, vector<1x32x16xf32>
    %84 = vector.shape_cast %83 : vector<1x32x16xf32> to vector<32x16xf32>
    %85 = vector.extract_strided_slice %79 {offsets = [0, 0], sizes = [20, 16], strides = [1, 1]} : vector<32x16xf32> to vector<20x16xf32>
    %86 = vector.extract_strided_slice %84 {offsets = [0, 0], sizes = [16, 16], strides = [1, 1]} : vector<32x16xf32> to vector<16x16xf32>
    %cst_60 = arith.constant dense<0.000000e+00> : vector<20x16xf32>
    %87 = tpu.matmul %85, %86, %cst_60 {dimension_numbers = #tpu.dot_dimension_numbers<[1], [0], [0], [1], [0, 0, 1, 1], [], []>} : vector<20x16xf32>, vector<16x16xf32>, vector<20x16xf32> -> vector<20x16xf32>
    %88 = arith.addf %82, %87 : vector<20x16xf32>
    %89 = vector.extract_strided_slice %79 {offsets = [1, 0], sizes = [20, 16], strides = [1, 1]} : vector<32x16xf32> to vector<20x16xf32>
    %90 = vector.extract_strided_slice %84 {offsets = [16, 0], sizes = [16, 16], strides = [1, 1]} : vector<32x16xf32> to vector<16x16xf32>
    %cst_61 = arith.constant dense<0.000000e+00> : vector<20x16xf32>
    %91 = tpu.matmul %89, %90, %cst_61 {dimension_numbers = #tpu.dot_dimension_numbers<[1], [0], [0], [1], [0, 0, 1, 1], [], []>} : vector<20x16xf32>, vector<16x16xf32>, vector<20x16xf32> -> vector<20x16xf32>
    %92 = arith.addf %88, %91 : vector<20x16xf32>
    %c1_62 = arith.constant 1 : index
    %c0_63 = arith.constant 0 : index
    %c0_64 = arith.constant 0 : index
    %93 = vector.load %arg4[%c1_62, %c0_63, %c0_64] : memref<4x32x16xf32, #tpu.memory_space<vmem>>, vector<1x32x16xf32>
    %94 = vector.shape_cast %93 : vector<1x32x16xf32> to vector<32x16xf32>
    %95 = vector.extract_strided_slice %81 {offsets = [0, 0], sizes = [20, 16], strides = [1, 1]} : vector<32x16xf32> to vector<20x16xf32>
    %96 = vector.extract_strided_slice %94 {offsets = [0, 0], sizes = [16, 16], strides = [1, 1]} : vector<32x16xf32> to vector<16x16xf32>
    %cst_65 = arith.constant dense<0.000000e+00> : vector<20x16xf32>
    %97 = tpu.matmul %95, %96, %cst_65 {dimension_numbers = #tpu.dot_dimension_numbers<[1], [0], [0], [1], [0, 0, 1, 1], [], []>} : vector<20x16xf32>, vector<16x16xf32>, vector<20x16xf32> -> vector<20x16xf32>
    %98 = arith.addf %92, %97 : vector<20x16xf32>
    %99 = vector.extract_strided_slice %81 {offsets = [1, 0], sizes = [20, 16], strides = [1, 1]} : vector<32x16xf32> to vector<20x16xf32>
    %100 = vector.extract_strided_slice %94 {offsets = [16, 0], sizes = [16, 16], strides = [1, 1]} : vector<32x16xf32> to vector<16x16xf32>
    %cst_66 = arith.constant dense<0.000000e+00> : vector<20x16xf32>
    %101 = tpu.matmul %99, %100, %cst_66 {dimension_numbers = #tpu.dot_dimension_numbers<[1], [0], [0], [1], [0, 0, 1, 1], [], []>} : vector<20x16xf32>, vector<16x16xf32>, vector<20x16xf32> -> vector<20x16xf32>
    %102 = arith.addf %98, %101 : vector<20x16xf32>
    %c2 = arith.constant 2 : index
    %c0_67 = arith.constant 0 : index
    %c0_68 = arith.constant 0 : index
    %103 = vector.load %arg4[%c2, %c0_67, %c0_68] : memref<4x32x16xf32, #tpu.memory_space<vmem>>, vector<1x32x16xf32>
    %104 = vector.shape_cast %103 : vector<1x32x16xf32> to vector<32x16xf32>
    %105 = vector.extract_strided_slice %79 {offsets = [5, 0], sizes = [20, 16], strides = [1, 1]} : vector<32x16xf32> to vector<20x16xf32>
    %106 = vector.extract_strided_slice %104 {offsets = [0, 0], sizes = [16, 16], strides = [1, 1]} : vector<32x16xf32> to vector<16x16xf32>
    %cst_69 = arith.constant dense<0.000000e+00> : vector<20x16xf32>
    %107 = tpu.matmul %105, %106, %cst_69 {dimension_numbers = #tpu.dot_dimension_numbers<[1], [0], [0], [1], [0, 0, 1, 1], [], []>} : vector<20x16xf32>, vector<16x16xf32>, vector<20x16xf32> -> vector<20x16xf32>
    %108 = arith.addf %102, %107 : vector<20x16xf32>
    %109 = vector.extract_strided_slice %79 {offsets = [6, 0], sizes = [20, 16], strides = [1, 1]} : vector<32x16xf32> to vector<20x16xf32>
    %110 = vector.extract_strided_slice %104 {offsets = [16, 0], sizes = [16, 16], strides = [1, 1]} : vector<32x16xf32> to vector<16x16xf32>
    %cst_70 = arith.constant dense<0.000000e+00> : vector<20x16xf32>
    %111 = tpu.matmul %109, %110, %cst_70 {dimension_numbers = #tpu.dot_dimension_numbers<[1], [0], [0], [1], [0, 0, 1, 1], [], []>} : vector<20x16xf32>, vector<16x16xf32>, vector<20x16xf32> -> vector<20x16xf32>
    %112 = arith.addf %108, %111 : vector<20x16xf32>
    %c3 = arith.constant 3 : index
    %c0_71 = arith.constant 0 : index
    %c0_72 = arith.constant 0 : index
    %113 = vector.load %arg4[%c3, %c0_71, %c0_72] : memref<4x32x16xf32, #tpu.memory_space<vmem>>, vector<1x32x16xf32>
    %114 = vector.shape_cast %113 : vector<1x32x16xf32> to vector<32x16xf32>
    %115 = vector.extract_strided_slice %81 {offsets = [5, 0], sizes = [20, 16], strides = [1, 1]} : vector<32x16xf32> to vector<20x16xf32>
    %116 = vector.extract_strided_slice %114 {offsets = [0, 0], sizes = [16, 16], strides = [1, 1]} : vector<32x16xf32> to vector<16x16xf32>
    %cst_73 = arith.constant dense<0.000000e+00> : vector<20x16xf32>
    %117 = tpu.matmul %115, %116, %cst_73 {dimension_numbers = #tpu.dot_dimension_numbers<[1], [0], [0], [1], [0, 0, 1, 1], [], []>} : vector<20x16xf32>, vector<16x16xf32>, vector<20x16xf32> -> vector<20x16xf32>
    %118 = arith.addf %112, %117 : vector<20x16xf32>
    %119 = vector.extract_strided_slice %81 {offsets = [6, 0], sizes = [20, 16], strides = [1, 1]} : vector<32x16xf32> to vector<20x16xf32>
    %120 = vector.extract_strided_slice %114 {offsets = [16, 0], sizes = [16, 16], strides = [1, 1]} : vector<32x16xf32> to vector<16x16xf32>
    %cst_74 = arith.constant dense<0.000000e+00> : vector<20x16xf32>
    %121 = tpu.matmul %119, %120, %cst_74 {dimension_numbers = #tpu.dot_dimension_numbers<[1], [0], [0], [1], [0, 0, 1, 1], [], []>} : vector<20x16xf32>, vector<16x16xf32>, vector<20x16xf32> -> vector<20x16xf32>
    %122 = arith.addf %118, %121 : vector<20x16xf32>
    %c0_75 = arith.constant 0 : index
    %c0_76 = arith.constant 0 : index
    %123 = vector.load %arg5[%c0_75, %c0_76] : memref<1x16xf32, #tpu.memory_space<vmem>>, vector<1x16xf32>
    %124 = vector.broadcast %123 : vector<1x16xf32> to vector<20x16xf32>
    %125 = arith.addf %122, %124 : vector<20x16xf32>
    %cst_77 = arith.constant 0.000000e+00 : f32
    %126 = vector.broadcast %cst_77 : f32 to vector<20x16xf32>
    %127 = arith.cmpf oge, %125, %126 : vector<20x16xf32>
    %cst_78 = arith.constant 1.000000e-01 : f32
    %128 = vector.broadcast %cst_78 : f32 to vector<20x16xf32>
    %129 = arith.mulf %128, %125 : vector<20x16xf32>
    %130 = arith.select %127, %125, %129 : vector<20x16xi1>, vector<20x16xf32>
    %cst_79 = arith.constant 0.000000e+00 : f32
    %131 = vector.broadcast %cst_79 : f32 to vector<1x32xf32>
    %132 = vector.extract_strided_slice %130 {offsets = [0, 0], sizes = [1, 16], strides = [1, 1]} : vector<20x16xf32> to vector<1x16xf32>
    %c0_80 = arith.constant 0 : index
    %c0_81 = arith.constant 0 : index
    %c0_82 = arith.constant 0 : index
    %133 = vector.load %arg6[%c0_80, %c0_81, %c0_82] : memref<16x16x32xf32, #tpu.memory_space<vmem>>, vector<1x16x32xf32>
    %134 = vector.shape_cast %133 : vector<1x16x32xf32> to vector<16x32xf32>
    %cst_83 = arith.constant dense<0.000000e+00> : vector<1x32xf32>
    %135 = tpu.matmul %132, %134, %cst_83 {dimension_numbers = #tpu.dot_dimension_numbers<[1], [0], [0], [1], [0, 0, 1, 1], [], []>} : vector<1x16xf32>, vector<16x32xf32>, vector<1x32xf32> -> vector<1x32xf32>
    %136 = arith.addf %131, %135 : vector<1x32xf32>
    %137 = vector.extract_strided_slice %130 {offsets = [1, 0], sizes = [1, 16], strides = [1, 1]} : vector<20x16xf32> to vector<1x16xf32>
    %c1_84 = arith.constant 1 : index
    %c0_85 = arith.constant 0 : index
    %c0_86 = arith.constant 0 : index
    %138 = vector.load %arg6[%c1_84, %c0_85, %c0_86] : memref<16x16x32xf32, #tpu.memory_space<vmem>>, vector<1x16x32xf32>
    %139 = vector.shape_cast %138 : vector<1x16x32xf32> to vector<16x32xf32>
    %cst_87 = arith.constant dense<0.000000e+00> : vector<1x32xf32>
    %140 = tpu.matmul %137, %139, %cst_87 {dimension_numbers = #tpu.dot_dimension_numbers<[1], [0], [0], [1], [0, 0, 1, 1], [], []>} : vector<1x16xf32>, vector<16x32xf32>, vector<1x32xf32> -> vector<1x32xf32>
    %141 = arith.addf %136, %140 : vector<1x32xf32>
    %142 = vector.extract_strided_slice %130 {offsets = [2, 0], sizes = [1, 16], strides = [1, 1]} : vector<20x16xf32> to vector<1x16xf32>
    %c2_88 = arith.constant 2 : index
    %c0_89 = arith.constant 0 : index
    %c0_90 = arith.constant 0 : index
    %143 = vector.load %arg6[%c2_88, %c0_89, %c0_90] : memref<16x16x32xf32, #tpu.memory_space<vmem>>, vector<1x16x32xf32>
    %144 = vector.shape_cast %143 : vector<1x16x32xf32> to vector<16x32xf32>
    %cst_91 = arith.constant dense<0.000000e+00> : vector<1x32xf32>
    %145 = tpu.matmul %142, %144, %cst_91 {dimension_numbers = #tpu.dot_dimension_numbers<[1], [0], [0], [1], [0, 0, 1, 1], [], []>} : vector<1x16xf32>, vector<16x32xf32>, vector<1x32xf32> -> vector<1x32xf32>
    %146 = arith.addf %141, %145 : vector<1x32xf32>
    %147 = vector.extract_strided_slice %130 {offsets = [3, 0], sizes = [1, 16], strides = [1, 1]} : vector<20x16xf32> to vector<1x16xf32>
    %c3_92 = arith.constant 3 : index
    %c0_93 = arith.constant 0 : index
    %c0_94 = arith.constant 0 : index
    %148 = vector.load %arg6[%c3_92, %c0_93, %c0_94] : memref<16x16x32xf32, #tpu.memory_space<vmem>>, vector<1x16x32xf32>
    %149 = vector.shape_cast %148 : vector<1x16x32xf32> to vector<16x32xf32>
    %cst_95 = arith.constant dense<0.000000e+00> : vector<1x32xf32>
    %150 = tpu.matmul %147, %149, %cst_95 {dimension_numbers = #tpu.dot_dimension_numbers<[1], [0], [0], [1], [0, 0, 1, 1], [], []>} : vector<1x16xf32>, vector<16x32xf32>, vector<1x32xf32> -> vector<1x32xf32>
    %151 = arith.addf %146, %150 : vector<1x32xf32>
    %152 = vector.extract_strided_slice %130 {offsets = [5, 0], sizes = [1, 16], strides = [1, 1]} : vector<20x16xf32> to vector<1x16xf32>
    %c4 = arith.constant 4 : index
    %c0_96 = arith.constant 0 : index
    %c0_97 = arith.constant 0 : index
    %153 = vector.load %arg6[%c4, %c0_96, %c0_97] : memref<16x16x32xf32, #tpu.memory_space<vmem>>, vector<1x16x32xf32>
    %154 = vector.shape_cast %153 : vector<1x16x32xf32> to vector<16x32xf32>
    %cst_98 = arith.constant dense<0.000000e+00> : vector<1x32xf32>
    %155 = tpu.matmul %152, %154, %cst_98 {dimension_numbers = #tpu.dot_dimension_numbers<[1], [0], [0], [1], [0, 0, 1, 1], [], []>} : vector<1x16xf32>, vector<16x32xf32>, vector<1x32xf32> -> vector<1x32xf32>
    %156 = arith.addf %151, %155 : vector<1x32xf32>
    %157 = vector.extract_strided_slice %130 {offsets = [6, 0], sizes = [1, 16], strides = [1, 1]} : vector<20x16xf32> to vector<1x16xf32>
    %c5_99 = arith.constant 5 : index
    %c0_100 = arith.constant 0 : index
    %c0_101 = arith.constant 0 : index
    %158 = vector.load %arg6[%c5_99, %c0_100, %c0_101] : memref<16x16x32xf32, #tpu.memory_space<vmem>>, vector<1x16x32xf32>
    %159 = vector.shape_cast %158 : vector<1x16x32xf32> to vector<16x32xf32>
    %cst_102 = arith.constant dense<0.000000e+00> : vector<1x32xf32>
    %160 = tpu.matmul %157, %159, %cst_102 {dimension_numbers = #tpu.dot_dimension_numbers<[1], [0], [0], [1], [0, 0, 1, 1], [], []>} : vector<1x16xf32>, vector<16x32xf32>, vector<1x32xf32> -> vector<1x32xf32>
    %161 = arith.addf %156, %160 : vector<1x32xf32>
    %162 = vector.extract_strided_slice %130 {offsets = [7, 0], sizes = [1, 16], strides = [1, 1]} : vector<20x16xf32> to vector<1x16xf32>
    %c6_103 = arith.constant 6 : index
    %c0_104 = arith.constant 0 : index
    %c0_105 = arith.constant 0 : index
    %163 = vector.load %arg6[%c6_103, %c0_104, %c0_105] : memref<16x16x32xf32, #tpu.memory_space<vmem>>, vector<1x16x32xf32>
    %164 = vector.shape_cast %163 : vector<1x16x32xf32> to vector<16x32xf32>
    %cst_106 = arith.constant dense<0.000000e+00> : vector<1x32xf32>
    %165 = tpu.matmul %162, %164, %cst_106 {dimension_numbers = #tpu.dot_dimension_numbers<[1], [0], [0], [1], [0, 0, 1, 1], [], []>} : vector<1x16xf32>, vector<16x32xf32>, vector<1x32xf32> -> vector<1x32xf32>
    %166 = arith.addf %161, %165 : vector<1x32xf32>
    %167 = vector.extract_strided_slice %130 {offsets = [8, 0], sizes = [1, 16], strides = [1, 1]} : vector<20x16xf32> to vector<1x16xf32>
    %c7 = arith.constant 7 : index
    %c0_107 = arith.constant 0 : index
    %c0_108 = arith.constant 0 : index
    %168 = vector.load %arg6[%c7, %c0_107, %c0_108] : memref<16x16x32xf32, #tpu.memory_space<vmem>>, vector<1x16x32xf32>
    %169 = vector.shape_cast %168 : vector<1x16x32xf32> to vector<16x32xf32>
    %cst_109 = arith.constant dense<0.000000e+00> : vector<1x32xf32>
    %170 = tpu.matmul %167, %169, %cst_109 {dimension_numbers = #tpu.dot_dimension_numbers<[1], [0], [0], [1], [0, 0, 1, 1], [], []>} : vector<1x16xf32>, vector<16x32xf32>, vector<1x32xf32> -> vector<1x32xf32>
    %171 = arith.addf %166, %170 : vector<1x32xf32>
    %172 = vector.extract_strided_slice %130 {offsets = [10, 0], sizes = [1, 16], strides = [1, 1]} : vector<20x16xf32> to vector<1x16xf32>
    %c8_110 = arith.constant 8 : index
    %c0_111 = arith.constant 0 : index
    %c0_112 = arith.constant 0 : index
    %173 = vector.load %arg6[%c8_110, %c0_111, %c0_112] : memref<16x16x32xf32, #tpu.memory_space<vmem>>, vector<1x16x32xf32>
    %174 = vector.shape_cast %173 : vector<1x16x32xf32> to vector<16x32xf32>
    %cst_113 = arith.constant dense<0.000000e+00> : vector<1x32xf32>
    %175 = tpu.matmul %172, %174, %cst_113 {dimension_numbers = #tpu.dot_dimension_numbers<[1], [0], [0], [1], [0, 0, 1, 1], [], []>} : vector<1x16xf32>, vector<16x32xf32>, vector<1x32xf32> -> vector<1x32xf32>
    %176 = arith.addf %171, %175 : vector<1x32xf32>
    %177 = vector.extract_strided_slice %130 {offsets = [11, 0], sizes = [1, 16], strides = [1, 1]} : vector<20x16xf32> to vector<1x16xf32>
    %c9 = arith.constant 9 : index
    %c0_114 = arith.constant 0 : index
    %c0_115 = arith.constant 0 : index
    %178 = vector.load %arg6[%c9, %c0_114, %c0_115] : memref<16x16x32xf32, #tpu.memory_space<vmem>>, vector<1x16x32xf32>
    %179 = vector.shape_cast %178 : vector<1x16x32xf32> to vector<16x32xf32>
    %cst_116 = arith.constant dense<0.000000e+00> : vector<1x32xf32>
    %180 = tpu.matmul %177, %179, %cst_116 {dimension_numbers = #tpu.dot_dimension_numbers<[1], [0], [0], [1], [0, 0, 1, 1], [], []>} : vector<1x16xf32>, vector<16x32xf32>, vector<1x32xf32> -> vector<1x32xf32>
    %181 = arith.addf %176, %180 : vector<1x32xf32>
    %182 = vector.extract_strided_slice %130 {offsets = [12, 0], sizes = [1, 16], strides = [1, 1]} : vector<20x16xf32> to vector<1x16xf32>
    %c10_117 = arith.constant 10 : index
    %c0_118 = arith.constant 0 : index
    %c0_119 = arith.constant 0 : index
    %183 = vector.load %arg6[%c10_117, %c0_118, %c0_119] : memref<16x16x32xf32, #tpu.memory_space<vmem>>, vector<1x16x32xf32>
    %184 = vector.shape_cast %183 : vector<1x16x32xf32> to vector<16x32xf32>
    %cst_120 = arith.constant dense<0.000000e+00> : vector<1x32xf32>
    %185 = tpu.matmul %182, %184, %cst_120 {dimension_numbers = #tpu.dot_dimension_numbers<[1], [0], [0], [1], [0, 0, 1, 1], [], []>} : vector<1x16xf32>, vector<16x32xf32>, vector<1x32xf32> -> vector<1x32xf32>
    %186 = arith.addf %181, %185 : vector<1x32xf32>
    %187 = vector.extract_strided_slice %130 {offsets = [13, 0], sizes = [1, 16], strides = [1, 1]} : vector<20x16xf32> to vector<1x16xf32>
    %c11_121 = arith.constant 11 : index
    %c0_122 = arith.constant 0 : index
    %c0_123 = arith.constant 0 : index
    %188 = vector.load %arg6[%c11_121, %c0_122, %c0_123] : memref<16x16x32xf32, #tpu.memory_space<vmem>>, vector<1x16x32xf32>
    %189 = vector.shape_cast %188 : vector<1x16x32xf32> to vector<16x32xf32>
    %cst_124 = arith.constant dense<0.000000e+00> : vector<1x32xf32>
    %190 = tpu.matmul %187, %189, %cst_124 {dimension_numbers = #tpu.dot_dimension_numbers<[1], [0], [0], [1], [0, 0, 1, 1], [], []>} : vector<1x16xf32>, vector<16x32xf32>, vector<1x32xf32> -> vector<1x32xf32>
    %191 = arith.addf %186, %190 : vector<1x32xf32>
    %192 = vector.extract_strided_slice %130 {offsets = [15, 0], sizes = [1, 16], strides = [1, 1]} : vector<20x16xf32> to vector<1x16xf32>
    %c12 = arith.constant 12 : index
    %c0_125 = arith.constant 0 : index
    %c0_126 = arith.constant 0 : index
    %193 = vector.load %arg6[%c12, %c0_125, %c0_126] : memref<16x16x32xf32, #tpu.memory_space<vmem>>, vector<1x16x32xf32>
    %194 = vector.shape_cast %193 : vector<1x16x32xf32> to vector<16x32xf32>
    %cst_127 = arith.constant dense<0.000000e+00> : vector<1x32xf32>
    %195 = tpu.matmul %192, %194, %cst_127 {dimension_numbers = #tpu.dot_dimension_numbers<[1], [0], [0], [1], [0, 0, 1, 1], [], []>} : vector<1x16xf32>, vector<16x32xf32>, vector<1x32xf32> -> vector<1x32xf32>
    %196 = arith.addf %191, %195 : vector<1x32xf32>
    %197 = vector.extract_strided_slice %130 {offsets = [16, 0], sizes = [1, 16], strides = [1, 1]} : vector<20x16xf32> to vector<1x16xf32>
    %c13 = arith.constant 13 : index
    %c0_128 = arith.constant 0 : index
    %c0_129 = arith.constant 0 : index
    %198 = vector.load %arg6[%c13, %c0_128, %c0_129] : memref<16x16x32xf32, #tpu.memory_space<vmem>>, vector<1x16x32xf32>
    %199 = vector.shape_cast %198 : vector<1x16x32xf32> to vector<16x32xf32>
    %cst_130 = arith.constant dense<0.000000e+00> : vector<1x32xf32>
    %200 = tpu.matmul %197, %199, %cst_130 {dimension_numbers = #tpu.dot_dimension_numbers<[1], [0], [0], [1], [0, 0, 1, 1], [], []>} : vector<1x16xf32>, vector<16x32xf32>, vector<1x32xf32> -> vector<1x32xf32>
    %201 = arith.addf %196, %200 : vector<1x32xf32>
    %202 = vector.extract_strided_slice %130 {offsets = [17, 0], sizes = [1, 16], strides = [1, 1]} : vector<20x16xf32> to vector<1x16xf32>
    %c14 = arith.constant 14 : index
    %c0_131 = arith.constant 0 : index
    %c0_132 = arith.constant 0 : index
    %203 = vector.load %arg6[%c14, %c0_131, %c0_132] : memref<16x16x32xf32, #tpu.memory_space<vmem>>, vector<1x16x32xf32>
    %204 = vector.shape_cast %203 : vector<1x16x32xf32> to vector<16x32xf32>
    %cst_133 = arith.constant dense<0.000000e+00> : vector<1x32xf32>
    %205 = tpu.matmul %202, %204, %cst_133 {dimension_numbers = #tpu.dot_dimension_numbers<[1], [0], [0], [1], [0, 0, 1, 1], [], []>} : vector<1x16xf32>, vector<16x32xf32>, vector<1x32xf32> -> vector<1x32xf32>
    %206 = arith.addf %201, %205 : vector<1x32xf32>
    %207 = vector.extract_strided_slice %130 {offsets = [18, 0], sizes = [1, 16], strides = [1, 1]} : vector<20x16xf32> to vector<1x16xf32>
    %c15_134 = arith.constant 15 : index
    %c0_135 = arith.constant 0 : index
    %c0_136 = arith.constant 0 : index
    %208 = vector.load %arg6[%c15_134, %c0_135, %c0_136] : memref<16x16x32xf32, #tpu.memory_space<vmem>>, vector<1x16x32xf32>
    %209 = vector.shape_cast %208 : vector<1x16x32xf32> to vector<16x32xf32>
    %cst_137 = arith.constant dense<0.000000e+00> : vector<1x32xf32>
    %210 = tpu.matmul %207, %209, %cst_137 {dimension_numbers = #tpu.dot_dimension_numbers<[1], [0], [0], [1], [0, 0, 1, 1], [], []>} : vector<1x16xf32>, vector<16x32xf32>, vector<1x32xf32> -> vector<1x32xf32>
    %211 = arith.addf %206, %210 : vector<1x32xf32>
    %c0_138 = arith.constant 0 : index
    %c0_139 = arith.constant 0 : index
    %212 = vector.load %arg7[%c0_138, %c0_139] : memref<1x32xf32, #tpu.memory_space<vmem>>, vector<1x32xf32>
    %213 = arith.addf %211, %212 : vector<1x32xf32>
    %cst_140 = arith.constant 0.000000e+00 : f32
    %214 = vector.broadcast %cst_140 : f32 to vector<1x32xf32>
    %215 = arith.cmpf oge, %213, %214 : vector<1x32xf32>
    %cst_141 = arith.constant 1.000000e-01 : f32
    %216 = vector.broadcast %cst_141 : f32 to vector<1x32xf32>
    %217 = arith.mulf %216, %213 : vector<1x32xf32>
    %218 = arith.select %215, %213, %217 : vector<1x32xi1>, vector<1x32xf32>
    %c0_142 = arith.constant 0 : index
    %c0_143 = arith.constant 0 : index
    %219 = vector.load %arg8[%c0_142, %c0_143] : memref<32x10xf32, #tpu.memory_space<vmem>>, vector<32x10xf32>
    %cst_144 = arith.constant dense<0.000000e+00> : vector<1x10xf32>
    %220 = tpu.matmul %218, %219, %cst_144 {dimension_numbers = #tpu.dot_dimension_numbers<[1], [0], [0], [1], [0, 0, 1, 1], [], []>} : vector<1x32xf32>, vector<32x10xf32>, vector<1x10xf32> -> vector<1x10xf32>
    %c0_145 = arith.constant 0 : index
    %c0_146 = arith.constant 0 : index
    %221 = vector.load %arg9[%c0_145, %c0_146] : memref<1x10xf32, #tpu.memory_space<vmem>>, vector<1x10xf32>
    %222 = arith.addf %220, %221 : vector<1x10xf32>
    %c0_147 = arith.constant 0 : index
    %c0_148 = arith.constant 0 : index
    %c0_149 = arith.constant 0 : index
    %223 = vector.load %arg10[%c0_147, %c0_148, %c0_149] : memref<1x1x10xf32, #tpu.memory_space<vmem>>, vector<1x1x10xf32>
    %224 = vector.shape_cast %223 : vector<1x1x10xf32> to vector<1x10xf32>
    %225 = vector.shape_cast %222 : vector<1x10xf32> to vector<1x1x10xf32>
    tpu.vector_store %arg10[%c0_147, %c0_148, %c0_149], %225 {strides = array<i32>} : memref<1x1x10xf32, #tpu.memory_space<vmem>>, vector<1x1x10xf32>,
    return
  }
  func.func @transform_0(%arg0: i32) -> (i32, i32, i32) {
    %c0_i32 = arith.constant 0 : i32
    %c0_i32_0 = arith.constant 0 : i32
    %c0_i32_1 = arith.constant 0 : i32
    return %arg0, %c0_i32, %c0_i32_0 : i32, i32, i32
  }
  func.func @transform_1(%arg0: i32) -> (i32, i32) {
    %c0_i32 = arith.constant 0 : i32
    %c0_i32_0 = arith.constant 0 : i32
    %c0_i32_1 = arith.constant 0 : i32
    return %c0_i32, %c0_i32_0 : i32, i32
  }
  func.func @transform_2(%arg0: i32) -> (i32, i32) {
    %c0_i32 = arith.constant 0 : i32
    %c0_i32_0 = arith.constant 0 : i32
    %c0_i32_1 = arith.constant 0 : i32
    return %c0_i32, %c0_i32_0 : i32, i32
  }
  func.func @transform_3(%arg0: i32) -> (i32, i32, i32) {
    %c0_i32 = arith.constant 0 : i32
    %c0_i32_0 = arith.constant 0 : i32
    %c0_i32_1 = arith.constant 0 : i32
    %c0_i32_2 = arith.constant 0 : i32
    return %c0_i32, %c0_i32_0, %c0_i32_1 : i32, i32, i32
  }
  func.func @transform_4(%arg0: i32) -> (i32, i32) {
    %c0_i32 = arith.constant 0 : i32
    %c0_i32_0 = arith.constant 0 : i32
    %c0_i32_1 = arith.constant 0 : i32
    return %c0_i32, %c0_i32_0 : i32, i32
  }
  func.func @transform_5(%arg0: i32) -> (i32, i32, i32) {
    %c0_i32 = arith.constant 0 : i32
    %c0_i32_0 = arith.constant 0 : i32
    %c0_i32_1 = arith.constant 0 : i32
    %c0_i32_2 = arith.constant 0 : i32
    return %c0_i32, %c0_i32_0, %c0_i32_1 : i32, i32, i32
  }
  func.func @transform_6(%arg0: i32) -> (i32, i32) {
    %c0_i32 = arith.constant 0 : i32
    %c0_i32_0 = arith.constant 0 : i32
    %c0_i32_1 = arith.constant 0 : i32
    return %c0_i32, %c0_i32_0 : i32, i32
  }
  func.func @transform_7(%arg0: i32) -> (i32, i32) {
    %c0_i32 = arith.constant 0 : i32
    %c0_i32_0 = arith.constant 0 : i32
    %c0_i32_1 = arith.constant 0 : i32
    return %c0_i32, %c0_i32_0 : i32, i32
  }
  func.func @transform_8(%arg0: i32) -> (i32, i32) {
    %c0_i32 = arith.constant 0 : i32
    %c0_i32_0 = arith.constant 0 : i32
    %c0_i32_1 = arith.constant 0 : i32
    return %c0_i32, %c0_i32_0 : i32, i32
  }
  func.func @transform_9(%arg0: i32) -> (i32, i32, i32) {
    %c0_i32 = arith.constant 0 : i32
    %c0_i32_0 = arith.constant 0 : i32
    %c0_i32_1 = arith.constant 0 : i32
    return %arg0, %c0_i32, %c0_i32_0 : i32, i32, i32
  }
}

</mosaic_0001>

<llo_original>
// kernel: _lambda_.1
$region0: #{_lambda_.1}
  #allocation0 [shape = 'u32[]', space=smem, size = 0x4, offset = 0x4, fixed_abs, tag = 'smem constant byte address 0x4 - core index']
  #allocation1 [shape = 'u32[144,128]{1,0:T(1,128)}', space=vmem, size = 0x12000, scoped, tag = 'internal scratch']
  #allocation2 [shape = 'f32[2,32,16]{2,1,0:T(8,128)}', space=vmem, size = 0x8000, scoped, tag = 'scratch operand']
  %s0 = inlined_call_operand.vmem [shape: f32[2,64,64], index: 0, kind: input, shape index: {}]
  %s1 = inlined_call_operand.vmem [shape: f32[64,8], index: 1, kind: input, shape index: {}]
  %s2 = inlined_call_operand.vmem [shape: f32[1,8], index: 2, kind: input, shape index: {}]
  %s3 = inlined_call_operand.vmem [shape: f32[4,32,16], index: 3, kind: input, shape index: {}]
  %s4 = inlined_call_operand.vmem [shape: f32[1,16], index: 4, kind: input, shape index: {}]
  %s5 = inlined_call_operand.vmem [shape: f32[16,16,32], index: 5, kind: input, shape index: {}]
  %s6 = inlined_call_operand.vmem [shape: f32[1,32], index: 6, kind: input, shape index: {}]
  %s7 = inlined_call_operand.vmem [shape: f32[32,10], index: 7, kind: input, shape index: {}]
  %s8 = inlined_call_operand.vmem [shape: f32[1,10], index: 8, kind: input, shape index: {}]
  %s9 = inlined_call_operand.hbm [shape: f32[2,1,10], index: 9, kind: output, shape index: {}]
  %s10 = sld [smem:[#allocation0]]
  $region69: #{_lambda_.1} parent=0
    _
  %s12 = ssub.s32 1, %s10
  %s13 = scalar_select 0, %s12, %s10
  $region1: #{_lambda_.1} parent=0
    #allocation3 [shape = 'u8[1024]{0}', space=vmem, size = 0x400, scoped, tag = 'output window, operand 0']
    #allocation4 [shape = 's32[2]{0}', space=sflag, size = 0x8, scoped, tag = 'scoped memory for _lambda_.1']
    %14 = vsyncpa [#allocation4], 0
    %s15 = scalar_lea.sflag [#allocation4], 1
    %16 = vsyncpa %s15, 0
    loop: start=0, step=1, limit=4
    $region2: #{_lambda_.1} parent=1 // loop_pre_header
      _
    $region3: #{_lambda_.1} parent=1 // loop_header
      %s18 = sphi 0, %s22
      %p19 = scmp.ge.s32.totalorder %s18, 4
      %s28 = sphi 0, %s30
      %s31 = sphi 0, %s28
      %s32 = sphi 0, %s31
      %s48 = sphi 0, %s32
      %s52 = sphi 0, %s52
      %s54 = sphi 0, %s52
      %s55 = sphi 0, %s54
      %s69 = sphi 0, %s55
      %s73 = sphi 0, %s73
      %s75 = sphi 0, %s73
      %s76 = sphi 0, %s75
      %s90 = sphi 0, %s76
      %s94 = sphi 0, %s94
      %s96 = sphi 0, %s94
      %s97 = sphi 0, %s96
      %s111 = sphi 0, %s97
      %s115 = sphi 0, %s115
      %s117 = sphi 0, %s115
      %s118 = sphi 0, %s117
      %s132 = sphi 0, %s118
      %s136 = sphi 0, %s136
      %s138 = sphi 0, %s136
      %s139 = sphi 0, %s138
      %s153 = sphi 0, %s139
      %s157 = sphi 0, %s157
      %s159 = sphi 0, %s157
      %s160 = sphi 0, %s159
      %s174 = sphi 0, %s160
      %s178 = sphi 0, %s178
      %s180 = sphi 0, %s178
      %s181 = sphi 0, %s180
      %s195 = sphi 0, %s181
      %s199 = sphi 0, %s199
      %s201 = sphi 0, %s199
      %s202 = sphi 0, %s201
      %s216 = sphi 0, %s202
      %s222 = sphi 0, %s224
      %s225 = sphi 0, %s222
      %s226 = sphi 0, %s225
      %s242 = sphi 0, %s226
    $region4: #{_lambda_.1} parent=1 // loop_header_branch
      %21 = sbr.rel (%p19) target = $region8
    $region5: #{_lambda_.1} parent=1 // loop_body
      %s23 = ssub.s32 %s18, 1
      %s24 = ssub.s32 %s18, 2
      %s25 = sadd.s32 %s18, 1
      %s26 = ssub.s32 %s18, %s25
      %p27 = scmp.eq.s32.totalorder %s26, 0
      %s29 = sadd.s32 %s28, 1
      %s30 = scalar_select %p27, %s28, %s29
      %p33 = pneg %p27
      %p34 = scmp.eq.s32.totalorder %s18, 1
      %p35 = por %p33, %p34
      %p36 = scmp.ne.s32.totalorder %s28, %s31
      %p37 = scmp.eq.s32.totalorder %s18, 0
      %p38 = por %p36, %p37
      %p39 = scmp.ne.s32.totalorder %s28, %s31
      %p40 = scmp.eq.s32.totalorder %s23, 1
      %p41 = por %p39, %p40
      %p42 = scmp.ne.s32.totalorder %s31, %s32
      %p43 = scmp.eq.s32.totalorder %s23, 0
      %p44 = por %p42, %p43
      %p45 = scmp.ne.s32.totalorder %s31, %s32
      %p46 = scmp.eq.s32.totalorder %s24, 1
      %p47 = por %p45, %p46
      %p49 = scmp.ne.s32.totalorder %s32, %s48
      %p50 = scmp.eq.s32.totalorder %s24, 0
      %p51 = por %p49, %p50
      %s53 = sadd.s32 %s52, 1
      %p56 = scmp.eq.s32.totalorder %s18, 1
      %p57 = scmp.ne.s32.totalorder %s52, %s54
      %p58 = scmp.eq.s32.totalorder %s18, 0
      %p59 = por %p57, %p58
      %p60 = scmp.ne.s32.totalorder %s52, %s54
      %p61 = scmp.eq.s32.totalorder %s23, 1
      %p62 = por %p60, %p61
      %p63 = scmp.ne.s32.totalorder %s54, %s55
      %p64 = scmp.eq.s32.totalorder %s23, 0
      %p65 = por %p63, %p64
      %p66 = scmp.ne.s32.totalorder %s54, %s55
      %p67 = scmp.eq.s32.totalorder %s24, 1
      %p68 = por %p66, %p67
      %p70 = scmp.ne.s32.totalorder %s55, %s69
      %p71 = scmp.eq.s32.totalorder %s24, 0
      %p72 = por %p70, %p71
      %s74 = sadd.s32 %s73, 1
      %p77 = scmp.eq.s32.totalorder %s18, 1
      %p78 = scmp.ne.s32.totalorder %s73, %s75
      %p79 = scmp.eq.s32.totalorder %s18, 0
      %p80 = por %p78, %p79
      %p81 = scmp.ne.s32.totalorder %s73, %s75
      %p82 = scmp.eq.s32.totalorder %s23, 1
      %p83 = por %p81, %p82
      %p84 = scmp.ne.s32.totalorder %s75, %s76
      %p85 = scmp.eq.s32.totalorder %s23, 0
      %p86 = por %p84, %p85
      %p87 = scmp.ne.s32.totalorder %s75, %s76
      %p88 = scmp.eq.s32.totalorder %s24, 1
      %p89 = por %p87, %p88
      %p91 = scmp.ne.s32.totalorder %s76, %s90
      %p92 = scmp.eq.s32.totalorder %s24, 0
      %p93 = por %p91, %p92
      %s95 = sadd.s32 %s94, 1
      %p98 = scmp.eq.s32.totalorder %s18, 1
      %p99 = scmp.ne.s32.totalorder %s94, %s96
      %p100 = scmp.eq.s32.totalorder %s18, 0
      %p101 = por %p99, %p100
      %p102 = scmp.ne.s32.totalorder %s94, %s96
      %p103 = scmp.eq.s32.totalorder %s23, 1
      %p104 = por %p102, %p103
      %p105 = scmp.ne.s32.totalorder %s96, %s97
      %p106 = scmp.eq.s32.totalorder %s23, 0
      %p107 = por %p105, %p106
      %p108 = scmp.ne.s32.totalorder %s96, %s97
      %p109 = scmp.eq.s32.totalorder %s24, 1
      %p110 = por %p108, %p109
      %p112 = scmp.ne.s32.totalorder %s97, %s111
      %p113 = scmp.eq.s32.totalorder %s24, 0
      %p114 = por %p112, %p113
      %s116 = sadd.s32 %s115, 1
      %p119 = scmp.eq.s32.totalorder %s18, 1
      %p120 = scmp.ne.s32.totalorder %s115, %s117
      %p121 = scmp.eq.s32.totalorder %s18, 0
      %p122 = por %p120, %p121
      %p123 = scmp.ne.s32.totalorder %s115, %s117
      %p124 = scmp.eq.s32.totalorder %s23, 1
      %p125 = por %p123, %p124
      %p126 = scmp.ne.s32.totalorder %s117, %s118
      %p127 = scmp.eq.s32.totalorder %s23, 0
      %p128 = por %p126, %p127
      %p129 = scmp.ne.s32.totalorder %s117, %s118
      %p130 = scmp.eq.s32.totalorder %s24, 1
      %p131 = por %p129, %p130
      %p133 = scmp.ne.s32.totalorder %s118, %s132
      %p134 = scmp.eq.s32.totalorder %s24, 0
      %p135 = por %p133, %p134
      %s137 = sadd.s32 %s136, 1
      %p140 = scmp.eq.s32.totalorder %s18, 1
      %p141 = scmp.ne.s32.totalorder %s136, %s138
      %p142 = scmp.eq.s32.totalorder %s18, 0
      %p143 = por %p141, %p142
      %p144 = scmp.ne.s32.totalorder %s136, %s138
      %p145 = scmp.eq.s32.totalorder %s23, 1
      %p146 = por %p144, %p145
      %p147 = scmp.ne.s32.totalorder %s138, %s139
      %p148 = scmp.eq.s32.totalorder %s23, 0
      %p149 = por %p147, %p148
      %p150 = scmp.ne.s32.totalorder %s138, %s139
      %p151 = scmp.eq.s32.totalorder %s24, 1
      %p152 = por %p150, %p151
      %p154 = scmp.ne.s32.totalorder %s139, %s153
      %p155 = scmp.eq.s32.totalorder %s24, 0
      %p156 = por %p154, %p155
      %s158 = sadd.s32 %s157, 1
      %p161 = scmp.eq.s32.totalorder %s18, 1
      %p162 = scmp.ne.s32.totalorder %s157, %s159
      %p163 = scmp.eq.s32.totalorder %s18, 0
      %p164 = por %p162, %p163
      %p165 = scmp.ne.s32.totalorder %s157, %s159
      %p166 = scmp.eq.s32.totalorder %s23, 1
      %p167 = por %p165, %p166
      %p168 = scmp.ne.s32.totalorder %s159, %s160
      %p169 = scmp.eq.s32.totalorder %s23, 0
      %p170 = por %p168, %p169
      %p171 = scmp.ne.s32.totalorder %s159, %s160
      %p172 = scmp.eq.s32.totalorder %s24, 1
      %p173 = por %p171, %p172
      %p175 = scmp.ne.s32.totalorder %s160, %s174
      %p176 = scmp.eq.s32.totalorder %s24, 0
      %p177 = por %p175, %p176
      %s179 = sadd.s32 %s178, 1
      %p182 = scmp.eq.s32.totalorder %s18, 1
      %p183 = scmp.ne.s32.totalorder %s178, %s180
      %p184 = scmp.eq.s32.totalorder %s18, 0
      %p185 = por %p183, %p184
      %p186 = scmp.ne.s32.totalorder %s178, %s180
      %p187 = scmp.eq.s32.totalorder %s23, 1
      %p188 = por %p186, %p187
      %p189 = scmp.ne.s32.totalorder %s180, %s181
      %p190 = scmp.eq.s32.totalorder %s23, 0
      %p191 = por %p189, %p190
      %p192 = scmp.ne.s32.totalorder %s180, %s181
      %p193 = scmp.eq.s32.totalorder %s24, 1
      %p194 = por %p192, %p193
      %p196 = scmp.ne.s32.totalorder %s181, %s195
      %p197 = scmp.eq.s32.totalorder %s24, 0
      %p198 = por %p196, %p197
      %s200 = sadd.s32 %s199, 1
      %p203 = scmp.eq.s32.totalorder %s18, 1
      %p204 = scmp.ne.s32.totalorder %s199, %s201
      %p205 = scmp.eq.s32.totalorder %s18, 0
      %p206 = por %p204, %p205
      %p207 = scmp.ne.s32.totalorder %s199, %s201
      %p208 = scmp.eq.s32.totalorder %s23, 1
      %p209 = por %p207, %p208
      %p210 = scmp.ne.s32.totalorder %s201, %s202
      %p211 = scmp.eq.s32.totalorder %s23, 0
      %p212 = por %p210, %p211
      %p213 = scmp.ne.s32.totalorder %s201, %s202
      %p214 = scmp.eq.s32.totalorder %s24, 1
      %p215 = por %p213, %p214
      %p217 = scmp.ne.s32.totalorder %s202, %s216
      %p218 = scmp.eq.s32.totalorder %s24, 0
      %p219 = por %p217, %p218
      %s220 = ssub.s32 %s18, %s25
      %p221 = scmp.eq.s32.totalorder %s220, 0
      %s223 = sadd.s32 %s222, 1
      %s224 = scalar_select %p221, %s222, %s223
      %p227 = pneg %p221
      %p228 = scmp.eq.s32.totalorder %s18, 1
      %p229 = por %p227, %p228
      %p230 = scmp.ne.s32.totalorder %s222, %s225
      %p231 = scmp.eq.s32.totalorder %s18, 0
      %p232 = por %p230, %p231
      %p233 = scmp.ne.s32.totalorder %s222, %s225
      %p234 = scmp.eq.s32.totalorder %s23, 1
      %p235 = por %p233, %p234
      %p236 = scmp.ne.s32.totalorder %s225, %s226
      %p237 = scmp.eq.s32.totalorder %s23, 0
      %p238 = por %p236, %p237
      %p239 = scmp.ne.s32.totalorder %s225, %s226
      %p240 = scmp.eq.s32.totalorder %s24, 1
      %p241 = por %p239, %p240
      %p243 = scmp.ne.s32.totalorder %s226, %s242
      %p244 = scmp.eq.s32.totalorder %s24, 0
      %p245 = por %p243, %p244
      %p246 = scmp.le.s32.totalorder 1, %s18
      %p247 = scmp.lt.s32.totalorder %s18, 3
      %p248 = pnand %p246, %p247
      %p249 = pneg %p248
      // Predicated region
      $region9: #{_lambda_.1} parent=5 // pred_check
        _
      $region10: #{_lambda_.1} parent=5 // pred_check_branch
        %251 = sbr.rel (%p248) target = $region12
      $region11: #{_lambda_.1} parent=5 // pred_region
        %s252 = ssub.s32 %s18, 1
        // Predicated region
        $region13: #{_lambda_.1} parent=11 // pred_check
          %p253 = pneg %p65
        $region14: #{_lambda_.1} parent=11 // pred_check_branch
          %255 = sbr.rel (%p253) target = $region16
        $region15: #{_lambda_.1} parent=11 // pred_region
          _
        $region16: #{_lambda_.1} parent=11 // pred_fallthru
          _
        // Predicated region
        $region17: #{_lambda_.1} parent=11 // pred_check
          %p256 = pneg %p86
        $region18: #{_lambda_.1} parent=11 // pred_check_branch
          %258 = sbr.rel (%p256) target = $region20
        $region19: #{_lambda_.1} parent=11 // pred_region
          _
        $region20: #{_lambda_.1} parent=11 // pred_fallthru
          _
        // Predicated region
        $region21: #{_lambda_.1} parent=11 // pred_check
          %p259 = pneg %p107
        $region22: #{_lambda_.1} parent=11 // pred_check_branch
          %261 = sbr.rel (%p259) target = $region24
        $region23: #{_lambda_.1} parent=11 // pred_region
          _
        $region24: #{_lambda_.1} parent=11 // pred_fallthru
          _
        // Predicated region
        $region25: #{_lambda_.1} parent=11 // pred_check
          %p262 = pneg %p128
        $region26: #{_lambda_.1} parent=11 // pred_check_branch
          %264 = sbr.rel (%p262) target = $region28
        $region27: #{_lambda_.1} parent=11 // pred_region
          _
        $region28: #{_lambda_.1} parent=11 // pred_fallthru
          _
        // Predicated region
        $region29: #{_lambda_.1} parent=11 // pred_check
          %p265 = pneg %p149
        $region30: #{_lambda_.1} parent=11 // pred_check_branch
          %267 = sbr.rel (%p265) target = $region32
        $region31: #{_lambda_.1} parent=11 // pred_region
          _
        $region32: #{_lambda_.1} parent=11 // pred_fallthru
          _
        // Predicated region
        $region33: #{_lambda_.1} parent=11 // pred_check
          %p268 = pneg %p170
        $region34: #{_lambda_.1} parent=11 // pred_check_branch
          %270 = sbr.rel (%p268) target = $region36
        $region35: #{_lambda_.1} parent=11 // pred_region
          _
        $region36: #{_lambda_.1} parent=11 // pred_fallthru
          _
        // Predicated region
        $region37: #{_lambda_.1} parent=11 // pred_check
          %p271 = pneg %p191
        $region38: #{_lambda_.1} parent=11 // pred_check_branch
          %273 = sbr.rel (%p271) target = $region40
        $region39: #{_lambda_.1} parent=11 // pred_region
          _
        $region40: #{_lambda_.1} parent=11 // pred_fallthru
          _
        // Predicated region
        $region41: #{_lambda_.1} parent=11 // pred_check
          %p274 = pneg %p212
        $region42: #{_lambda_.1} parent=11 // pred_check_branch
          %276 = sbr.rel (%p274) target = $region44
        $region43: #{_lambda_.1} parent=11 // pred_region
          _
        $region44: #{_lambda_.1} parent=11 // pred_fallthru
          _
      $region12: #{_lambda_.1} parent=5 // pred_fallthru
        _
      %p277 = scmp.lt.s32.totalorder %s18, 2
      // Predicated region
      $region45: #{_lambda_.1} parent=5 // pred_check
        %p278 = pneg %p277
      $region46: #{_lambda_.1} parent=5 // pred_check_branch
        %280 = sbr.rel (%p278) target = $region48
      $region47: #{_lambda_.1} parent=5 // pred_region
        // Predicated region
        $region49: #{_lambda_.1} parent=47 // pred_check
          %p281 = pneg %p38
        $region50: #{_lambda_.1} parent=47 // pred_check_branch
          %283 = sbr.rel (%p281) target = $region52
        $region51: #{_lambda_.1} parent=47 // pred_region
          %p284 = scmp.lt.s32.totalorder %s18, 1
          %s285 = scalar_select %p284, %s18, 1
          %s286 = smul.addr %s285, 8
          %s287 = smul.addr %s286, 8
          %s288 = scalar_lea.vmem %s0, %s287
        $region52: #{_lambda_.1} parent=47 // pred_fallthru
          _
      $region48: #{_lambda_.1} parent=5 // pred_fallthru
        _
      %p289 = scmp.le.s32.totalorder 1, %s18
      %p290 = scmp.lt.s32.totalorder %s18, 3
      %p291 = pnand %p289, %p290
      %p292 = pneg %p291
      // Predicated region
      $region53: #{_lambda_.1} parent=5 // pred_check
        _
      $region54: #{_lambda_.1} parent=5 // pred_check_branch
        %294 = sbr.rel (%p291) target = $region56
      $region55: #{_lambda_.1} parent=5 // pred_region
        %s295 = ssub.s32 %s18, 1
        %p296 = scmp.lt.s32.totalorder %s23, 1
        %s297 = scalar_select %p296, %s23, 1
        %s298 = smul.addr %s297, 8
        %s299 = smul.addr %s298, 8
        %s300 = scalar_lea.vmem %s0, %s299
        %p301 = pneg %p44
        %p302 = pneg %p41
        %p303 = pneg %p65
        %p304 = pneg %p62
        %p305 = pneg %p86
        %p306 = pneg %p83
        %p307 = pneg %p107
        %p308 = pneg %p104
        %p309 = pneg %p128
        %p310 = pneg %p125
        %p311 = pneg %p149
        %p312 = pneg %p146
        %p313 = pneg %p170
        %p314 = pneg %p167
        %p315 = pneg %p191
        %p316 = pneg %p188
        %p317 = pneg %p212
        %p318 = pneg %p209
        %p319 = pneg %p238
        %p320 = pneg %p235
        %s321 = sand.u32 %s225, 1
        %s322 = scalar_lea.sflag [#allocation4], %s321
        %s323 = sand.u32 %s225, 1
        %s324 = scalar_lea.vmem [#allocation3], %s323
        %p325 = scmp.lt.s32.totalorder %s23, 1
        %s326 = scalar_select %p325, %s23, 1
        %s327 = smul.addr %s326, 8
        %s328 = smul.addr %s327, 8
        %s329 = scalar_lea.vmem %s0, %s328
        %v330 = vld [vmem:[%s329] sm:$0xff]
        %v331 = vld [vmem:[%s329 + $0x8] sm:$0xff]
        %v332 = vld [vmem:[%s329 + $0x10] sm:$0xff]
        %v333 = vld [vmem:[%s329 + $0x18] sm:$0xff]
        %v334 = vld [vmem:[%s329 + $0x20] sm:$0xff]
        %v335 = vld [vmem:[%s329 + $0x28] sm:$0xff]
        %v336 = vld [vmem:[%s329 + $0x30] sm:$0xff]
        %v337 = vld [vmem:[%s329 + $0x38] sm:$0xff]
        %v338 = vld [vmem:[%s1] sm:$0xff]
        %v339 = vld [vmem:[%s1 + $0x8] sm:$0xff]
        %v340 = vld [vmem:[%s1 + $0x10] sm:$0xff]
        %v341 = vld [vmem:[%s1 + $0x18] sm:$0xff]
        %v342 = vld [vmem:[%s1 + $0x20] sm:$0xff]
        %v343 = vld [vmem:[%s1 + $0x28] sm:$0xff]
        %v344 = vld [vmem:[%s1 + $0x30] sm:$0xff]
        %v345 = vld [vmem:[%s1 + $0x38] sm:$0xff]
        %v346 = vld [vmem:[%s2] sm:$0x1]
        %v348 = vlaneseq
        %v349 = vshrl.u32 %v348, 7
        %v350 = vsub.s32 0, %v349
        %v351 = vrot.slane %v346, %v350
        %vm353 = vcmask 523264
        %v355 = vsel %vm353, %v330, 0
        %v358 = vsel %vm353, %v331, 0
        %v361 = vsel %vm353, %v332, 0
        %v364 = vsel %vm353, %v333, 0
        %v367 = vsel %vm353, %v334, 0
        %v370 = vsel %vm353, %v335, 0
        %v373 = vsel %vm353, %v336, 0
        %v376 = vsel %vm353, %v337, 0
        %378 = vmatprep.subr.mxu0 0.0
        %379 = vmatpush1.msra.mxu0 %v338
        %380 = vmatprep.subr.mxu0 0.0
        %381 = vmatpush1.msra.mxu0 %v339
        %382 = vmatprep.subr.mxu0 0.0
        %383 = vmatpush1.msra.mxu0 %v340
        %384 = vmatprep.subr.mxu0 0.0
        %385 = vmatpush1.msra.mxu0 %v341
        %386 = vmatprep.subr.mxu0 0.0
        %387 = vmatpush1.msra.mxu0 %v342
        %388 = vmatprep.subr.mxu0 0.0
        %389 = vmatpush1.msra.mxu0 %v343
        %390 = vmatprep.subr.mxu0 0.0
        %391 = vmatpush1.msra.mxu0 %v344
        %392 = vmatprep.subr.mxu0 0.0
        %393 = vmatpush1.msra.mxu0 %v345
        %394 = vmatprep.subr.mxu0 0.0
        %395 = vmatpush1.msra.mxu0 0.0
        %396 = vmatprep.subr.mxu0 0.0
        %397 = vmatpush1.msra.mxu0 0.0
        %398 = vmatprep.subr.mxu0 0.0
        %399 = vmatpush1.msra.mxu0 0.0
        %400 = vmatprep.subr.mxu0 0.0
        %401 = vmatpush1.msra.mxu0 0.0
        %402 = vmatprep.subr.mxu0 0.0
        %403 = vmatpush1.msra.mxu0 0.0
        %404 = vmatprep.subr.mxu0 0.0
        %405 = vmatpush1.msra.mxu0 0.0
        %406 = vmatprep.subr.mxu0 0.0
        %407 = vmatpush1.msra.mxu0 0.0
        %408 = vmatprep.subr.mxu0 0.0
        %409 = vmatpush1.msra.mxu0 0.0
        %410 = vmatprep.subr.mxu0 0.0
        %411 = vmatpush1.msra.mxu0 0.0
        %412 = vmatprep.subr.mxu0 0.0
        %413 = vmatpush1.msra.mxu0 0.0
        %414 = vmatprep.subr.mxu0 0.0
        %415 = vmatpush1.msra.mxu0 0.0
        %416 = vmatprep.subr.mxu0 0.0
        %417 = vmatpush1.msra.mxu0 0.0
        %418 = vmatprep.subr.mxu0 0.0
        %419 = vmatpush1.msra.mxu0 0.0
        %420 = vmatprep.subr.mxu0 0.0
        %421 = vmatpush1.msra.mxu0 0.0
        %422 = vmatprep.subr.mxu0 0.0
        %423 = vmatpush1.msra.mxu0 0.0
        %424 = vmatprep.subr.mxu0 0.0
        %425 = vmatpush1.msra.mxu0 0.0
        %426 = vmatprep.subr.mxu0 0.0
        %427 = vmatpush1.msra.mxu0 0.0
        %428 = vmatprep.subr.mxu0 0.0
        %429 = vmatpush1.msra.mxu0 0.0
        %430 = vmatprep.subr.mxu0 0.0
        %431 = vmatpush1.msra.mxu0 0.0
        %432 = vmatprep.subr.mxu0 0.0
        %433 = vmatpush1.msra.mxu0 0.0
        %434 = vmatprep.subr.mxu0 0.0
        %435 = vmatpush1.msra.mxu0 0.0
        %436 = vmatprep.subr.mxu0 0.0
        %437 = vmatpush1.msra.mxu0 0.0
        %438 = vmatprep.subr.mxu0 0.0
        %439 = vmatpush1.msra.mxu0 0.0
        %440 = vmatprep.subr.mxu0 0.0
        %441 = vmatpush1.msra.mxu0 0.0
        %442 = vmatprep.mubr.f32.mxu0 0.0
        %443 = vmatmul.mubr.f32.gmra.mrb[0].mxu0 %v355
        %v444 = vpop.f32.mrb[0].mxu0
        %v445 = vadd.f32 %v351, %v444
        %v446 = vpop.f32.mrb[0].mxu0
        %447 = vmatprep.mubr.f32.mxu0 0.0
        %448 = vmatmul.mubr.f32.gmra.mrb[0].mxu0 %v358
        %v449 = vpop.f32.mrb[0].mxu0
        %v450 = vadd.f32 %v351, %v449
        %v451 = vpop.f32.mrb[0].mxu0
        %452 = vmatprep.mubr.f32.mxu0 0.0
        %453 = vmatmul.mubr.f32.gmra.mrb[0].mxu0 %v361
        %v454 = vpop.f32.mrb[0].mxu0
        %v455 = vadd.f32 %v351, %v454
        %v456 = vpop.f32.mrb[0].mxu0
        %457 = vmatprep.mubr.f32.mxu0 0.0
        %458 = vmatmul.mubr.f32.gmra.mrb[0].mxu0 %v364
        %v459 = vpop.f32.mrb[0].mxu0
        %v460 = vadd.f32 %v351, %v459
        %v461 = vpop.f32.mrb[0].mxu0
        %462 = vmatprep.mubr.f32.mxu0 0.0
        %463 = vmatmul.mubr.f32.gmra.mrb[0].mxu0 %v367
        %v464 = vpop.f32.mrb[0].mxu0
        %v465 = vadd.f32 %v351, %v464
        %v466 = vpop.f32.mrb[0].mxu0
        %467 = vmatprep.mubr.f32.mxu0 0.0
        %468 = vmatmul.mubr.f32.gmra.mrb[0].mxu0 %v370
        %v469 = vpop.f32.mrb[0].mxu0
        %v470 = vadd.f32 %v351, %v469
        %v471 = vpop.f32.mrb[0].mxu0
        %472 = vmatprep.mubr.f32.mxu0 0.0
        %473 = vmatmul.mubr.f32.gmra.mrb[0].mxu0 %v373
        %v474 = vpop.f32.mrb[0].mxu0
        %v475 = vadd.f32 %v351, %v474
        %v476 = vpop.f32.mrb[0].mxu0
        %477 = vmatprep.mubr.f32.mxu0 0.0
        %478 = vmatmul.mubr.f32.gmra.mrb[0].mxu0 %v376
        %v479 = vpop.f32.mrb[0].mxu0
        %v480 = vadd.f32 %v351, %v479
        %v481 = vpop.f32.mrb[0].mxu0
        %482 = vdwg.mxu0
        %vm483 = vcmp.ge.f32.partialorder %v445, 0.0
        %vm484 = vcmp.ge.f32.partialorder %v450, 0.0
        %vm485 = vcmp.ge.f32.partialorder %v455, 0.0
        %vm486 = vcmp.ge.f32.partialorder %v460, 0.0
        %vm487 = vcmp.ge.f32.partialorder %v465, 0.0
        %vm488 = vcmp.ge.f32.partialorder %v470, 0.0
        %vm489 = vcmp.ge.f32.partialorder %v475, 0.0
        %vm490 = vcmp.ge.f32.partialorder %v480, 0.0
        %v491 = vmul.f32 %v445, 0.1
        %v492 = vmul.f32 %v450, 0.1
        %v493 = vmul.f32 %v455, 0.1
        %v494 = vmul.f32 %v460, 0.1
        %v495 = vmul.f32 %v465, 0.1
        %v496 = vmul.f32 %v470, 0.1
        %v497 = vmul.f32 %v475, 0.1
        %v498 = vmul.f32 %v480, 0.1
        %v499 = vsel %vm483, %v445, %v491
        %v500 = vsel %vm484, %v450, %v492
        %v501 = vsel %vm485, %v455, %v493
        %v502 = vsel %vm486, %v460, %v494
        %v503 = vsel %vm487, %v465, %v495
        %v504 = vsel %vm488, %v470, %v496
        %v505 = vsel %vm489, %v475, %v497
        %v506 = vsel %vm490, %v480, %v498
        %vm507 = vcmask 130048
        %508 = vst.msk [vmem:[#allocation2] sm:$0xff] %vm507, 0.0
        %509 = vst.msk [vmem:[#allocation2 + $0x8] sm:$0xff] %vm507, 0.0
        %510 = vst.msk [vmem:[#allocation2 + $0x10] sm:$0xff] %vm507, 0.0
        %511 = vst.msk [vmem:[#allocation2 + $0x18] sm:$0xff] %vm507, 0.0
        %512 = vst.msk [vmem:[#allocation2 + $0x20] sm:$0xff] %vm507, 0.0
        %513 = vst.msk [vmem:[#allocation2 + $0x28] sm:$0xff] %vm507, 0.0
        %514 = vst.msk [vmem:[#allocation2 + $0x30] sm:$0xff] %vm507, 0.0
        %515 = vst.msk [vmem:[#allocation2 + $0x38] sm:$0xff] %vm507, 0.0
        %517 = vrot.lane.b32.xlu0 %v499, 8
        %v518 = vpop.permute.xlu0 %517
        %s520 = scalar_lea.vmem [#allocation2], 32
        %vm521 = vcmask 126016
        %522 = vst.msk [vmem:[%s520] sm:$0xf] %vm521, %v518
        %vm523 = vcmask 130116
        %524 = vst.msk [vmem:[%s520 + $0x1] sm:$0xf0] %vm523, %v518
        %526 = vrot.lane.b32.xlu0 %v500, 8
        %v527 = vpop.permute.xlu0 %526
        %529 = vst.msk [vmem:[%s520 + $0xa] sm:$0xf] %vm521, %v527
        %530 = vst.msk [vmem:[%s520 + $0xb] sm:$0xf0] %vm523, %v527
        %vm531 = vcmask 60416
        %532 = vst.msk [vmem:[%s520 + $0x1] sm:$0xf] %vm531, %v501
        %vm533 = vcmask 64516
        %534 = vst.msk [vmem:[%s520 + $0x2] sm:$0xf0] %vm533, %v501
        %535 = vst.msk [vmem:[%s520 + $0xb] sm:$0xf] %vm531, %v502
        %536 = vst.msk [vmem:[%s520 + $0xc] sm:$0xf0] %vm533, %v502
        %538 = vrot.lane.b32.xlu0 %v503, 8
        %v539 = vpop.permute.xlu0 %538
        %541 = vst.msk [vmem:[#allocation2 + $0x5] sm:$0xf] %vm521, %v539
        %542 = vst.msk [vmem:[#allocation2 + $0x6] sm:$0xf0] %vm523, %v539
        %544 = vrot.lane.b32.xlu0 %v504, 8
        %v545 = vpop.permute.xlu0 %544
        %547 = vst.msk [vmem:[#allocation2 + $0xf] sm:$0xf] %vm521, %v545
        %548 = vst.msk [vmem:[#allocation2 + $0x10] sm:$0xf0] %vm523, %v545
        %549 = vst.msk [vmem:[#allocation2 + $0x6] sm:$0xf] %vm531, %v505
        %550 = vst.msk [vmem:[#allocation2 + $0x7] sm:$0xf0] %vm533, %v505
        %551 = vst.msk [vmem:[#allocation2 + $0x10] sm:$0xf] %vm531, %v506
        %552 = vst.msk [vmem:[#allocation2 + $0x11] sm:$0xf0] %vm533, %v506
        %v553 = vld [vmem:[#allocation2] sm:$0xff]
        %v554 = vld [vmem:[#allocation2 + $0x8] sm:$0xff]
        %v555 = vld [vmem:[#allocation2 + $0x10] sm:$0xff]
        %v556 = vld [vmem:[#allocation2 + $0x18] sm:$0xff]
        %v557 = vld [vmem:[%s520] sm:$0xff]
        %v558 = vld [vmem:[%s520 + $0x8] sm:$0xff]
        %v559 = vld [vmem:[%s520 + $0x10] sm:$0xff]
        %v560 = vld [vmem:[%s520 + $0x18] sm:$0xff]
        %v561 = vld [vmem:[%s3] sm:$0xff]
        %v562 = vld [vmem:[%s3 + $0x8] sm:$0xff]
        %v563 = vld [vmem:[%s3 + $0x10] sm:$0xff]
        %v564 = vld [vmem:[%s3 + $0x18] sm:$0xff]
        %vm568 = vcmask 1046528
        %v569 = vrot.slane %v553, 1
        %v570 = vrot.slane %v554, 1
        %v571 = vsel %vm568, %v569, %v570
        %v572 = vrot.slane %v555, 1
        %v573 = vsel %vm568, %v570, %v572
        %v574 = vsel %vm507, %v571, 0
        %v576 = vsel %vm507, %v573, 0
        %v578 = vsel %vm507, %v572, 0
        %580 = vmatprep.subr.mxu0 0.0
        %581 = vmatpush1.msra.mxu0 %v563
        %582 = vmatprep.subr.mxu0 0.0
        %583 = vmatpush1.msra.mxu0 %v564
        %584 = vmatprep.subr.mxu0 0.0
        %585 = vmatpush1.msra.mxu0 0.0
        %586 = vmatprep.subr.mxu0 0.0
        %587 = vmatpush1.msra.mxu0 0.0
        %588 = vmatprep.subr.mxu0 0.0
        %589 = vmatpush1.msra.mxu0 0.0
        %590 = vmatprep.subr.mxu0 0.0
        %591 = vmatpush1.msra.mxu0 0.0
        %592 = vmatprep.subr.mxu0 0.0
        %593 = vmatpush1.msra.mxu0 0.0
        %594 = vmatprep.subr.mxu0 0.0
        %595 = vmatpush1.msra.mxu0 0.0
        %596 = vmatprep.subr.mxu0 0.0
        %597 = vmatpush1.msra.mxu0 0.0
        %598 = vmatprep.subr.mxu0 0.0
        %599 = vmatpush1.msra.mxu0 0.0
        %600 = vmatprep.subr.mxu0 0.0
        %601 = vmatpush1.msra.mxu0 0.0
        %602 = vmatprep.subr.mxu0 0.0
        %603 = vmatpush1.msra.mxu0 0.0
        %604 = vmatprep.subr.mxu0 0.0
        %605 = vmatpush1.msra.mxu0 0.0
        %606 = vmatprep.subr.mxu0 0.0
        %607 = vmatpush1.msra.mxu0 0.0
        %608 = vmatprep.subr.mxu0 0.0
        %609 = vmatpush1.msra.mxu0 0.0
        %610 = vmatprep.subr.mxu0 0.0
        %611 = vmatpush1.msra.mxu0 0.0
        %612 = vmatprep.subr.mxu0 0.0
        %613 = vmatpush1.msra.mxu0 0.0
        %614 = vmatprep.subr.mxu0 0.0
        %615 = vmatpush1.msra.mxu0 0.0
        %616 = vmatprep.subr.mxu0 0.0
        %617 = vmatpush1.msra.mxu0 0.0
        %618 = vmatprep.subr.mxu0 0.0
        %619 = vmatpush1.msra.mxu0 0.0
        %620 = vmatprep.subr.mxu0 0.0
        %621 = vmatpush1.msra.mxu0 0.0
        %622 = vmatprep.subr.mxu0 0.0
        %623 = vmatpush1.msra.mxu0 0.0
        %624 = vmatprep.subr.mxu0 0.0
        %625 = vmatpush1.msra.mxu0 0.0
        %626 = vmatprep.subr.mxu0 0.0
        %627 = vmatpush1.msra.mxu0 0.0
        %628 = vmatprep.subr.mxu0 0.0
        %629 = vmatpush1.msra.mxu0 0.0
        %630 = vmatprep.subr.mxu0 0.0
        %631 = vmatpush1.msra.mxu0 0.0
        %632 = vmatprep.subr.mxu0 0.0
        %633 = vmatpush1.msra.mxu0 0.0
        %634 = vmatprep.subr.mxu0 0.0
        %635 = vmatpush1.msra.mxu0 0.0
        %636 = vmatprep.subr.mxu0 0.0
        %637 = vmatpush1.msra.mxu0 0.0
        %638 = vmatprep.subr.mxu0 0.0
        %639 = vmatpush1.msra.mxu0 0.0
        %640 = vmatprep.subr.mxu0 0.0
        %641 = vmatpush1.msra.mxu0 0.0
        %642 = vmatprep.subr.mxu0 0.0
        %643 = vmatpush1.msra.mxu0 0.0
        %644 = vmatprep.mubr.f32.mxu0 0.0
        %645 = vmatmul.mubr.f32.gmra.mrb[0].mxu0 %v574
        %v646 = vpop.f32.mrb[0].mxu0
        %v647 = vadd.f32 0.0, %v646
        %v648 = vpop.f32.mrb[0].mxu0
        %649 = vmatprep.mubr.f32.mxu0 0.0
        %650 = vmatmul.mubr.f32.gmra.mrb[0].mxu0 %v576
        %v651 = vpop.f32.mrb[0].mxu0
        %v652 = vadd.f32 0.0, %v651
        %v653 = vpop.f32.mrb[0].mxu0
        %654 = vmatprep.mubr.f32.mxu0 0.0
        %655 = vmatmul.mubr.f32.gmra.mrb[0].mxu0 %v578
        %v656 = vpop.f32.mrb[0].mxu0
        %v657 = vadd.f32 0.0, %v656
        %v658 = vpop.f32.mrb[0].mxu0
        %659 = vdwg.mxu0
        %v660 = vsel %vm507, %v553, 0
        %v662 = vsel %vm507, %v554, 0
        %v664 = vsel %vm507, %v555, 0
        %666 = vmatprep.subr.mxu0 0.0
        %667 = vmatpush1.msra.mxu0 %v561
        %668 = vmatprep.subr.mxu0 0.0
        %669 = vmatpush1.msra.mxu0 %v562
        %670 = vmatprep.subr.mxu0 0.0
        %671 = vmatpush1.msra.mxu0 0.0
        %672 = vmatprep.subr.mxu0 0.0
        %673 = vmatpush1.msra.mxu0 0.0
        %674 = vmatprep.subr.mxu0 0.0
        %675 = vmatpush1.msra.mxu0 0.0
        %676 = vmatprep.subr.mxu0 0.0
        %677 = vmatpush1.msra.mxu0 0.0
        %678 = vmatprep.subr.mxu0 0.0
        %679 = vmatpush1.msra.mxu0 0.0
        %680 = vmatprep.subr.mxu0 0.0
        %681 = vmatpush1.msra.mxu0 0.0
        %682 = vmatprep.subr.mxu0 0.0
        %683 = vmatpush1.msra.mxu0 0.0
        %684 = vmatprep.subr.mxu0 0.0
        %685 = vmatpush1.msra.mxu0 0.0
        %686 = vmatprep.subr.mxu0 0.0
        %687 = vmatpush1.msra.mxu0 0.0
        %688 = vmatprep.subr.mxu0 0.0
        %689 = vmatpush1.msra.mxu0 0.0
        %690 = vmatprep.subr.mxu0 0.0
        %691 = vmatpush1.msra.mxu0 0.0
        %692 = vmatprep.subr.mxu0 0.0
        %693 = vmatpush1.msra.mxu0 0.0
        %694 = vmatprep.subr.mxu0 0.0
        %695 = vmatpush1.msra.mxu0 0.0
        %696 = vmatprep.subr.mxu0 0.0
        %697 = vmatpush1.msra.mxu0 0.0
        %698 = vmatprep.subr.mxu0 0.0
        %699 = vmatpush1.msra.mxu0 0.0
        %700 = vmatprep.subr.mxu0 0.0
        %701 = vmatpush1.msra.mxu0 0.0
        %702 = vmatprep.subr.mxu0 0.0
        %703 = vmatpush1.msra.mxu0 0.0
        %704 = vmatprep.subr.mxu0 0.0
        %705 = vmatpush1.msra.mxu0 0.0
        %706 = vmatprep.subr.mxu0 0.0
        %707 = vmatpush1.msra.mxu0 0.0
        %708 = vmatprep.subr.mxu0 0.0
        %709 = vmatpush1.msra.mxu0 0.0
        %710 = vmatprep.subr.mxu0 0.0
        %711 = vmatpush1.msra.mxu0 0.0
        %712 = vmatprep.subr.mxu0 0.0
        %713 = vmatpush1.msra.mxu0 0.0
        %714 = vmatprep.subr.mxu0 0.0
        %715 = vmatpush1.msra.mxu0 0.0
        %716 = vmatprep.subr.mxu0 0.0
        %717 = vmatpush1.msra.mxu0 0.0
        %718 = vmatprep.subr.mxu0 0.0
        %719 = vmatpush1.msra.mxu0 0.0
        %720 = vmatprep.subr.mxu0 0.0
        %721 = vmatpush1.msra.mxu0 0.0
        %722 = vmatprep.subr.mxu0 0.0
        %723 = vmatpush1.msra.mxu0 0.0
        %724 = vmatprep.subr.mxu0 0.0
        %725 = vmatpush1.msra.mxu0 0.0
        %726 = vmatprep.subr.mxu0 0.0
        %727 = vmatpush1.msra.mxu0 0.0
        %728 = vmatprep.subr.mxu0 0.0
        %729 = vmatpush1.msra.mxu0 0.0
        %730 = vmatprep.mubr.f32.mxu0 0.0
        %731 = vmatmul.mubr.f32.gmra.mrb[0].mxu0 %v660
        %v732 = vpop.f32.mrb[0].mxu0
        %v733 = vadd.f32 %v647, %v732
        %v734 = vpop.f32.mrb[0].mxu0
        %735 = vmatprep.mubr.f32.mxu0 0.0
        %736 = vmatmul.mubr.f32.gmra.mrb[0].mxu0 %v662
        %v737 = vpop.f32.mrb[0].mxu0
        %v738 = vadd.f32 %v652, %v737
        %v739 = vpop.f32.mrb[0].mxu0
        %740 = vmatprep.mubr.f32.mxu0 0.0
        %741 = vmatmul.mubr.f32.gmra.mrb[0].mxu0 %v664
        %v742 = vpop.f32.mrb[0].mxu0
        %v743 = vadd.f32 %v657, %v742
        %v744 = vpop.f32.mrb[0].mxu0
        %745 = vdwg.mxu0
        %s746 = scalar_lea.vmem %s3, 32
        %v747 = vld [vmem:[%s746] sm:$0xff]
        %v748 = vld [vmem:[%s746 + $0x8] sm:$0xff]
        %v749 = vld [vmem:[%s746 + $0x10] sm:$0xff]
        %v750 = vld [vmem:[%s746 + $0x18] sm:$0xff]
        %v752 = vsel %vm507, %v557, 0
        %v755 = vsel %vm507, %v558, 0
        %v758 = vsel %vm507, %v559, 0
        %760 = vmatprep.subr.mxu0 0.0
        %761 = vmatpush1.msra.mxu0 %v747
        %762 = vmatprep.subr.mxu0 0.0
        %763 = vmatpush1.msra.mxu0 %v748
        %764 = vmatprep.subr.mxu0 0.0
        %765 = vmatpush1.msra.mxu0 0.0
        %766 = vmatprep.subr.mxu0 0.0
        %767 = vmatpush1.msra.mxu0 0.0
        %768 = vmatprep.subr.mxu0 0.0
        %769 = vmatpush1.msra.mxu0 0.0
        %770 = vmatprep.subr.mxu0 0.0
        %771 = vmatpush1.msra.mxu0 0.0
        %772 = vmatprep.subr.mxu0 0.0
        %773 = vmatpush1.msra.mxu0 0.0
        %774 = vmatprep.subr.mxu0 0.0
        %775 = vmatpush1.msra.mxu0 0.0
        %776 = vmatprep.subr.mxu0 0.0
        %777 = vmatpush1.msra.mxu0 0.0
        %778 = vmatprep.subr.mxu0 0.0
        %779 = vmatpush1.msra.mxu0 0.0
        %780 = vmatprep.subr.mxu0 0.0
        %781 = vmatpush1.msra.mxu0 0.0
        %782 = vmatprep.subr.mxu0 0.0
        %783 = vmatpush1.msra.mxu0 0.0
        %784 = vmatprep.subr.mxu0 0.0
        %785 = vmatpush1.msra.mxu0 0.0
        %786 = vmatprep.subr.mxu0 0.0
        %787 = vmatpush1.msra.mxu0 0.0
        %788 = vmatprep.subr.mxu0 0.0
        %789 = vmatpush1.msra.mxu0 0.0
        %790 = vmatprep.subr.mxu0 0.0
        %791 = vmatpush1.msra.mxu0 0.0
        %792 = vmatprep.subr.mxu0 0.0
        %793 = vmatpush1.msra.mxu0 0.0
        %794 = vmatprep.subr.mxu0 0.0
        %795 = vmatpush1.msra.mxu0 0.0
        %796 = vmatprep.subr.mxu0 0.0
        %797 = vmatpush1.msra.mxu0 0.0
        %798 = vmatprep.subr.mxu0 0.0
        %799 = vmatpush1.msra.mxu0 0.0
        %800 = vmatprep.subr.mxu0 0.0
        %801 = vmatpush1.msra.mxu0 0.0
        %802 = vmatprep.subr.mxu0 0.0
        %803 = vmatpush1.msra.mxu0 0.0
        %804 = vmatprep.subr.mxu0 0.0
        %805 = vmatpush1.msra.mxu0 0.0
        %806 = vmatprep.subr.mxu0 0.0
        %807 = vmatpush1.msra.mxu0 0.0
        %808 = vmatprep.subr.mxu0 0.0
        %809 = vmatpush1.msra.mxu0 0.0
        %810 = vmatprep.subr.mxu0 0.0
        %811 = vmatpush1.msra.mxu0 0.0
        %812 = vmatprep.subr.mxu0 0.0
        %813 = vmatpush1.msra.mxu0 0.0
        %814 = vmatprep.subr.mxu0 0.0
        %815 = vmatpush1.msra.mxu0 0.0
        %816 = vmatprep.subr.mxu0 0.0
        %817 = vmatpush1.msra.mxu0 0.0
        %818 = vmatprep.subr.mxu0 0.0
        %819 = vmatpush1.msra.mxu0 0.0
        %820 = vmatprep.subr.mxu0 0.0
        %821 = vmatpush1.msra.mxu0 0.0
        %822 = vmatprep.subr.mxu0 0.0
        %823 = vmatpush1.msra.mxu0 0.0
        %824 = vmatprep.mubr.f32.mxu0 0.0
        %825 = vmatmul.mubr.f32.gmra.mrb[0].mxu0 %v752
        %v826 = vpop.f32.mrb[0].mxu0
        %v827 = vadd.f32 0.0, %v826
        %v828 = vpop.f32.mrb[0].mxu0
        %829 = vmatprep.mubr.f32.mxu0 0.0
        %830 = vmatmul.mubr.f32.gmra.mrb[0].mxu0 %v755
        %v831 = vpop.f32.mrb[0].mxu0
        %v832 = vadd.f32 0.0, %v831
        %v833 = vpop.f32.mrb[0].mxu0
        %834 = vmatprep.mubr.f32.mxu0 0.0
        %835 = vmatmul.mubr.f32.gmra.mrb[0].mxu0 %v758
        %v836 = vpop.f32.mrb[0].mxu0
        %v837 = vadd.f32 0.0, %v836
        %v838 = vpop.f32.mrb[0].mxu0
        %839 = vdwg.mxu0
        %v840 = vadd.f32 %v733, %v827
        %v841 = vadd.f32 %v738, %v832
        %v842 = vadd.f32 %v743, %v837
        %v843 = vrot.slane %v557, 1
        %v844 = vrot.slane %v558, 1
        %v845 = vsel %vm568, %v843, %v844
        %v846 = vrot.slane %v559, 1
        %v847 = vsel %vm568, %v844, %v846
        %v848 = vsel %vm507, %v845, 0
        %v850 = vsel %vm507, %v847, 0
        %v852 = vsel %vm507, %v846, 0
        %854 = vmatprep.subr.mxu0 0.0
        %855 = vmatpush1.msra.mxu0 %v749
        %856 = vmatprep.subr.mxu0 0.0
        %857 = vmatpush1.msra.mxu0 %v750
        %858 = vmatprep.subr.mxu0 0.0
        %859 = vmatpush1.msra.mxu0 0.0
        %860 = vmatprep.subr.mxu0 0.0
        %861 = vmatpush1.msra.mxu0 0.0
        %862 = vmatprep.subr.mxu0 0.0
        %863 = vmatpush1.msra.mxu0 0.0
        %864 = vmatprep.subr.mxu0 0.0
        %865 = vmatpush1.msra.mxu0 0.0
        %866 = vmatprep.subr.mxu0 0.0
        %867 = vmatpush1.msra.mxu0 0.0
        %868 = vmatprep.subr.mxu0 0.0
        %869 = vmatpush1.msra.mxu0 0.0
        %870 = vmatprep.subr.mxu0 0.0
        %871 = vmatpush1.msra.mxu0 0.0
        %872 = vmatprep.subr.mxu0 0.0
        %873 = vmatpush1.msra.mxu0 0.0
        %874 = vmatprep.subr.mxu0 0.0
        %875 = vmatpush1.msra.mxu0 0.0
        %876 = vmatprep.subr.mxu0 0.0
        %877 = vmatpush1.msra.mxu0 0.0
        %878 = vmatprep.subr.mxu0 0.0
        %879 = vmatpush1.msra.mxu0 0.0
        %880 = vmatprep.subr.mxu0 0.0
        %881 = vmatpush1.msra.mxu0 0.0
        %882 = vmatprep.subr.mxu0 0.0
        %883 = vmatpush1.msra.mxu0 0.0
        %884 = vmatprep.subr.mxu0 0.0
        %885 = vmatpush1.msra.mxu0 0.0
        %886 = vmatprep.subr.mxu0 0.0
        %887 = vmatpush1.msra.mxu0 0.0
        %888 = vmatprep.subr.mxu0 0.0
        %889 = vmatpush1.msra.mxu0 0.0
        %890 = vmatprep.subr.mxu0 0.0
        %891 = vmatpush1.msra.mxu0 0.0
        %892 = vmatprep.subr.mxu0 0.0
        %893 = vmatpush1.msra.mxu0 0.0
        %894 = vmatprep.subr.mxu0 0.0
        %895 = vmatpush1.msra.mxu0 0.0
        %896 = vmatprep.subr.mxu0 0.0
        %897 = vmatpush1.msra.mxu0 0.0
        %898 = vmatprep.subr.mxu0 0.0
        %899 = vmatpush1.msra.mxu0 0.0
        %900 = vmatprep.subr.mxu0 0.0
        %901 = vmatpush1.msra.mxu0 0.0
        %902 = vmatprep.subr.mxu0 0.0
        %903 = vmatpush1.msra.mxu0 0.0
        %904 = vmatprep.subr.mxu0 0.0
        %905 = vmatpush1.msra.mxu0 0.0
        %906 = vmatprep.subr.mxu0 0.0
        %907 = vmatpush1.msra.mxu0 0.0
        %908 = vmatprep.subr.mxu0 0.0
        %909 = vmatpush1.msra.mxu0 0.0
        %910 = vmatprep.subr.mxu0 0.0
        %911 = vmatpush1.msra.mxu0 0.0
        %912 = vmatprep.subr.mxu0 0.0
        %913 = vmatpush1.msra.mxu0 0.0
        %914 = vmatprep.subr.mxu0 0.0
        %915 = vmatpush1.msra.mxu0 0.0
        %916 = vmatprep.subr.mxu0 0.0
        %917 = vmatpush1.msra.mxu0 0.0
        %918 = vmatprep.mubr.f32.mxu0 0.0
        %919 = vmatmul.mubr.f32.gmra.mrb[0].mxu0 %v848
        %v920 = vpop.f32.mrb[0].mxu0
        %v921 = vadd.f32 0.0, %v920
        %v922 = vpop.f32.mrb[0].mxu0
        %923 = vmatprep.mubr.f32.mxu0 0.0
        %924 = vmatmul.mubr.f32.gmra.mrb[0].mxu0 %v850
        %v925 = vpop.f32.mrb[0].mxu0
        %v926 = vadd.f32 0.0, %v925
        %v927 = vpop.f32.mrb[0].mxu0
        %928 = vmatprep.mubr.f32.mxu0 0.0
        %929 = vmatmul.mubr.f32.gmra.mrb[0].mxu0 %v852
        %v930 = vpop.f32.mrb[0].mxu0
        %v931 = vadd.f32 0.0, %v930
        %v932 = vpop.f32.mrb[0].mxu0
        %933 = vdwg.mxu0
        %v934 = vadd.f32 %v840, %v921
        %v935 = vadd.f32 %v841, %v926
        %v936 = vadd.f32 %v842, %v931
        %s937 = scalar_lea.vmem %s3, 64
        %v938 = vld [vmem:[%s937] sm:$0xff]
        %v939 = vld [vmem:[%s937 + $0x8] sm:$0xff]
        %v940 = vld [vmem:[%s937 + $0x10] sm:$0xff]
        %v941 = vld [vmem:[%s937 + $0x18] sm:$0xff]
        %vm943 = vcmask 1042432
        %v944 = vrot.slane %v553, 5
        %v945 = vrot.slane %v554, 5
        %v946 = vsel %vm943, %v944, %v945
        %v947 = vrot.slane %v555, 5
        %v948 = vsel %vm943, %v945, %v947
        %v949 = vrot.slane %v556, 5
        %v950 = vsel %vm943, %v947, %v949
        %v951 = vsel %vm507, %v946, 0
        %v953 = vsel %vm507, %v948, 0
        %v955 = vsel %vm507, %v950, 0
        %957 = vmatprep.subr.mxu0 0.0
        %958 = vmatpush1.msra.mxu0 %v938
        %959 = vmatprep.subr.mxu0 0.0
        %960 = vmatpush1.msra.mxu0 %v939
        %961 = vmatprep.subr.mxu0 0.0
        %962 = vmatpush1.msra.mxu0 0.0
        %963 = vmatprep.subr.mxu0 0.0
        %964 = vmatpush1.msra.mxu0 0.0
        %965 = vmatprep.subr.mxu0 0.0
        %966 = vmatpush1.msra.mxu0 0.0
        %967 = vmatprep.subr.mxu0 0.0
        %968 = vmatpush1.msra.mxu0 0.0
        %969 = vmatprep.subr.mxu0 0.0
        %970 = vmatpush1.msra.mxu0 0.0
        %971 = vmatprep.subr.mxu0 0.0
        %972 = vmatpush1.msra.mxu0 0.0
        %973 = vmatprep.subr.mxu0 0.0
        %974 = vmatpush1.msra.mxu0 0.0
        %975 = vmatprep.subr.mxu0 0.0
        %976 = vmatpush1.msra.mxu0 0.0
        %977 = vmatprep.subr.mxu0 0.0
        %978 = vmatpush1.msra.mxu0 0.0
        %979 = vmatprep.subr.mxu0 0.0
        %980 = vmatpush1.msra.mxu0 0.0
        %981 = vmatprep.subr.mxu0 0.0
        %982 = vmatpush1.msra.mxu0 0.0
        %983 = vmatprep.subr.mxu0 0.0
        %984 = vmatpush1.msra.mxu0 0.0
        %985 = vmatprep.subr.mxu0 0.0
        %986 = vmatpush1.msra.mxu0 0.0
        %987 = vmatprep.subr.mxu0 0.0
        %988 = vmatpush1.msra.mxu0 0.0
        %989 = vmatprep.subr.mxu0 0.0
        %990 = vmatpush1.msra.mxu0 0.0
        %991 = vmatprep.subr.mxu0 0.0
        %992 = vmatpush1.msra.mxu0 0.0
        %993 = vmatprep.subr.mxu0 0.0
        %994 = vmatpush1.msra.mxu0 0.0
        %995 = vmatprep.subr.mxu0 0.0
        %996 = vmatpush1.msra.mxu0 0.0
        %997 = vmatprep.subr.mxu0 0.0
        %998 = vmatpush1.msra.mxu0 0.0
        %999 = vmatprep.subr.mxu0 0.0
        %1000 = vmatpush1.msra.mxu0 0.0
        %1001 = vmatprep.subr.mxu0 0.0
        %1002 = vmatpush1.msra.mxu0 0.0
        %1003 = vmatprep.subr.mxu0 0.0
        %1004 = vmatpush1.msra.mxu0 0.0
        %1005 = vmatprep.subr.mxu0 0.0
        %1006 = vmatpush1.msra.mxu0 0.0
        %1007 = vmatprep.subr.mxu0 0.0
        %1008 = vmatpush1.msra.mxu0 0.0
        %1009 = vmatprep.subr.mxu0 0.0
        %1010 = vmatpush1.msra.mxu0 0.0
        %1011 = vmatprep.subr.mxu0 0.0
        %1012 = vmatpush1.msra.mxu0 0.0
        %1013 = vmatprep.subr.mxu0 0.0
        %1014 = vmatpush1.msra.mxu0 0.0
        %1015 = vmatprep.subr.mxu0 0.0
        %1016 = vmatpush1.msra.mxu0 0.0
        %1017 = vmatprep.subr.mxu0 0.0
        %1018 = vmatpush1.msra.mxu0 0.0
        %1019 = vmatprep.subr.mxu0 0.0
        %1020 = vmatpush1.msra.mxu0 0.0
        %1021 = vmatprep.mubr.f32.mxu0 0.0
        %1022 = vmatmul.mubr.f32.gmra.mrb[0].mxu0 %v951
        %v1023 = vpop.f32.mrb[0].mxu0
        %v1024 = vadd.f32 0.0, %v1023
        %v1025 = vpop.f32.mrb[0].mxu0
        %1026 = vmatprep.mubr.f32.mxu0 0.0
        %1027 = vmatmul.mubr.f32.gmra.mrb[0].mxu0 %v953
        %v1028 = vpop.f32.mrb[0].mxu0
        %v1029 = vadd.f32 0.0, %v1028
        %v1030 = vpop.f32.mrb[0].mxu0
        %1031 = vmatprep.mubr.f32.mxu0 0.0
        %1032 = vmatmul.mubr.f32.gmra.mrb[0].mxu0 %v955
        %v1033 = vpop.f32.mrb[0].mxu0
        %v1034 = vadd.f32 0.0, %v1033
        %v1035 = vpop.f32.mrb[0].mxu0
        %1036 = vdwg.mxu0
        %v1037 = vadd.f32 %v934, %v1024
        %v1038 = vadd.f32 %v935, %v1029
        %v1039 = vadd.f32 %v936, %v1034
        %vm1040 = vcmask 1041408
        %v1041 = vrot.slane %v553, 6
        %v1042 = vrot.slane %v554, 6
        %v1043 = vsel %vm1040, %v1041, %v1042
        %v1044 = vrot.slane %v555, 6
        %v1045 = vsel %vm1040, %v1042, %v1044
        %v1046 = vrot.slane %v556, 6
        %v1047 = vsel %vm1040, %v1044, %v1046
        %v1048 = vsel %vm507, %v1043, 0
        %v1050 = vsel %vm507, %v1045, 0
        %v1052 = vsel %vm507, %v1047, 0
        %1054 = vmatprep.subr.mxu0 0.0
        %1055 = vmatpush1.msra.mxu0 %v940
        %1056 = vmatprep.subr.mxu0 0.0
        %1057 = vmatpush1.msra.mxu0 %v941
        %1058 = vmatprep.subr.mxu0 0.0
        %1059 = vmatpush1.msra.mxu0 0.0
        %1060 = vmatprep.subr.mxu0 0.0
        %1061 = vmatpush1.msra.mxu0 0.0
        %1062 = vmatprep.subr.mxu0 0.0
        %1063 = vmatpush1.msra.mxu0 0.0
        %1064 = vmatprep.subr.mxu0 0.0
        %1065 = vmatpush1.msra.mxu0 0.0
        %1066 = vmatprep.subr.mxu0 0.0
        %1067 = vmatpush1.msra.mxu0 0.0
        %1068 = vmatprep.subr.mxu0 0.0
        %1069 = vmatpush1.msra.mxu0 0.0
        %1070 = vmatprep.subr.mxu0 0.0
        %1071 = vmatpush1.msra.mxu0 0.0
        %1072 = vmatprep.subr.mxu0 0.0
        %1073 = vmatpush1.msra.mxu0 0.0
        %1074 = vmatprep.subr.mxu0 0.0
        %1075 = vmatpush1.msra.mxu0 0.0
        %1076 = vmatprep.subr.mxu0 0.0
        %1077 = vmatpush1.msra.mxu0 0.0
        %1078 = vmatprep.subr.mxu0 0.0
        %1079 = vmatpush1.msra.mxu0 0.0
        %1080 = vmatprep.subr.mxu0 0.0
        %1081 = vmatpush1.msra.mxu0 0.0
        %1082 = vmatprep.subr.mxu0 0.0
        %1083 = vmatpush1.msra.mxu0 0.0
        %1084 = vmatprep.subr.mxu0 0.0
        %1085 = vmatpush1.msra.mxu0 0.0
        %1086 = vmatprep.subr.mxu0 0.0
        %1087 = vmatpush1.msra.mxu0 0.0
        %1088 = vmatprep.subr.mxu0 0.0
        %1089 = vmatpush1.msra.mxu0 0.0
        %1090 = vmatprep.subr.mxu0 0.0
        %1091 = vmatpush1.msra.mxu0 0.0
        %1092 = vmatprep.subr.mxu0 0.0
        %1093 = vmatpush1.msra.mxu0 0.0
        %1094 = vmatprep.subr.mxu0 0.0
        %1095 = vmatpush1.msra.mxu0 0.0
        %1096 = vmatprep.subr.mxu0 0.0
        %1097 = vmatpush1.msra.mxu0 0.0
        %1098 = vmatprep.subr.mxu0 0.0
        %1099 = vmatpush1.msra.mxu0 0.0
        %1100 = vmatprep.subr.mxu0 0.0
        %1101 = vmatpush1.msra.mxu0 0.0
        %1102 = vmatprep.subr.mxu0 0.0
        %1103 = vmatpush1.msra.mxu0 0.0
        %1104 = vmatprep.subr.mxu0 0.0
        %1105 = vmatpush1.msra.mxu0 0.0
        %1106 = vmatprep.subr.mxu0 0.0
        %1107 = vmatpush1.msra.mxu0 0.0
        %1108 = vmatprep.subr.mxu0 0.0
        %1109 = vmatpush1.msra.mxu0 0.0
        %1110 = vmatprep.subr.mxu0 0.0
        %1111 = vmatpush1.msra.mxu0 0.0
        %1112 = vmatprep.subr.mxu0 0.0
        %1113 = vmatpush1.msra.mxu0 0.0
        %1114 = vmatprep.subr.mxu0 0.0
        %1115 = vmatpush1.msra.mxu0 0.0
        %1116 = vmatprep.subr.mxu0 0.0
        %1117 = vmatpush1.msra.mxu0 0.0
        %1118 = vmatprep.mubr.f32.mxu0 0.0
        %1119 = vmatmul.mubr.f32.gmra.mrb[0].mxu0 %v1048
        %v1120 = vpop.f32.mrb[0].mxu0
        %v1121 = vadd.f32 0.0, %v1120
        %v1122 = vpop.f32.mrb[0].mxu0
        %1123 = vmatprep.mubr.f32.mxu0 0.0
        %1124 = vmatmul.mubr.f32.gmra.mrb[0].mxu0 %v1050
        %v1125 = vpop.f32.mrb[0].mxu0
        %v1126 = vadd.f32 0.0, %v1125
        %v1127 = vpop.f32.mrb[0].mxu0
        %1128 = vmatprep.mubr.f32.mxu0 0.0
        %1129 = vmatmul.mubr.f32.gmra.mrb[0].mxu0 %v1052
        %v1130 = vpop.f32.mrb[0].mxu0
        %v1131 = vadd.f32 0.0, %v1130
        %v1132 = vpop.f32.mrb[0].mxu0
        %1133 = vdwg.mxu0
        %v1134 = vadd.f32 %v1037, %v1121
        %v1135 = vadd.f32 %v1038, %v1126
        %v1136 = vadd.f32 %v1039, %v1131
        %s1137 = scalar_lea.vmem %s3, 96
        %v1138 = vld [vmem:[%s1137] sm:$0xff]
        %v1139 = vld [vmem:[%s1137 + $0x8] sm:$0xff]
        %v1140 = vld [vmem:[%s1137 + $0x10] sm:$0xff]
        %v1141 = vld [vmem:[%s1137 + $0x18] sm:$0xff]
        %v1143 = vrot.slane %v557, 5
        %v1144 = vrot.slane %v558, 5
        %v1145 = vsel %vm943, %v1143, %v1144
        %v1146 = vrot.slane %v559, 5
        %v1147 = vsel %vm943, %v1144, %v1146
        %v1148 = vrot.slane %v560, 5
        %v1149 = vsel %vm943, %v1146, %v1148
        %v1150 = vsel %vm507, %v1145, 0
        %v1152 = vsel %vm507, %v1147, 0
        %v1154 = vsel %vm507, %v1149, 0
        %1156 = vmatprep.subr.mxu0 0.0
        %1157 = vmatpush1.msra.mxu0 %v1138
        %1158 = vmatprep.subr.mxu0 0.0
        %1159 = vmatpush1.msra.mxu0 %v1139
        %1160 = vmatprep.subr.mxu0 0.0
        %1161 = vmatpush1.msra.mxu0 0.0
        %1162 = vmatprep.subr.mxu0 0.0
        %1163 = vmatpush1.msra.mxu0 0.0
        %1164 = vmatprep.subr.mxu0 0.0
        %1165 = vmatpush1.msra.mxu0 0.0
        %1166 = vmatprep.subr.mxu0 0.0
        %1167 = vmatpush1.msra.mxu0 0.0
        %1168 = vmatprep.subr.mxu0 0.0
        %1169 = vmatpush1.msra.mxu0 0.0
        %1170 = vmatprep.subr.mxu0 0.0
        %1171 = vmatpush1.msra.mxu0 0.0
        %1172 = vmatprep.subr.mxu0 0.0
        %1173 = vmatpush1.msra.mxu0 0.0
        %1174 = vmatprep.subr.mxu0 0.0
        %1175 = vmatpush1.msra.mxu0 0.0
        %1176 = vmatprep.subr.mxu0 0.0
        %1177 = vmatpush1.msra.mxu0 0.0
        %1178 = vmatprep.subr.mxu0 0.0
        %1179 = vmatpush1.msra.mxu0 0.0
        %1180 = vmatprep.subr.mxu0 0.0
        %1181 = vmatpush1.msra.mxu0 0.0
        %1182 = vmatprep.subr.mxu0 0.0
        %1183 = vmatpush1.msra.mxu0 0.0
        %1184 = vmatprep.subr.mxu0 0.0
        %1185 = vmatpush1.msra.mxu0 0.0
        %1186 = vmatprep.subr.mxu0 0.0
        %1187 = vmatpush1.msra.mxu0 0.0
        %1188 = vmatprep.subr.mxu0 0.0
        %1189 = vmatpush1.msra.mxu0 0.0
        %1190 = vmatprep.subr.mxu0 0.0
        %1191 = vmatpush1.msra.mxu0 0.0
        %1192 = vmatprep.subr.mxu0 0.0
        %1193 = vmatpush1.msra.mxu0 0.0
        %1194 = vmatprep.subr.mxu0 0.0
        %1195 = vmatpush1.msra.mxu0 0.0
        %1196 = vmatprep.subr.mxu0 0.0
        %1197 = vmatpush1.msra.mxu0 0.0
        %1198 = vmatprep.subr.mxu0 0.0
        %1199 = vmatpush1.msra.mxu0 0.0
        %1200 = vmatprep.subr.mxu0 0.0
        %1201 = vmatpush1.msra.mxu0 0.0
        %1202 = vmatprep.subr.mxu0 0.0
        %1203 = vmatpush1.msra.mxu0 0.0
        %1204 = vmatprep.subr.mxu0 0.0
        %1205 = vmatpush1.msra.mxu0 0.0
        %1206 = vmatprep.subr.mxu0 0.0
        %1207 = vmatpush1.msra.mxu0 0.0
        %1208 = vmatprep.subr.mxu0 0.0
        %1209 = vmatpush1.msra.mxu0 0.0
        %1210 = vmatprep.subr.mxu0 0.0
        %1211 = vmatpush1.msra.mxu0 0.0
        %1212 = vmatprep.subr.mxu0 0.0
        %1213 = vmatpush1.msra.mxu0 0.0
        %1214 = vmatprep.subr.mxu0 0.0
        %1215 = vmatpush1.msra.mxu0 0.0
        %1216 = vmatprep.subr.mxu0 0.0
        %1217 = vmatpush1.msra.mxu0 0.0
        %1218 = vmatprep.subr.mxu0 0.0
        %1219 = vmatpush1.msra.mxu0 0.0
        %1220 = vmatprep.mubr.f32.mxu0 0.0
        %1221 = vmatmul.mubr.f32.gmra.mrb[0].mxu0 %v1150
        %v1222 = vpop.f32.mrb[0].mxu0
        %v1223 = vadd.f32 0.0, %v1222
        %v1224 = vpop.f32.mrb[0].mxu0
        %1225 = vmatprep.mubr.f32.mxu0 0.0
        %1226 = vmatmul.mubr.f32.gmra.mrb[0].mxu0 %v1152
        %v1227 = vpop.f32.mrb[0].mxu0
        %v1228 = vadd.f32 0.0, %v1227
        %v1229 = vpop.f32.mrb[0].mxu0
        %1230 = vmatprep.mubr.f32.mxu0 0.0
        %1231 = vmatmul.mubr.f32.gmra.mrb[0].mxu0 %v1154
        %v1232 = vpop.f32.mrb[0].mxu0
        %v1233 = vadd.f32 0.0, %v1232
        %v1234 = vpop.f32.mrb[0].mxu0
        %1235 = vdwg.mxu0
        %v1236 = vadd.f32 %v1134, %v1223
        %v1237 = vadd.f32 %v1135, %v1228
        %v1238 = vadd.f32 %v1136, %v1233
        %v1239 = vrot.slane %v557, 6
        %v1240 = vrot.slane %v558, 6
        %v1241 = vsel %vm1040, %v1239, %v1240
        %v1242 = vrot.slane %v559, 6
        %v1243 = vsel %vm1040, %v1240, %v1242
        %v1244 = vrot.slane %v560, 6
        %v1245 = vsel %vm1040, %v1242, %v1244
        %v1246 = vsel %vm507, %v1241, 0
        %v1248 = vsel %vm507, %v1243, 0
        %v1250 = vsel %vm507, %v1245, 0
        %1252 = vmatprep.subr.mxu0 0.0
        %1253 = vmatpush1.msra.mxu0 %v1140
        %1254 = vmatprep.subr.mxu0 0.0
        %1255 = vmatpush1.msra.mxu0 %v1141
        %1256 = vmatprep.subr.mxu0 0.0
        %1257 = vmatpush1.msra.mxu0 0.0
        %1258 = vmatprep.subr.mxu0 0.0
        %1259 = vmatpush1.msra.mxu0 0.0
        %1260 = vmatprep.subr.mxu0 0.0
        %1261 = vmatpush1.msra.mxu0 0.0
        %1262 = vmatprep.subr.mxu0 0.0
        %1263 = vmatpush1.msra.mxu0 0.0
        %1264 = vmatprep.subr.mxu0 0.0
        %1265 = vmatpush1.msra.mxu0 0.0
        %1266 = vmatprep.subr.mxu0 0.0
        %1267 = vmatpush1.msra.mxu0 0.0
        %1268 = vmatprep.subr.mxu0 0.0
        %1269 = vmatpush1.msra.mxu0 0.0
        %1270 = vmatprep.subr.mxu0 0.0
        %1271 = vmatpush1.msra.mxu0 0.0
        %1272 = vmatprep.subr.mxu0 0.0
        %1273 = vmatpush1.msra.mxu0 0.0
        %1274 = vmatprep.subr.mxu0 0.0
        %1275 = vmatpush1.msra.mxu0 0.0
        %1276 = vmatprep.subr.mxu0 0.0
        %1277 = vmatpush1.msra.mxu0 0.0
        %1278 = vmatprep.subr.mxu0 0.0
        %1279 = vmatpush1.msra.mxu0 0.0
        %1280 = vmatprep.subr.mxu0 0.0
        %1281 = vmatpush1.msra.mxu0 0.0
        %1282 = vmatprep.subr.mxu0 0.0
        %1283 = vmatpush1.msra.mxu0 0.0
        %1284 = vmatprep.subr.mxu0 0.0
        %1285 = vmatpush1.msra.mxu0 0.0
        %1286 = vmatprep.subr.mxu0 0.0
        %1287 = vmatpush1.msra.mxu0 0.0
        %1288 = vmatprep.subr.mxu0 0.0
        %1289 = vmatpush1.msra.mxu0 0.0
        %1290 = vmatprep.subr.mxu0 0.0
        %1291 = vmatpush1.msra.mxu0 0.0
        %1292 = vmatprep.subr.mxu0 0.0
        %1293 = vmatpush1.msra.mxu0 0.0
        %1294 = vmatprep.subr.mxu0 0.0
        %1295 = vmatpush1.msra.mxu0 0.0
        %1296 = vmatprep.subr.mxu0 0.0
        %1297 = vmatpush1.msra.mxu0 0.0
        %1298 = vmatprep.subr.mxu0 0.0
        %1299 = vmatpush1.msra.mxu0 0.0
        %1300 = vmatprep.subr.mxu0 0.0
        %1301 = vmatpush1.msra.mxu0 0.0
        %1302 = vmatprep.subr.mxu0 0.0
        %1303 = vmatpush1.msra.mxu0 0.0
        %1304 = vmatprep.subr.mxu0 0.0
        %1305 = vmatpush1.msra.mxu0 0.0
        %1306 = vmatprep.subr.mxu0 0.0
        %1307 = vmatpush1.msra.mxu0 0.0
        %1308 = vmatprep.subr.mxu0 0.0
        %1309 = vmatpush1.msra.mxu0 0.0
        %1310 = vmatprep.subr.mxu0 0.0
        %1311 = vmatpush1.msra.mxu0 0.0
        %1312 = vmatprep.subr.mxu0 0.0
        %1313 = vmatpush1.msra.mxu0 0.0
        %1314 = vmatprep.subr.mxu0 0.0
        %1315 = vmatpush1.msra.mxu0 0.0
        %1316 = vmatprep.mubr.f32.mxu0 0.0
        %1317 = vmatmul.mubr.f32.gmra.mrb[0].mxu0 %v1246
        %v1318 = vpop.f32.mrb[0].mxu0
        %v1319 = vadd.f32 0.0, %v1318
        %v1320 = vpop.f32.mrb[0].mxu0
        %1321 = vmatprep.mubr.f32.mxu0 0.0
        %1322 = vmatmul.mubr.f32.gmra.mrb[0].mxu0 %v1248
        %v1323 = vpop.f32.mrb[0].mxu0
        %v1324 = vadd.f32 0.0, %v1323
        %v1325 = vpop.f32.mrb[0].mxu0
        %1326 = vmatprep.mubr.f32.mxu0 0.0
        %1327 = vmatmul.mubr.f32.gmra.mrb[0].mxu0 %v1250
        %v1328 = vpop.f32.mrb[0].mxu0
        %v1329 = vadd.f32 0.0, %v1328
        %v1330 = vpop.f32.mrb[0].mxu0
        %1331 = vdwg.mxu0
        %v1332 = vadd.f32 %v1236, %v1319
        %v1333 = vadd.f32 %v1237, %v1324
        %v1334 = vadd.f32 %v1238, %v1329
        %v1335 = vld [vmem:[%s4] sm:$0x1]
        %v1337 = vlaneseq
        %v1338 = vshrl.u32 %v1337, 7
        %v1339 = vsub.s32 0, %v1338
        %v1340 = vrot.slane %v1335, %v1339
        %v1342 = vadd.f32 %v1332, %v1340
        %v1343 = vadd.f32 %v1333, %v1340
        %v1344 = vadd.f32 %v1334, %v1340
        %vm1345 = vcmp.ge.f32.partialorder %v1342, 0.0
        %vm1346 = vcmp.ge.f32.partialorder %v1343, 0.0
        %vm1347 = vcmp.ge.f32.partialorder %v1344, 0.0
        %v1348 = vmul.f32 %v1342, 0.1
        %v1349 = vmul.f32 %v1343, 0.1
        %v1350 = vmul.f32 %v1344, 0.1
        %v1351 = vsel %vm1345, %v1342, %v1348
        %v1352 = vsel %vm1346, %v1343, %v1349
        %v1353 = vsel %vm1347, %v1344, %v1350
        %v1354 = vld [vmem:[%s5] sm:$0xff]
        %v1355 = vld [vmem:[%s5 + $0x8] sm:$0xff]
        %s1356 = scalar_lea.vmem %s5, 16
        %v1357 = vld [vmem:[%s1356] sm:$0xff]
        %v1358 = vld [vmem:[%s1356 + $0x8] sm:$0xff]
        %v1360 = vrot.slane %v1351, 1
        %v1361 = vsel %vm507, %v1360, 0
        %1363 = vmatprep.subr.mxu0 0.0
        %1364 = vmatpush1.msra.mxu0 %v1357
        %1365 = vmatprep.subr.mxu0 0.0
        %1366 = vmatpush1.msra.mxu0 %v1358
        %1367 = vmatprep.subr.mxu0 0.0
        %1368 = vmatpush1.msra.mxu0 0.0
        %1369 = vmatprep.subr.mxu0 0.0
        %1370 = vmatpush1.msra.mxu0 0.0
        %1371 = vmatprep.subr.mxu0 0.0
        %1372 = vmatpush1.msra.mxu0 0.0
        %1373 = vmatprep.subr.mxu0 0.0
        %1374 = vmatpush1.msra.mxu0 0.0
        %1375 = vmatprep.subr.mxu0 0.0
        %1376 = vmatpush1.msra.mxu0 0.0
        %1377 = vmatprep.subr.mxu0 0.0
        %1378 = vmatpush1.msra.mxu0 0.0
        %1379 = vmatprep.subr.mxu0 0.0
        %1380 = vmatpush1.msra.mxu0 0.0
        %1381 = vmatprep.subr.mxu0 0.0
        %1382 = vmatpush1.msra.mxu0 0.0
        %1383 = vmatprep.subr.mxu0 0.0
        %1384 = vmatpush1.msra.mxu0 0.0
        %1385 = vmatprep.subr.mxu0 0.0
        %1386 = vmatpush1.msra.mxu0 0.0
        %1387 = vmatprep.subr.mxu0 0.0
        %1388 = vmatpush1.msra.mxu0 0.0
        %1389 = vmatprep.subr.mxu0 0.0
        %1390 = vmatpush1.msra.mxu0 0.0
        %1391 = vmatprep.subr.mxu0 0.0
        %1392 = vmatpush1.msra.mxu0 0.0
        %1393 = vmatprep.subr.mxu0 0.0
        %1394 = vmatpush1.msra.mxu0 0.0
        %1395 = vmatprep.subr.mxu0 0.0
        %1396 = vmatpush1.msra.mxu0 0.0
        %1397 = vmatprep.subr.mxu0 0.0
        %1398 = vmatpush1.msra.mxu0 0.0
        %1399 = vmatprep.subr.mxu0 0.0
        %1400 = vmatpush1.msra.mxu0 0.0
        %1401 = vmatprep.subr.mxu0 0.0
        %1402 = vmatpush1.msra.mxu0 0.0
        %1403 = vmatprep.subr.mxu0 0.0
        %1404 = vmatpush1.msra.mxu0 0.0
        %1405 = vmatprep.subr.mxu0 0.0
        %1406 = vmatpush1.msra.mxu0 0.0
        %1407 = vmatprep.subr.mxu0 0.0
        %1408 = vmatpush1.msra.mxu0 0.0
        %1409 = vmatprep.subr.mxu0 0.0
        %1410 = vmatpush1.msra.mxu0 0.0
        %1411 = vmatprep.subr.mxu0 0.0
        %1412 = vmatpush1.msra.mxu0 0.0
        %1413 = vmatprep.subr.mxu0 0.0
        %1414 = vmatpush1.msra.mxu0 0.0
        %1415 = vmatprep.subr.mxu0 0.0
        %1416 = vmatpush1.msra.mxu0 0.0
        %1417 = vmatprep.subr.mxu0 0.0
        %1418 = vmatpush1.msra.mxu0 0.0
        %1419 = vmatprep.subr.mxu0 0.0
        %1420 = vmatpush1.msra.mxu0 0.0
        %1421 = vmatprep.subr.mxu0 0.0
        %1422 = vmatpush1.msra.mxu0 0.0
        %1423 = vmatprep.subr.mxu0 0.0
        %1424 = vmatpush1.msra.mxu0 0.0
        %1425 = vmatprep.subr.mxu0 0.0
        %1426 = vmatpush1.msra.mxu0 0.0
        %1427 = vmatprep.mubr.f32.mxu0 0.0
        %1428 = vmatmul.mubr.f32.gmra.mrb[0].mxu0 %v1361
        %v1429 = vpop.f32.mrb[0].mxu0
        %v1430 = vadd.f32 0.0, %v1429
        %v1431 = vpop.f32.mrb[0].mxu0
        %1432 = vdwg.mxu0
        %v1433 = vsel %vm507, %v1351, 0
        %1435 = vmatprep.subr.mxu0 0.0
        %1436 = vmatpush1.msra.mxu0 %v1354
        %1437 = vmatprep.subr.mxu0 0.0
        %1438 = vmatpush1.msra.mxu0 %v1355
        %1439 = vmatprep.subr.mxu0 0.0
        %1440 = vmatpush1.msra.mxu0 0.0
        %1441 = vmatprep.subr.mxu0 0.0
        %1442 = vmatpush1.msra.mxu0 0.0
        %1443 = vmatprep.subr.mxu0 0.0
        %1444 = vmatpush1.msra.mxu0 0.0
        %1445 = vmatprep.subr.mxu0 0.0
        %1446 = vmatpush1.msra.mxu0 0.0
        %1447 = vmatprep.subr.mxu0 0.0
        %1448 = vmatpush1.msra.mxu0 0.0
        %1449 = vmatprep.subr.mxu0 0.0
        %1450 = vmatpush1.msra.mxu0 0.0
        %1451 = vmatprep.subr.mxu0 0.0
        %1452 = vmatpush1.msra.mxu0 0.0
        %1453 = vmatprep.subr.mxu0 0.0
        %1454 = vmatpush1.msra.mxu0 0.0
        %1455 = vmatprep.subr.mxu0 0.0
        %1456 = vmatpush1.msra.mxu0 0.0
        %1457 = vmatprep.subr.mxu0 0.0
        %1458 = vmatpush1.msra.mxu0 0.0
        %1459 = vmatprep.subr.mxu0 0.0
        %1460 = vmatpush1.msra.mxu0 0.0
        %1461 = vmatprep.subr.mxu0 0.0
        %1462 = vmatpush1.msra.mxu0 0.0
        %1463 = vmatprep.subr.mxu0 0.0
        %1464 = vmatpush1.msra.mxu0 0.0
        %1465 = vmatprep.subr.mxu0 0.0
        %1466 = vmatpush1.msra.mxu0 0.0
        %1467 = vmatprep.subr.mxu0 0.0
        %1468 = vmatpush1.msra.mxu0 0.0
        %1469 = vmatprep.subr.mxu0 0.0
        %1470 = vmatpush1.msra.mxu0 0.0
        %1471 = vmatprep.subr.mxu0 0.0
        %1472 = vmatpush1.msra.mxu0 0.0
        %1473 = vmatprep.subr.mxu0 0.0
        %1474 = vmatpush1.msra.mxu0 0.0
        %1475 = vmatprep.subr.mxu0 0.0
        %1476 = vmatpush1.msra.mxu0 0.0
        %1477 = vmatprep.subr.mxu0 0.0
        %1478 = vmatpush1.msra.mxu0 0.0
        %1479 = vmatprep.subr.mxu0 0.0
        %1480 = vmatpush1.msra.mxu0 0.0
        %1481 = vmatprep.subr.mxu0 0.0
        %1482 = vmatpush1.msra.mxu0 0.0
        %1483 = vmatprep.subr.mxu0 0.0
        %1484 = vmatpush1.msra.mxu0 0.0
        %1485 = vmatprep.subr.mxu0 0.0
        %1486 = vmatpush1.msra.mxu0 0.0
        %1487 = vmatprep.subr.mxu0 0.0
        %1488 = vmatpush1.msra.mxu0 0.0
        %1489 = vmatprep.subr.mxu0 0.0
        %1490 = vmatpush1.msra.mxu0 0.0
        %1491 = vmatprep.subr.mxu0 0.0
        %1492 = vmatpush1.msra.mxu0 0.0
        %1493 = vmatprep.subr.mxu0 0.0
        %1494 = vmatpush1.msra.mxu0 0.0
        %1495 = vmatprep.subr.mxu0 0.0
        %1496 = vmatpush1.msra.mxu0 0.0
        %1497 = vmatprep.subr.mxu0 0.0
        %1498 = vmatpush1.msra.mxu0 0.0
        %1499 = vmatprep.mubr.f32.mxu0 0.0
        %1500 = vmatmul.mubr.f32.gmra.mrb[0].mxu0 %v1433
        %v1501 = vpop.f32.mrb[0].mxu0
        %v1502 = vadd.f32 %v1430, %v1501
        %v1503 = vpop.f32.mrb[0].mxu0
        %1504 = vdwg.mxu0
        %s1505 = scalar_lea.vmem %s5, 32
        %v1506 = vld [vmem:[%s1505] sm:$0xff]
        %v1507 = vld [vmem:[%s1505 + $0x8] sm:$0xff]
        %v1508 = vrot.slane %v1351, 2
        %v1509 = vsel %vm507, %v1508, 0
        %1511 = vmatprep.subr.mxu0 0.0
        %1512 = vmatpush1.msra.mxu0 %v1506
        %1513 = vmatprep.subr.mxu0 0.0
        %1514 = vmatpush1.msra.mxu0 %v1507
        %1515 = vmatprep.subr.mxu0 0.0
        %1516 = vmatpush1.msra.mxu0 0.0
        %1517 = vmatprep.subr.mxu0 0.0
        %1518 = vmatpush1.msra.mxu0 0.0
        %1519 = vmatprep.subr.mxu0 0.0
        %1520 = vmatpush1.msra.mxu0 0.0
        %1521 = vmatprep.subr.mxu0 0.0
        %1522 = vmatpush1.msra.mxu0 0.0
        %1523 = vmatprep.subr.mxu0 0.0
        %1524 = vmatpush1.msra.mxu0 0.0
        %1525 = vmatprep.subr.mxu0 0.0
        %1526 = vmatpush1.msra.mxu0 0.0
        %1527 = vmatprep.subr.mxu0 0.0
        %1528 = vmatpush1.msra.mxu0 0.0
        %1529 = vmatprep.subr.mxu0 0.0
        %1530 = vmatpush1.msra.mxu0 0.0
        %1531 = vmatprep.subr.mxu0 0.0
        %1532 = vmatpush1.msra.mxu0 0.0
        %1533 = vmatprep.subr.mxu0 0.0
        %1534 = vmatpush1.msra.mxu0 0.0
        %1535 = vmatprep.subr.mxu0 0.0
        %1536 = vmatpush1.msra.mxu0 0.0
        %1537 = vmatprep.subr.mxu0 0.0
        %1538 = vmatpush1.msra.mxu0 0.0
        %1539 = vmatprep.subr.mxu0 0.0
        %1540 = vmatpush1.msra.mxu0 0.0
        %1541 = vmatprep.subr.mxu0 0.0
        %1542 = vmatpush1.msra.mxu0 0.0
        %1543 = vmatprep.subr.mxu0 0.0
        %1544 = vmatpush1.msra.mxu0 0.0
        %1545 = vmatprep.subr.mxu0 0.0
        %1546 = vmatpush1.msra.mxu0 0.0
        %1547 = vmatprep.subr.mxu0 0.0
        %1548 = vmatpush1.msra.mxu0 0.0
        %1549 = vmatprep.subr.mxu0 0.0
        %1550 = vmatpush1.msra.mxu0 0.0
        %1551 = vmatprep.subr.mxu0 0.0
        %1552 = vmatpush1.msra.mxu0 0.0
        %1553 = vmatprep.subr.mxu0 0.0
        %1554 = vmatpush1.msra.mxu0 0.0
        %1555 = vmatprep.subr.mxu0 0.0
        %1556 = vmatpush1.msra.mxu0 0.0
        %1557 = vmatprep.subr.mxu0 0.0
        %1558 = vmatpush1.msra.mxu0 0.0
        %1559 = vmatprep.subr.mxu0 0.0
        %1560 = vmatpush1.msra.mxu0 0.0
        %1561 = vmatprep.subr.mxu0 0.0
        %1562 = vmatpush1.msra.mxu0 0.0
        %1563 = vmatprep.subr.mxu0 0.0
        %1564 = vmatpush1.msra.mxu0 0.0
        %1565 = vmatprep.subr.mxu0 0.0
        %1566 = vmatpush1.msra.mxu0 0.0
        %1567 = vmatprep.subr.mxu0 0.0
        %1568 = vmatpush1.msra.mxu0 0.0
        %1569 = vmatprep.subr.mxu0 0.0
        %1570 = vmatpush1.msra.mxu0 0.0
        %1571 = vmatprep.subr.mxu0 0.0
        %1572 = vmatpush1.msra.mxu0 0.0
        %1573 = vmatprep.subr.mxu0 0.0
        %1574 = vmatpush1.msra.mxu0 0.0
        %1575 = vmatprep.mubr.f32.mxu0 0.0
        %1576 = vmatmul.mubr.f32.gmra.mrb[0].mxu0 %v1509
        %v1577 = vpop.f32.mrb[0].mxu0
        %v1578 = vadd.f32 0.0, %v1577
        %v1579 = vpop.f32.mrb[0].mxu0
        %1580 = vdwg.mxu0
        %v1581 = vadd.f32 %v1502, %v1578
        %s1582 = scalar_lea.vmem %s5, 48
        %v1583 = vld [vmem:[%s1582] sm:$0xff]
        %v1584 = vld [vmem:[%s1582 + $0x8] sm:$0xff]
        %v1585 = vrot.slane %v1351, 3
        %v1586 = vsel %vm507, %v1585, 0
        %1588 = vmatprep.subr.mxu0 0.0
        %1589 = vmatpush1.msra.mxu0 %v1583
        %1590 = vmatprep.subr.mxu0 0.0
        %1591 = vmatpush1.msra.mxu0 %v1584
        %1592 = vmatprep.subr.mxu0 0.0
        %1593 = vmatpush1.msra.mxu0 0.0
        %1594 = vmatprep.subr.mxu0 0.0
        %1595 = vmatpush1.msra.mxu0 0.0
        %1596 = vmatprep.subr.mxu0 0.0
        %1597 = vmatpush1.msra.mxu0 0.0
        %1598 = vmatprep.subr.mxu0 0.0
        %1599 = vmatpush1.msra.mxu0 0.0
        %1600 = vmatprep.subr.mxu0 0.0
        %1601 = vmatpush1.msra.mxu0 0.0
        %1602 = vmatprep.subr.mxu0 0.0
        %1603 = vmatpush1.msra.mxu0 0.0
        %1604 = vmatprep.subr.mxu0 0.0
        %1605 = vmatpush1.msra.mxu0 0.0
        %1606 = vmatprep.subr.mxu0 0.0
        %1607 = vmatpush1.msra.mxu0 0.0
        %1608 = vmatprep.subr.mxu0 0.0
        %1609 = vmatpush1.msra.mxu0 0.0
        %1610 = vmatprep.subr.mxu0 0.0
        %1611 = vmatpush1.msra.mxu0 0.0
        %1612 = vmatprep.subr.mxu0 0.0
        %1613 = vmatpush1.msra.mxu0 0.0
        %1614 = vmatprep.subr.mxu0 0.0
        %1615 = vmatpush1.msra.mxu0 0.0
        %1616 = vmatprep.subr.mxu0 0.0
        %1617 = vmatpush1.msra.mxu0 0.0
        %1618 = vmatprep.subr.mxu0 0.0
        %1619 = vmatpush1.msra.mxu0 0.0
        %1620 = vmatprep.subr.mxu0 0.0
        %1621 = vmatpush1.msra.mxu0 0.0
        %1622 = vmatprep.subr.mxu0 0.0
        %1623 = vmatpush1.msra.mxu0 0.0
        %1624 = vmatprep.subr.mxu0 0.0
        %1625 = vmatpush1.msra.mxu0 0.0
        %1626 = vmatprep.subr.mxu0 0.0
        %1627 = vmatpush1.msra.mxu0 0.0
        %1628 = vmatprep.subr.mxu0 0.0
        %1629 = vmatpush1.msra.mxu0 0.0
        %1630 = vmatprep.subr.mxu0 0.0
        %1631 = vmatpush1.msra.mxu0 0.0
        %1632 = vmatprep.subr.mxu0 0.0
        %1633 = vmatpush1.msra.mxu0 0.0
        %1634 = vmatprep.subr.mxu0 0.0
        %1635 = vmatpush1.msra.mxu0 0.0
        %1636 = vmatprep.subr.mxu0 0.0
        %1637 = vmatpush1.msra.mxu0 0.0
        %1638 = vmatprep.subr.mxu0 0.0
        %1639 = vmatpush1.msra.mxu0 0.0
        %1640 = vmatprep.subr.mxu0 0.0
        %1641 = vmatpush1.msra.mxu0 0.0
        %1642 = vmatprep.subr.mxu0 0.0
        %1643 = vmatpush1.msra.mxu0 0.0
        %1644 = vmatprep.subr.mxu0 0.0
        %1645 = vmatpush1.msra.mxu0 0.0
        %1646 = vmatprep.subr.mxu0 0.0
        %1647 = vmatpush1.msra.mxu0 0.0
        %1648 = vmatprep.subr.mxu0 0.0
        %1649 = vmatpush1.msra.mxu0 0.0
        %1650 = vmatprep.subr.mxu0 0.0
        %1651 = vmatpush1.msra.mxu0 0.0
        %1652 = vmatprep.mubr.f32.mxu0 0.0
        %1653 = vmatmul.mubr.f32.gmra.mrb[0].mxu0 %v1586
        %v1654 = vpop.f32.mrb[0].mxu0
        %v1655 = vadd.f32 0.0, %v1654
        %v1656 = vpop.f32.mrb[0].mxu0
        %1657 = vdwg.mxu0
        %v1658 = vadd.f32 %v1581, %v1655
        %s1659 = scalar_lea.vmem %s5, 64
        %v1660 = vld [vmem:[%s1659] sm:$0xff]
        %v1661 = vld [vmem:[%s1659 + $0x8] sm:$0xff]
        %v1662 = vrot.slane %v1351, 5
        %v1663 = vsel %vm507, %v1662, 0
        %1665 = vmatprep.subr.mxu0 0.0
        %1666 = vmatpush1.msra.mxu0 %v1660
        %1667 = vmatprep.subr.mxu0 0.0
        %1668 = vmatpush1.msra.mxu0 %v1661
        %1669 = vmatprep.subr.mxu0 0.0
        %1670 = vmatpush1.msra.mxu0 0.0
        %1671 = vmatprep.subr.mxu0 0.0
        %1672 = vmatpush1.msra.mxu0 0.0
        %1673 = vmatprep.subr.mxu0 0.0
        %1674 = vmatpush1.msra.mxu0 0.0
        %1675 = vmatprep.subr.mxu0 0.0
        %1676 = vmatpush1.msra.mxu0 0.0
        %1677 = vmatprep.subr.mxu0 0.0
        %1678 = vmatpush1.msra.mxu0 0.0
        %1679 = vmatprep.subr.mxu0 0.0
        %1680 = vmatpush1.msra.mxu0 0.0
        %1681 = vmatprep.subr.mxu0 0.0
        %1682 = vmatpush1.msra.mxu0 0.0
        %1683 = vmatprep.subr.mxu0 0.0
        %1684 = vmatpush1.msra.mxu0 0.0
        %1685 = vmatprep.subr.mxu0 0.0
        %1686 = vmatpush1.msra.mxu0 0.0
        %1687 = vmatprep.subr.mxu0 0.0
        %1688 = vmatpush1.msra.mxu0 0.0
        %1689 = vmatprep.subr.mxu0 0.0
        %1690 = vmatpush1.msra.mxu0 0.0
        %1691 = vmatprep.subr.mxu0 0.0
        %1692 = vmatpush1.msra.mxu0 0.0
        %1693 = vmatprep.subr.mxu0 0.0
        %1694 = vmatpush1.msra.mxu0 0.0
        %1695 = vmatprep.subr.mxu0 0.0
        %1696 = vmatpush1.msra.mxu0 0.0
        %1697 = vmatprep.subr.mxu0 0.0
        %1698 = vmatpush1.msra.mxu0 0.0
        %1699 = vmatprep.subr.mxu0 0.0
        %1700 = vmatpush1.msra.mxu0 0.0
        %1701 = vmatprep.subr.mxu0 0.0
        %1702 = vmatpush1.msra.mxu0 0.0
        %1703 = vmatprep.subr.mxu0 0.0
        %1704 = vmatpush1.msra.mxu0 0.0
        %1705 = vmatprep.subr.mxu0 0.0
        %1706 = vmatpush1.msra.mxu0 0.0
        %1707 = vmatprep.subr.mxu0 0.0
        %1708 = vmatpush1.msra.mxu0 0.0
        %1709 = vmatprep.subr.mxu0 0.0
        %1710 = vmatpush1.msra.mxu0 0.0
        %1711 = vmatprep.subr.mxu0 0.0
        %1712 = vmatpush1.msra.mxu0 0.0
        %1713 = vmatprep.subr.mxu0 0.0
        %1714 = vmatpush1.msra.mxu0 0.0
        %1715 = vmatprep.subr.mxu0 0.0
        %1716 = vmatpush1.msra.mxu0 0.0
        %1717 = vmatprep.subr.mxu0 0.0
        %1718 = vmatpush1.msra.mxu0 0.0
        %1719 = vmatprep.subr.mxu0 0.0
        %1720 = vmatpush1.msra.mxu0 0.0
        %1721 = vmatprep.subr.mxu0 0.0
        %1722 = vmatpush1.msra.mxu0 0.0
        %1723 = vmatprep.subr.mxu0 0.0
        %1724 = vmatpush1.msra.mxu0 0.0
        %1725 = vmatprep.subr.mxu0 0.0
        %1726 = vmatpush1.msra.mxu0 0.0
        %1727 = vmatprep.subr.mxu0 0.0
        %1728 = vmatpush1.msra.mxu0 0.0
        %1729 = vmatprep.mubr.f32.mxu0 0.0
        %1730 = vmatmul.mubr.f32.gmra.mrb[0].mxu0 %v1663
        %v1731 = vpop.f32.mrb[0].mxu0
        %v1732 = vadd.f32 0.0, %v1731
        %v1733 = vpop.f32.mrb[0].mxu0
        %1734 = vdwg.mxu0
        %v1735 = vadd.f32 %v1658, %v1732
        %s1736 = scalar_lea.vmem %s5, 80
        %v1737 = vld [vmem:[%s1736] sm:$0xff]
        %v1738 = vld [vmem:[%s1736 + $0x8] sm:$0xff]
        %v1739 = vrot.slane %v1351, 6
        %v1740 = vsel %vm507, %v1739, 0
        %1742 = vmatprep.subr.mxu0 0.0
        %1743 = vmatpush1.msra.mxu0 %v1737
        %1744 = vmatprep.subr.mxu0 0.0
        %1745 = vmatpush1.msra.mxu0 %v1738
        %1746 = vmatprep.subr.mxu0 0.0
        %1747 = vmatpush1.msra.mxu0 0.0
        %1748 = vmatprep.subr.mxu0 0.0
        %1749 = vmatpush1.msra.mxu0 0.0
        %1750 = vmatprep.subr.mxu0 0.0
        %1751 = vmatpush1.msra.mxu0 0.0
        %1752 = vmatprep.subr.mxu0 0.0
        %1753 = vmatpush1.msra.mxu0 0.0
        %1754 = vmatprep.subr.mxu0 0.0
        %1755 = vmatpush1.msra.mxu0 0.0
        %1756 = vmatprep.subr.mxu0 0.0
        %1757 = vmatpush1.msra.mxu0 0.0
        %1758 = vmatprep.subr.mxu0 0.0
        %1759 = vmatpush1.msra.mxu0 0.0
        %1760 = vmatprep.subr.mxu0 0.0
        %1761 = vmatpush1.msra.mxu0 0.0
        %1762 = vmatprep.subr.mxu0 0.0
        %1763 = vmatpush1.msra.mxu0 0.0
        %1764 = vmatprep.subr.mxu0 0.0
        %1765 = vmatpush1.msra.mxu0 0.0
        %1766 = vmatprep.subr.mxu0 0.0
        %1767 = vmatpush1.msra.mxu0 0.0
        %1768 = vmatprep.subr.mxu0 0.0
        %1769 = vmatpush1.msra.mxu0 0.0
        %1770 = vmatprep.subr.mxu0 0.0
        %1771 = vmatpush1.msra.mxu0 0.0
        %1772 = vmatprep.subr.mxu0 0.0
        %1773 = vmatpush1.msra.mxu0 0.0
        %1774 = vmatprep.subr.mxu0 0.0
        %1775 = vmatpush1.msra.mxu0 0.0
        %1776 = vmatprep.subr.mxu0 0.0
        %1777 = vmatpush1.msra.mxu0 0.0
        %1778 = vmatprep.subr.mxu0 0.0
        %1779 = vmatpush1.msra.mxu0 0.0
        %1780 = vmatprep.subr.mxu0 0.0
        %1781 = vmatpush1.msra.mxu0 0.0
        %1782 = vmatprep.subr.mxu0 0.0
        %1783 = vmatpush1.msra.mxu0 0.0
        %1784 = vmatprep.subr.mxu0 0.0
        %1785 = vmatpush1.msra.mxu0 0.0
        %1786 = vmatprep.subr.mxu0 0.0
        %1787 = vmatpush1.msra.mxu0 0.0
        %1788 = vmatprep.subr.mxu0 0.0
        %1789 = vmatpush1.msra.mxu0 0.0
        %1790 = vmatprep.subr.mxu0 0.0
        %1791 = vmatpush1.msra.mxu0 0.0
        %1792 = vmatprep.subr.mxu0 0.0
        %1793 = vmatpush1.msra.mxu0 0.0
        %1794 = vmatprep.subr.mxu0 0.0
        %1795 = vmatpush1.msra.mxu0 0.0
        %1796 = vmatprep.subr.mxu0 0.0
        %1797 = vmatpush1.msra.mxu0 0.0
        %1798 = vmatprep.subr.mxu0 0.0
        %1799 = vmatpush1.msra.mxu0 0.0
        %1800 = vmatprep.subr.mxu0 0.0
        %1801 = vmatpush1.msra.mxu0 0.0
        %1802 = vmatprep.subr.mxu0 0.0
        %1803 = vmatpush1.msra.mxu0 0.0
        %1804 = vmatprep.subr.mxu0 0.0
        %1805 = vmatpush1.msra.mxu0 0.0
        %1806 = vmatprep.mubr.f32.mxu0 0.0
        %1807 = vmatmul.mubr.f32.gmra.mrb[0].mxu0 %v1740
        %v1808 = vpop.f32.mrb[0].mxu0
        %v1809 = vadd.f32 0.0, %v1808
        %v1810 = vpop.f32.mrb[0].mxu0
        %1811 = vdwg.mxu0
        %v1812 = vadd.f32 %v1735, %v1809
        %s1813 = scalar_lea.vmem %s5, 96
        %v1814 = vld [vmem:[%s1813] sm:$0xff]
        %v1815 = vld [vmem:[%s1813 + $0x8] sm:$0xff]
        %v1816 = vrot.slane %v1351, 7
        %v1817 = vsel %vm507, %v1816, 0
        %1819 = vmatprep.subr.mxu0 0.0
        %1820 = vmatpush1.msra.mxu0 %v1814
        %1821 = vmatprep.subr.mxu0 0.0
        %1822 = vmatpush1.msra.mxu0 %v1815
        %1823 = vmatprep.subr.mxu0 0.0
        %1824 = vmatpush1.msra.mxu0 0.0
        %1825 = vmatprep.subr.mxu0 0.0
        %1826 = vmatpush1.msra.mxu0 0.0
        %1827 = vmatprep.subr.mxu0 0.0
        %1828 = vmatpush1.msra.mxu0 0.0
        %1829 = vmatprep.subr.mxu0 0.0
        %1830 = vmatpush1.msra.mxu0 0.0
        %1831 = vmatprep.subr.mxu0 0.0
        %1832 = vmatpush1.msra.mxu0 0.0
        %1833 = vmatprep.subr.mxu0 0.0
        %1834 = vmatpush1.msra.mxu0 0.0
        %1835 = vmatprep.subr.mxu0 0.0
        %1836 = vmatpush1.msra.mxu0 0.0
        %1837 = vmatprep.subr.mxu0 0.0
        %1838 = vmatpush1.msra.mxu0 0.0
        %1839 = vmatprep.subr.mxu0 0.0
        %1840 = vmatpush1.msra.mxu0 0.0
        %1841 = vmatprep.subr.mxu0 0.0
        %1842 = vmatpush1.msra.mxu0 0.0
        %1843 = vmatprep.subr.mxu0 0.0
        %1844 = vmatpush1.msra.mxu0 0.0
        %1845 = vmatprep.subr.mxu0 0.0
        %1846 = vmatpush1.msra.mxu0 0.0
        %1847 = vmatprep.subr.mxu0 0.0
        %1848 = vmatpush1.msra.mxu0 0.0
        %1849 = vmatprep.subr.mxu0 0.0
        %1850 = vmatpush1.msra.mxu0 0.0
        %1851 = vmatprep.subr.mxu0 0.0
        %1852 = vmatpush1.msra.mxu0 0.0
        %1853 = vmatprep.subr.mxu0 0.0
        %1854 = vmatpush1.msra.mxu0 0.0
        %1855 = vmatprep.subr.mxu0 0.0
        %1856 = vmatpush1.msra.mxu0 0.0
        %1857 = vmatprep.subr.mxu0 0.0
        %1858 = vmatpush1.msra.mxu0 0.0
        %1859 = vmatprep.subr.mxu0 0.0
        %1860 = vmatpush1.msra.mxu0 0.0
        %1861 = vmatprep.subr.mxu0 0.0
        %1862 = vmatpush1.msra.mxu0 0.0
        %1863 = vmatprep.subr.mxu0 0.0
        %1864 = vmatpush1.msra.mxu0 0.0
        %1865 = vmatprep.subr.mxu0 0.0
        %1866 = vmatpush1.msra.mxu0 0.0
        %1867 = vmatprep.subr.mxu0 0.0
        %1868 = vmatpush1.msra.mxu0 0.0
        %1869 = vmatprep.subr.mxu0 0.0
        %1870 = vmatpush1.msra.mxu0 0.0
        %1871 = vmatprep.subr.mxu0 0.0
        %1872 = vmatpush1.msra.mxu0 0.0
        %1873 = vmatprep.subr.mxu0 0.0
        %1874 = vmatpush1.msra.mxu0 0.0
        %1875 = vmatprep.subr.mxu0 0.0
        %1876 = vmatpush1.msra.mxu0 0.0
        %1877 = vmatprep.subr.mxu0 0.0
        %1878 = vmatpush1.msra.mxu0 0.0
        %1879 = vmatprep.subr.mxu0 0.0
        %1880 = vmatpush1.msra.mxu0 0.0
        %1881 = vmatprep.subr.mxu0 0.0
        %1882 = vmatpush1.msra.mxu0 0.0
        %1883 = vmatprep.mubr.f32.mxu0 0.0
        %1884 = vmatmul.mubr.f32.gmra.mrb[0].mxu0 %v1817
        %v1885 = vpop.f32.mrb[0].mxu0
        %v1886 = vadd.f32 0.0, %v1885
        %v1887 = vpop.f32.mrb[0].mxu0
        %1888 = vdwg.mxu0
        %v1889 = vadd.f32 %v1812, %v1886
        %s1890 = scalar_lea.vmem %s5, 112
        %v1891 = vld [vmem:[%s1890] sm:$0xff]
        %v1892 = vld [vmem:[%s1890 + $0x8] sm:$0xff]
        %v1894 = vsel %vm507, %v1352, 0
        %1896 = vmatprep.subr.mxu0 0.0
        %1897 = vmatpush1.msra.mxu0 %v1891
        %1898 = vmatprep.subr.mxu0 0.0
        %1899 = vmatpush1.msra.mxu0 %v1892
        %1900 = vmatprep.subr.mxu0 0.0
        %1901 = vmatpush1.msra.mxu0 0.0
        %1902 = vmatprep.subr.mxu0 0.0
        %1903 = vmatpush1.msra.mxu0 0.0
        %1904 = vmatprep.subr.mxu0 0.0
        %1905 = vmatpush1.msra.mxu0 0.0
        %1906 = vmatprep.subr.mxu0 0.0
        %1907 = vmatpush1.msra.mxu0 0.0
        %1908 = vmatprep.subr.mxu0 0.0
        %1909 = vmatpush1.msra.mxu0 0.0
        %1910 = vmatprep.subr.mxu0 0.0
        %1911 = vmatpush1.msra.mxu0 0.0
        %1912 = vmatprep.subr.mxu0 0.0
        %1913 = vmatpush1.msra.mxu0 0.0
        %1914 = vmatprep.subr.mxu0 0.0
        %1915 = vmatpush1.msra.mxu0 0.0
        %1916 = vmatprep.subr.mxu0 0.0
        %1917 = vmatpush1.msra.mxu0 0.0
        %1918 = vmatprep.subr.mxu0 0.0
        %1919 = vmatpush1.msra.mxu0 0.0
        %1920 = vmatprep.subr.mxu0 0.0
        %1921 = vmatpush1.msra.mxu0 0.0
        %1922 = vmatprep.subr.mxu0 0.0
        %1923 = vmatpush1.msra.mxu0 0.0
        %1924 = vmatprep.subr.mxu0 0.0
        %1925 = vmatpush1.msra.mxu0 0.0
        %1926 = vmatprep.subr.mxu0 0.0
        %1927 = vmatpush1.msra.mxu0 0.0
        %1928 = vmatprep.subr.mxu0 0.0
        %1929 = vmatpush1.msra.mxu0 0.0
        %1930 = vmatprep.subr.mxu0 0.0
        %1931 = vmatpush1.msra.mxu0 0.0
        %1932 = vmatprep.subr.mxu0 0.0
        %1933 = vmatpush1.msra.mxu0 0.0
        %1934 = vmatprep.subr.mxu0 0.0
        %1935 = vmatpush1.msra.mxu0 0.0
        %1936 = vmatprep.subr.mxu0 0.0
        %1937 = vmatpush1.msra.mxu0 0.0
        %1938 = vmatprep.subr.mxu0 0.0
        %1939 = vmatpush1.msra.mxu0 0.0
        %1940 = vmatprep.subr.mxu0 0.0
        %1941 = vmatpush1.msra.mxu0 0.0
        %1942 = vmatprep.subr.mxu0 0.0
        %1943 = vmatpush1.msra.mxu0 0.0
        %1944 = vmatprep.subr.mxu0 0.0
        %1945 = vmatpush1.msra.mxu0 0.0
        %1946 = vmatprep.subr.mxu0 0.0
        %1947 = vmatpush1.msra.mxu0 0.0
        %1948 = vmatprep.subr.mxu0 0.0
        %1949 = vmatpush1.msra.mxu0 0.0
        %1950 = vmatprep.subr.mxu0 0.0
        %1951 = vmatpush1.msra.mxu0 0.0
        %1952 = vmatprep.subr.mxu0 0.0
        %1953 = vmatpush1.msra.mxu0 0.0
        %1954 = vmatprep.subr.mxu0 0.0
        %1955 = vmatpush1.msra.mxu0 0.0
        %1956 = vmatprep.subr.mxu0 0.0
        %1957 = vmatpush1.msra.mxu0 0.0
        %1958 = vmatprep.subr.mxu0 0.0
        %1959 = vmatpush1.msra.mxu0 0.0
        %1960 = vmatprep.mubr.f32.mxu0 0.0
        %1961 = vmatmul.mubr.f32.gmra.mrb[0].mxu0 %v1894
        %v1962 = vpop.f32.mrb[0].mxu0
        %v1963 = vadd.f32 0.0, %v1962
        %v1964 = vpop.f32.mrb[0].mxu0
        %1965 = vdwg.mxu0
        %v1966 = vadd.f32 %v1889, %v1963
        %s1967 = scalar_lea.vmem %s5, 128
        %v1968 = vld [vmem:[%s1967] sm:$0xff]
        %v1969 = vld [vmem:[%s1967 + $0x8] sm:$0xff]
        %v1970 = vrot.slane %v1352, 2
        %v1971 = vsel %vm507, %v1970, 0
        %1973 = vmatprep.subr.mxu0 0.0
        %1974 = vmatpush1.msra.mxu0 %v1968
        %1975 = vmatprep.subr.mxu0 0.0
        %1976 = vmatpush1.msra.mxu0 %v1969
        %1977 = vmatprep.subr.mxu0 0.0
        %1978 = vmatpush1.msra.mxu0 0.0
        %1979 = vmatprep.subr.mxu0 0.0
        %1980 = vmatpush1.msra.mxu0 0.0
        %1981 = vmatprep.subr.mxu0 0.0
        %1982 = vmatpush1.msra.mxu0 0.0
        %1983 = vmatprep.subr.mxu0 0.0
        %1984 = vmatpush1.msra.mxu0 0.0
        %1985 = vmatprep.subr.mxu0 0.0
        %1986 = vmatpush1.msra.mxu0 0.0
        %1987 = vmatprep.subr.mxu0 0.0
        %1988 = vmatpush1.msra.mxu0 0.0
        %1989 = vmatprep.subr.mxu0 0.0
        %1990 = vmatpush1.msra.mxu0 0.0
        %1991 = vmatprep.subr.mxu0 0.0
        %1992 = vmatpush1.msra.mxu0 0.0
        %1993 = vmatprep.subr.mxu0 0.0
        %1994 = vmatpush1.msra.mxu0 0.0
        %1995 = vmatprep.subr.mxu0 0.0
        %1996 = vmatpush1.msra.mxu0 0.0
        %1997 = vmatprep.subr.mxu0 0.0
        %1998 = vmatpush1.msra.mxu0 0.0
        %1999 = vmatprep.subr.mxu0 0.0
        %2000 = vmatpush1.msra.mxu0 0.0
        %2001 = vmatprep.subr.mxu0 0.0
        %2002 = vmatpush1.msra.mxu0 0.0
        %2003 = vmatprep.subr.mxu0 0.0
        %2004 = vmatpush1.msra.mxu0 0.0
        %2005 = vmatprep.subr.mxu0 0.0
        %2006 = vmatpush1.msra.mxu0 0.0
        %2007 = vmatprep.subr.mxu0 0.0
        %2008 = vmatpush1.msra.mxu0 0.0
        %2009 = vmatprep.subr.mxu0 0.0
        %2010 = vmatpush1.msra.mxu0 0.0
        %2011 = vmatprep.subr.mxu0 0.0
        %2012 = vmatpush1.msra.mxu0 0.0
        %2013 = vmatprep.subr.mxu0 0.0
        %2014 = vmatpush1.msra.mxu0 0.0
        %2015 = vmatprep.subr.mxu0 0.0
        %2016 = vmatpush1.msra.mxu0 0.0
        %2017 = vmatprep.subr.mxu0 0.0
        %2018 = vmatpush1.msra.mxu0 0.0
        %2019 = vmatprep.subr.mxu0 0.0
        %2020 = vmatpush1.msra.mxu0 0.0
        %2021 = vmatprep.subr.mxu0 0.0
        %2022 = vmatpush1.msra.mxu0 0.0
        %2023 = vmatprep.subr.mxu0 0.0
        %2024 = vmatpush1.msra.mxu0 0.0
        %2025 = vmatprep.subr.mxu0 0.0
        %2026 = vmatpush1.msra.mxu0 0.0
        %2027 = vmatprep.subr.mxu0 0.0
        %2028 = vmatpush1.msra.mxu0 0.0
        %2029 = vmatprep.subr.mxu0 0.0
        %2030 = vmatpush1.msra.mxu0 0.0
        %2031 = vmatprep.subr.mxu0 0.0
        %2032 = vmatpush1.msra.mxu0 0.0
        %2033 = vmatprep.subr.mxu0 0.0
        %2034 = vmatpush1.msra.mxu0 0.0
        %2035 = vmatprep.subr.mxu0 0.0
        %2036 = vmatpush1.msra.mxu0 0.0
        %2037 = vmatprep.mubr.f32.mxu0 0.0
        %2038 = vmatmul.mubr.f32.gmra.mrb[0].mxu0 %v1971
        %v2039 = vpop.f32.mrb[0].mxu0
        %v2040 = vadd.f32 0.0, %v2039
        %v2041 = vpop.f32.mrb[0].mxu0
        %2042 = vdwg.mxu0
        %v2043 = vadd.f32 %v1966, %v2040
        %s2044 = scalar_lea.vmem %s5, 144
        %v2045 = vld [vmem:[%s2044] sm:$0xff]
        %v2046 = vld [vmem:[%s2044 + $0x8] sm:$0xff]
        %v2047 = vrot.slane %v1352, 3
        %v2048 = vsel %vm507, %v2047, 0
        %2050 = vmatprep.subr.mxu0 0.0
        %2051 = vmatpush1.msra.mxu0 %v2045
        %2052 = vmatprep.subr.mxu0 0.0
        %2053 = vmatpush1.msra.mxu0 %v2046
        %2054 = vmatprep.subr.mxu0 0.0
        %2055 = vmatpush1.msra.mxu0 0.0
        %2056 = vmatprep.subr.mxu0 0.0
        %2057 = vmatpush1.msra.mxu0 0.0
        %2058 = vmatprep.subr.mxu0 0.0
        %2059 = vmatpush1.msra.mxu0 0.0
        %2060 = vmatprep.subr.mxu0 0.0
        %2061 = vmatpush1.msra.mxu0 0.0
        %2062 = vmatprep.subr.mxu0 0.0
        %2063 = vmatpush1.msra.mxu0 0.0
        %2064 = vmatprep.subr.mxu0 0.0
        %2065 = vmatpush1.msra.mxu0 0.0
        %2066 = vmatprep.subr.mxu0 0.0
        %2067 = vmatpush1.msra.mxu0 0.0
        %2068 = vmatprep.subr.mxu0 0.0
        %2069 = vmatpush1.msra.mxu0 0.0
        %2070 = vmatprep.subr.mxu0 0.0
        %2071 = vmatpush1.msra.mxu0 0.0
        %2072 = vmatprep.subr.mxu0 0.0
        %2073 = vmatpush1.msra.mxu0 0.0
        %2074 = vmatprep.subr.mxu0 0.0
        %2075 = vmatpush1.msra.mxu0 0.0
        %2076 = vmatprep.subr.mxu0 0.0
        %2077 = vmatpush1.msra.mxu0 0.0
        %2078 = vmatprep.subr.mxu0 0.0
        %2079 = vmatpush1.msra.mxu0 0.0
        %2080 = vmatprep.subr.mxu0 0.0
        %2081 = vmatpush1.msra.mxu0 0.0
        %2082 = vmatprep.subr.mxu0 0.0
        %2083 = vmatpush1.msra.mxu0 0.0
        %2084 = vmatprep.subr.mxu0 0.0
        %2085 = vmatpush1.msra.mxu0 0.0
        %2086 = vmatprep.subr.mxu0 0.0
        %2087 = vmatpush1.msra.mxu0 0.0
        %2088 = vmatprep.subr.mxu0 0.0
        %2089 = vmatpush1.msra.mxu0 0.0
        %2090 = vmatprep.subr.mxu0 0.0
        %2091 = vmatpush1.msra.mxu0 0.0
        %2092 = vmatprep.subr.mxu0 0.0
        %2093 = vmatpush1.msra.mxu0 0.0
        %2094 = vmatprep.subr.mxu0 0.0
        %2095 = vmatpush1.msra.mxu0 0.0
        %2096 = vmatprep.subr.mxu0 0.0
        %2097 = vmatpush1.msra.mxu0 0.0
        %2098 = vmatprep.subr.mxu0 0.0
        %2099 = vmatpush1.msra.mxu0 0.0
        %2100 = vmatprep.subr.mxu0 0.0
        %2101 = vmatpush1.msra.mxu0 0.0
        %2102 = vmatprep.subr.mxu0 0.0
        %2103 = vmatpush1.msra.mxu0 0.0
        %2104 = vmatprep.subr.mxu0 0.0
        %2105 = vmatpush1.msra.mxu0 0.0
        %2106 = vmatprep.subr.mxu0 0.0
        %2107 = vmatpush1.msra.mxu0 0.0
        %2108 = vmatprep.subr.mxu0 0.0
        %2109 = vmatpush1.msra.mxu0 0.0
        %2110 = vmatprep.subr.mxu0 0.0
        %2111 = vmatpush1.msra.mxu0 0.0
        %2112 = vmatprep.subr.mxu0 0.0
        %2113 = vmatpush1.msra.mxu0 0.0
        %2114 = vmatprep.mubr.f32.mxu0 0.0
        %2115 = vmatmul.mubr.f32.gmra.mrb[0].mxu0 %v2048
        %v2116 = vpop.f32.mrb[0].mxu0
        %v2117 = vadd.f32 0.0, %v2116
        %v2118 = vpop.f32.mrb[0].mxu0
        %2119 = vdwg.mxu0
        %v2120 = vadd.f32 %v2043, %v2117
        %s2121 = scalar_lea.vmem %s5, 160
        %v2122 = vld [vmem:[%s2121] sm:$0xff]
        %v2123 = vld [vmem:[%s2121 + $0x8] sm:$0xff]
        %v2124 = vrot.slane %v1352, 4
        %v2125 = vsel %vm507, %v2124, 0
        %2127 = vmatprep.subr.mxu0 0.0
        %2128 = vmatpush1.msra.mxu0 %v2122
        %2129 = vmatprep.subr.mxu0 0.0
        %2130 = vmatpush1.msra.mxu0 %v2123
        %2131 = vmatprep.subr.mxu0 0.0
        %2132 = vmatpush1.msra.mxu0 0.0
        %2133 = vmatprep.subr.mxu0 0.0
        %2134 = vmatpush1.msra.mxu0 0.0
        %2135 = vmatprep.subr.mxu0 0.0
        %2136 = vmatpush1.msra.mxu0 0.0
        %2137 = vmatprep.subr.mxu0 0.0
        %2138 = vmatpush1.msra.mxu0 0.0
        %2139 = vmatprep.subr.mxu0 0.0
        %2140 = vmatpush1.msra.mxu0 0.0
        %2141 = vmatprep.subr.mxu0 0.0
        %2142 = vmatpush1.msra.mxu0 0.0
        %2143 = vmatprep.subr.mxu0 0.0
        %2144 = vmatpush1.msra.mxu0 0.0
        %2145 = vmatprep.subr.mxu0 0.0
        %2146 = vmatpush1.msra.mxu0 0.0
        %2147 = vmatprep.subr.mxu0 0.0
        %2148 = vmatpush1.msra.mxu0 0.0
        %2149 = vmatprep.subr.mxu0 0.0
        %2150 = vmatpush1.msra.mxu0 0.0
        %2151 = vmatprep.subr.mxu0 0.0
        %2152 = vmatpush1.msra.mxu0 0.0
        %2153 = vmatprep.subr.mxu0 0.0
        %2154 = vmatpush1.msra.mxu0 0.0
        %2155 = vmatprep.subr.mxu0 0.0
        %2156 = vmatpush1.msra.mxu0 0.0
        %2157 = vmatprep.subr.mxu0 0.0
        %2158 = vmatpush1.msra.mxu0 0.0
        %2159 = vmatprep.subr.mxu0 0.0
        %2160 = vmatpush1.msra.mxu0 0.0
        %2161 = vmatprep.subr.mxu0 0.0
        %2162 = vmatpush1.msra.mxu0 0.0
        %2163 = vmatprep.subr.mxu0 0.0
        %2164 = vmatpush1.msra.mxu0 0.0
        %2165 = vmatprep.subr.mxu0 0.0
        %2166 = vmatpush1.msra.mxu0 0.0
        %2167 = vmatprep.subr.mxu0 0.0
        %2168 = vmatpush1.msra.mxu0 0.0
        %2169 = vmatprep.subr.mxu0 0.0
        %2170 = vmatpush1.msra.mxu0 0.0
        %2171 = vmatprep.subr.mxu0 0.0
        %2172 = vmatpush1.msra.mxu0 0.0
        %2173 = vmatprep.subr.mxu0 0.0
        %2174 = vmatpush1.msra.mxu0 0.0
        %2175 = vmatprep.subr.mxu0 0.0
        %2176 = vmatpush1.msra.mxu0 0.0
        %2177 = vmatprep.subr.mxu0 0.0
        %2178 = vmatpush1.msra.mxu0 0.0
        %2179 = vmatprep.subr.mxu0 0.0
        %2180 = vmatpush1.msra.mxu0 0.0
        %2181 = vmatprep.subr.mxu0 0.0
        %2182 = vmatpush1.msra.mxu0 0.0
        %2183 = vmatprep.subr.mxu0 0.0
        %2184 = vmatpush1.msra.mxu0 0.0
        %2185 = vmatprep.subr.mxu0 0.0
        %2186 = vmatpush1.msra.mxu0 0.0
        %2187 = vmatprep.subr.mxu0 0.0
        %2188 = vmatpush1.msra.mxu0 0.0
        %2189 = vmatprep.subr.mxu0 0.0
        %2190 = vmatpush1.msra.mxu0 0.0
        %2191 = vmatprep.mubr.f32.mxu0 0.0
        %2192 = vmatmul.mubr.f32.gmra.mrb[0].mxu0 %v2125
        %v2193 = vpop.f32.mrb[0].mxu0
        %v2194 = vadd.f32 0.0, %v2193
        %v2195 = vpop.f32.mrb[0].mxu0
        %2196 = vdwg.mxu0
        %v2197 = vadd.f32 %v2120, %v2194
        %s2198 = scalar_lea.vmem %s5, 176
        %v2199 = vld [vmem:[%s2198] sm:$0xff]
        %v2200 = vld [vmem:[%s2198 + $0x8] sm:$0xff]
        %v2201 = vrot.slane %v1352, 5
        %v2202 = vsel %vm507, %v2201, 0
        %2204 = vmatprep.subr.mxu0 0.0
        %2205 = vmatpush1.msra.mxu0 %v2199
        %2206 = vmatprep.subr.mxu0 0.0
        %2207 = vmatpush1.msra.mxu0 %v2200
        %2208 = vmatprep.subr.mxu0 0.0
        %2209 = vmatpush1.msra.mxu0 0.0
        %2210 = vmatprep.subr.mxu0 0.0
        %2211 = vmatpush1.msra.mxu0 0.0
        %2212 = vmatprep.subr.mxu0 0.0
        %2213 = vmatpush1.msra.mxu0 0.0
        %2214 = vmatprep.subr.mxu0 0.0
        %2215 = vmatpush1.msra.mxu0 0.0
        %2216 = vmatprep.subr.mxu0 0.0
        %2217 = vmatpush1.msra.mxu0 0.0
        %2218 = vmatprep.subr.mxu0 0.0
        %2219 = vmatpush1.msra.mxu0 0.0
        %2220 = vmatprep.subr.mxu0 0.0
        %2221 = vmatpush1.msra.mxu0 0.0
        %2222 = vmatprep.subr.mxu0 0.0
        %2223 = vmatpush1.msra.mxu0 0.0
        %2224 = vmatprep.subr.mxu0 0.0
        %2225 = vmatpush1.msra.mxu0 0.0
        %2226 = vmatprep.subr.mxu0 0.0
        %2227 = vmatpush1.msra.mxu0 0.0
        %2228 = vmatprep.subr.mxu0 0.0
        %2229 = vmatpush1.msra.mxu0 0.0
        %2230 = vmatprep.subr.mxu0 0.0
        %2231 = vmatpush1.msra.mxu0 0.0
        %2232 = vmatprep.subr.mxu0 0.0
        %2233 = vmatpush1.msra.mxu0 0.0
        %2234 = vmatprep.subr.mxu0 0.0
        %2235 = vmatpush1.msra.mxu0 0.0
        %2236 = vmatprep.subr.mxu0 0.0
        %2237 = vmatpush1.msra.mxu0 0.0
        %2238 = vmatprep.subr.mxu0 0.0
        %2239 = vmatpush1.msra.mxu0 0.0
        %2240 = vmatprep.subr.mxu0 0.0
        %2241 = vmatpush1.msra.mxu0 0.0
        %2242 = vmatprep.subr.mxu0 0.0
        %2243 = vmatpush1.msra.mxu0 0.0
        %2244 = vmatprep.subr.mxu0 0.0
        %2245 = vmatpush1.msra.mxu0 0.0
        %2246 = vmatprep.subr.mxu0 0.0
        %2247 = vmatpush1.msra.mxu0 0.0
        %2248 = vmatprep.subr.mxu0 0.0
        %2249 = vmatpush1.msra.mxu0 0.0
        %2250 = vmatprep.subr.mxu0 0.0
        %2251 = vmatpush1.msra.mxu0 0.0
        %2252 = vmatprep.subr.mxu0 0.0
        %2253 = vmatpush1.msra.mxu0 0.0
        %2254 = vmatprep.subr.mxu0 0.0
        %2255 = vmatpush1.msra.mxu0 0.0
        %2256 = vmatprep.subr.mxu0 0.0
        %2257 = vmatpush1.msra.mxu0 0.0
        %2258 = vmatprep.subr.mxu0 0.0
        %2259 = vmatpush1.msra.mxu0 0.0
        %2260 = vmatprep.subr.mxu0 0.0
        %2261 = vmatpush1.msra.mxu0 0.0
        %2262 = vmatprep.subr.mxu0 0.0
        %2263 = vmatpush1.msra.mxu0 0.0
        %2264 = vmatprep.subr.mxu0 0.0
        %2265 = vmatpush1.msra.mxu0 0.0
        %2266 = vmatprep.subr.mxu0 0.0
        %2267 = vmatpush1.msra.mxu0 0.0
        %2268 = vmatprep.mubr.f32.mxu0 0.0
        %2269 = vmatmul.mubr.f32.gmra.mrb[0].mxu0 %v2202
        %v2270 = vpop.f32.mrb[0].mxu0
        %v2271 = vadd.f32 0.0, %v2270
        %v2272 = vpop.f32.mrb[0].mxu0
        %2273 = vdwg.mxu0
        %v2274 = vadd.f32 %v2197, %v2271
        %s2275 = scalar_lea.vmem %s5, 192
        %v2276 = vld [vmem:[%s2275] sm:$0xff]
        %v2277 = vld [vmem:[%s2275 + $0x8] sm:$0xff]
        %v2278 = vrot.slane %v1352, 7
        %v2279 = vsel %vm507, %v2278, 0
        %2281 = vmatprep.subr.mxu0 0.0
        %2282 = vmatpush1.msra.mxu0 %v2276
        %2283 = vmatprep.subr.mxu0 0.0
        %2284 = vmatpush1.msra.mxu0 %v2277
        %2285 = vmatprep.subr.mxu0 0.0
        %2286 = vmatpush1.msra.mxu0 0.0
        %2287 = vmatprep.subr.mxu0 0.0
        %2288 = vmatpush1.msra.mxu0 0.0
        %2289 = vmatprep.subr.mxu0 0.0
        %2290 = vmatpush1.msra.mxu0 0.0
        %2291 = vmatprep.subr.mxu0 0.0
        %2292 = vmatpush1.msra.mxu0 0.0
        %2293 = vmatprep.subr.mxu0 0.0
        %2294 = vmatpush1.msra.mxu0 0.0
        %2295 = vmatprep.subr.mxu0 0.0
        %2296 = vmatpush1.msra.mxu0 0.0
        %2297 = vmatprep.subr.mxu0 0.0
        %2298 = vmatpush1.msra.mxu0 0.0
        %2299 = vmatprep.subr.mxu0 0.0
        %2300 = vmatpush1.msra.mxu0 0.0
        %2301 = vmatprep.subr.mxu0 0.0
        %2302 = vmatpush1.msra.mxu0 0.0
        %2303 = vmatprep.subr.mxu0 0.0
        %2304 = vmatpush1.msra.mxu0 0.0
        %2305 = vmatprep.subr.mxu0 0.0
        %2306 = vmatpush1.msra.mxu0 0.0
        %2307 = vmatprep.subr.mxu0 0.0
        %2308 = vmatpush1.msra.mxu0 0.0
        %2309 = vmatprep.subr.mxu0 0.0
        %2310 = vmatpush1.msra.mxu0 0.0
        %2311 = vmatprep.subr.mxu0 0.0
        %2312 = vmatpush1.msra.mxu0 0.0
        %2313 = vmatprep.subr.mxu0 0.0
        %2314 = vmatpush1.msra.mxu0 0.0
        %2315 = vmatprep.subr.mxu0 0.0
        %2316 = vmatpush1.msra.mxu0 0.0
        %2317 = vmatprep.subr.mxu0 0.0
        %2318 = vmatpush1.msra.mxu0 0.0
        %2319 = vmatprep.subr.mxu0 0.0
        %2320 = vmatpush1.msra.mxu0 0.0
        %2321 = vmatprep.subr.mxu0 0.0
        %2322 = vmatpush1.msra.mxu0 0.0
        %2323 = vmatprep.subr.mxu0 0.0
        %2324 = vmatpush1.msra.mxu0 0.0
        %2325 = vmatprep.subr.mxu0 0.0
        %2326 = vmatpush1.msra.mxu0 0.0
        %2327 = vmatprep.subr.mxu0 0.0
        %2328 = vmatpush1.msra.mxu0 0.0
        %2329 = vmatprep.subr.mxu0 0.0
        %2330 = vmatpush1.msra.mxu0 0.0
        %2331 = vmatprep.subr.mxu0 0.0
        %2332 = vmatpush1.msra.mxu0 0.0
        %2333 = vmatprep.subr.mxu0 0.0
        %2334 = vmatpush1.msra.mxu0 0.0
        %2335 = vmatprep.subr.mxu0 0.0
        %2336 = vmatpush1.msra.mxu0 0.0
        %2337 = vmatprep.subr.mxu0 0.0
        %2338 = vmatpush1.msra.mxu0 0.0
        %2339 = vmatprep.subr.mxu0 0.0
        %2340 = vmatpush1.msra.mxu0 0.0
        %2341 = vmatprep.subr.mxu0 0.0
        %2342 = vmatpush1.msra.mxu0 0.0
        %2343 = vmatprep.subr.mxu0 0.0
        %2344 = vmatpush1.msra.mxu0 0.0
        %2345 = vmatprep.mubr.f32.mxu0 0.0
        %2346 = vmatmul.mubr.f32.gmra.mrb[0].mxu0 %v2279
        %v2347 = vpop.f32.mrb[0].mxu0
        %v2348 = vadd.f32 0.0, %v2347
        %v2349 = vpop.f32.mrb[0].mxu0
        %2350 = vdwg.mxu0
        %v2351 = vadd.f32 %v2274, %v2348
        %s2352 = scalar_lea.vmem %s5, 208
        %v2353 = vld [vmem:[%s2352] sm:$0xff]
        %v2354 = vld [vmem:[%s2352 + $0x8] sm:$0xff]
        %v2356 = vsel %vm507, %v1353, 0
        %2358 = vmatprep.subr.mxu0 0.0
        %2359 = vmatpush1.msra.mxu0 %v2353
        %2360 = vmatprep.subr.mxu0 0.0
        %2361 = vmatpush1.msra.mxu0 %v2354
        %2362 = vmatprep.subr.mxu0 0.0
        %2363 = vmatpush1.msra.mxu0 0.0
        %2364 = vmatprep.subr.mxu0 0.0
        %2365 = vmatpush1.msra.mxu0 0.0
        %2366 = vmatprep.subr.mxu0 0.0
        %2367 = vmatpush1.msra.mxu0 0.0
        %2368 = vmatprep.subr.mxu0 0.0
        %2369 = vmatpush1.msra.mxu0 0.0
        %2370 = vmatprep.subr.mxu0 0.0
        %2371 = vmatpush1.msra.mxu0 0.0
        %2372 = vmatprep.subr.mxu0 0.0
        %2373 = vmatpush1.msra.mxu0 0.0
        %2374 = vmatprep.subr.mxu0 0.0
        %2375 = vmatpush1.msra.mxu0 0.0
        %2376 = vmatprep.subr.mxu0 0.0
        %2377 = vmatpush1.msra.mxu0 0.0
        %2378 = vmatprep.subr.mxu0 0.0
        %2379 = vmatpush1.msra.mxu0 0.0
        %2380 = vmatprep.subr.mxu0 0.0
        %2381 = vmatpush1.msra.mxu0 0.0
        %2382 = vmatprep.subr.mxu0 0.0
        %2383 = vmatpush1.msra.mxu0 0.0
        %2384 = vmatprep.subr.mxu0 0.0
        %2385 = vmatpush1.msra.mxu0 0.0
        %2386 = vmatprep.subr.mxu0 0.0
        %2387 = vmatpush1.msra.mxu0 0.0
        %2388 = vmatprep.subr.mxu0 0.0
        %2389 = vmatpush1.msra.mxu0 0.0
        %2390 = vmatprep.subr.mxu0 0.0
        %2391 = vmatpush1.msra.mxu0 0.0
        %2392 = vmatprep.subr.mxu0 0.0
        %2393 = vmatpush1.msra.mxu0 0.0
        %2394 = vmatprep.subr.mxu0 0.0
        %2395 = vmatpush1.msra.mxu0 0.0
        %2396 = vmatprep.subr.mxu0 0.0
        %2397 = vmatpush1.msra.mxu0 0.0
        %2398 = vmatprep.subr.mxu0 0.0
        %2399 = vmatpush1.msra.mxu0 0.0
        %2400 = vmatprep.subr.mxu0 0.0
        %2401 = vmatpush1.msra.mxu0 0.0
        %2402 = vmatprep.subr.mxu0 0.0
        %2403 = vmatpush1.msra.mxu0 0.0
        %2404 = vmatprep.subr.mxu0 0.0
        %2405 = vmatpush1.msra.mxu0 0.0
        %2406 = vmatprep.subr.mxu0 0.0
        %2407 = vmatpush1.msra.mxu0 0.0
        %2408 = vmatprep.subr.mxu0 0.0
        %2409 = vmatpush1.msra.mxu0 0.0
        %2410 = vmatprep.subr.mxu0 0.0
        %2411 = vmatpush1.msra.mxu0 0.0
        %2412 = vmatprep.subr.mxu0 0.0
        %2413 = vmatpush1.msra.mxu0 0.0
        %2414 = vmatprep.subr.mxu0 0.0
        %2415 = vmatpush1.msra.mxu0 0.0
        %2416 = vmatprep.subr.mxu0 0.0
        %2417 = vmatpush1.msra.mxu0 0.0
        %2418 = vmatprep.subr.mxu0 0.0
        %2419 = vmatpush1.msra.mxu0 0.0
        %2420 = vmatprep.subr.mxu0 0.0
        %2421 = vmatpush1.msra.mxu0 0.0
        %2422 = vmatprep.mubr.f32.mxu0 0.0
        %2423 = vmatmul.mubr.f32.gmra.mrb[0].mxu0 %v2356
        %v2424 = vpop.f32.mrb[0].mxu0
        %v2425 = vadd.f32 0.0, %v2424
        %v2426 = vpop.f32.mrb[0].mxu0
        %2427 = vdwg.mxu0
        %v2428 = vadd.f32 %v2351, %v2425
        %s2429 = scalar_lea.vmem %s5, 224
        %v2430 = vld [vmem:[%s2429] sm:$0xff]
        %v2431 = vld [vmem:[%s2429 + $0x8] sm:$0xff]
        %v2432 = vrot.slane %v1353, 1
        %v2433 = vsel %vm507, %v2432, 0
        %2435 = vmatprep.subr.mxu0 0.0
        %2436 = vmatpush1.msra.mxu0 %v2430
        %2437 = vmatprep.subr.mxu0 0.0
        %2438 = vmatpush1.msra.mxu0 %v2431
        %2439 = vmatprep.subr.mxu0 0.0
        %2440 = vmatpush1.msra.mxu0 0.0
        %2441 = vmatprep.subr.mxu0 0.0
        %2442 = vmatpush1.msra.mxu0 0.0
        %2443 = vmatprep.subr.mxu0 0.0
        %2444 = vmatpush1.msra.mxu0 0.0
        %2445 = vmatprep.subr.mxu0 0.0
        %2446 = vmatpush1.msra.mxu0 0.0
        %2447 = vmatprep.subr.mxu0 0.0
        %2448 = vmatpush1.msra.mxu0 0.0
        %2449 = vmatprep.subr.mxu0 0.0
        %2450 = vmatpush1.msra.mxu0 0.0
        %2451 = vmatprep.subr.mxu0 0.0
        %2452 = vmatpush1.msra.mxu0 0.0
        %2453 = vmatprep.subr.mxu0 0.0
        %2454 = vmatpush1.msra.mxu0 0.0
        %2455 = vmatprep.subr.mxu0 0.0
        %2456 = vmatpush1.msra.mxu0 0.0
        %2457 = vmatprep.subr.mxu0 0.0
        %2458 = vmatpush1.msra.mxu0 0.0
        %2459 = vmatprep.subr.mxu0 0.0
        %2460 = vmatpush1.msra.mxu0 0.0
        %2461 = vmatprep.subr.mxu0 0.0
        %2462 = vmatpush1.msra.mxu0 0.0
        %2463 = vmatprep.subr.mxu0 0.0
        %2464 = vmatpush1.msra.mxu0 0.0
        %2465 = vmatprep.subr.mxu0 0.0
        %2466 = vmatpush1.msra.mxu0 0.0
        %2467 = vmatprep.subr.mxu0 0.0
        %2468 = vmatpush1.msra.mxu0 0.0
        %2469 = vmatprep.subr.mxu0 0.0
        %2470 = vmatpush1.msra.mxu0 0.0
        %2471 = vmatprep.subr.mxu0 0.0
        %2472 = vmatpush1.msra.mxu0 0.0
        %2473 = vmatprep.subr.mxu0 0.0
        %2474 = vmatpush1.msra.mxu0 0.0
        %2475 = vmatprep.subr.mxu0 0.0
        %2476 = vmatpush1.msra.mxu0 0.0
        %2477 = vmatprep.subr.mxu0 0.0
        %2478 = vmatpush1.msra.mxu0 0.0
        %2479 = vmatprep.subr.mxu0 0.0
        %2480 = vmatpush1.msra.mxu0 0.0
        %2481 = vmatprep.subr.mxu0 0.0
        %2482 = vmatpush1.msra.mxu0 0.0
        %2483 = vmatprep.subr.mxu0 0.0
        %2484 = vmatpush1.msra.mxu0 0.0
        %2485 = vmatprep.subr.mxu0 0.0
        %2486 = vmatpush1.msra.mxu0 0.0
        %2487 = vmatprep.subr.mxu0 0.0
        %2488 = vmatpush1.msra.mxu0 0.0
        %2489 = vmatprep.subr.mxu0 0.0
        %2490 = vmatpush1.msra.mxu0 0.0
        %2491 = vmatprep.subr.mxu0 0.0
        %2492 = vmatpush1.msra.mxu0 0.0
        %2493 = vmatprep.subr.mxu0 0.0
        %2494 = vmatpush1.msra.mxu0 0.0
        %2495 = vmatprep.subr.mxu0 0.0
        %2496 = vmatpush1.msra.mxu0 0.0
        %2497 = vmatprep.subr.mxu0 0.0
        %2498 = vmatpush1.msra.mxu0 0.0
        %2499 = vmatprep.mubr.f32.mxu0 0.0
        %2500 = vmatmul.mubr.f32.gmra.mrb[0].mxu0 %v2433
        %v2501 = vpop.f32.mrb[0].mxu0
        %v2502 = vadd.f32 0.0, %v2501
        %v2503 = vpop.f32.mrb[0].mxu0
        %2504 = vdwg.mxu0
        %v2505 = vadd.f32 %v2428, %v2502
        %s2506 = scalar_lea.vmem %s5, 240
        %v2507 = vld [vmem:[%s2506] sm:$0xff]
        %v2508 = vld [vmem:[%s2506 + $0x8] sm:$0xff]
        %v2509 = vrot.slane %v1353, 2
        %v2510 = vsel %vm507, %v2509, 0
        %2512 = vmatprep.subr.mxu0 0.0
        %2513 = vmatpush1.msra.mxu0 %v2507
        %2514 = vmatprep.subr.mxu0 0.0
        %2515 = vmatpush1.msra.mxu0 %v2508
        %2516 = vmatprep.subr.mxu0 0.0
        %2517 = vmatpush1.msra.mxu0 0.0
        %2518 = vmatprep.subr.mxu0 0.0
        %2519 = vmatpush1.msra.mxu0 0.0
        %2520 = vmatprep.subr.mxu0 0.0
        %2521 = vmatpush1.msra.mxu0 0.0
        %2522 = vmatprep.subr.mxu0 0.0
        %2523 = vmatpush1.msra.mxu0 0.0
        %2524 = vmatprep.subr.mxu0 0.0
        %2525 = vmatpush1.msra.mxu0 0.0
        %2526 = vmatprep.subr.mxu0 0.0
        %2527 = vmatpush1.msra.mxu0 0.0
        %2528 = vmatprep.subr.mxu0 0.0
        %2529 = vmatpush1.msra.mxu0 0.0
        %2530 = vmatprep.subr.mxu0 0.0
        %2531 = vmatpush1.msra.mxu0 0.0
        %2532 = vmatprep.subr.mxu0 0.0
        %2533 = vmatpush1.msra.mxu0 0.0
        %2534 = vmatprep.subr.mxu0 0.0
        %2535 = vmatpush1.msra.mxu0 0.0
        %2536 = vmatprep.subr.mxu0 0.0
        %2537 = vmatpush1.msra.mxu0 0.0
        %2538 = vmatprep.subr.mxu0 0.0
        %2539 = vmatpush1.msra.mxu0 0.0
        %2540 = vmatprep.subr.mxu0 0.0
        %2541 = vmatpush1.msra.mxu0 0.0
        %2542 = vmatprep.subr.mxu0 0.0
        %2543 = vmatpush1.msra.mxu0 0.0
        %2544 = vmatprep.subr.mxu0 0.0
        %2545 = vmatpush1.msra.mxu0 0.0
        %2546 = vmatprep.subr.mxu0 0.0
        %2547 = vmatpush1.msra.mxu0 0.0
        %2548 = vmatprep.subr.mxu0 0.0
        %2549 = vmatpush1.msra.mxu0 0.0
        %2550 = vmatprep.subr.mxu0 0.0
        %2551 = vmatpush1.msra.mxu0 0.0
        %2552 = vmatprep.subr.mxu0 0.0
        %2553 = vmatpush1.msra.mxu0 0.0
        %2554 = vmatprep.subr.mxu0 0.0
        %2555 = vmatpush1.msra.mxu0 0.0
        %2556 = vmatprep.subr.mxu0 0.0
        %2557 = vmatpush1.msra.mxu0 0.0
        %2558 = vmatprep.subr.mxu0 0.0
        %2559 = vmatpush1.msra.mxu0 0.0
        %2560 = vmatprep.subr.mxu0 0.0
        %2561 = vmatpush1.msra.mxu0 0.0
        %2562 = vmatprep.subr.mxu0 0.0
        %2563 = vmatpush1.msra.mxu0 0.0
        %2564 = vmatprep.subr.mxu0 0.0
        %2565 = vmatpush1.msra.mxu0 0.0
        %2566 = vmatprep.subr.mxu0 0.0
        %2567 = vmatpush1.msra.mxu0 0.0
        %2568 = vmatprep.subr.mxu0 0.0
        %2569 = vmatpush1.msra.mxu0 0.0
        %2570 = vmatprep.subr.mxu0 0.0
        %2571 = vmatpush1.msra.mxu0 0.0
        %2572 = vmatprep.subr.mxu0 0.0
        %2573 = vmatpush1.msra.mxu0 0.0
        %2574 = vmatprep.subr.mxu0 0.0
        %2575 = vmatpush1.msra.mxu0 0.0
        %2576 = vmatprep.mubr.f32.mxu0 0.0
        %2577 = vmatmul.mubr.f32.gmra.mrb[0].mxu0 %v2510
        %v2578 = vpop.f32.mrb[0].mxu0
        %v2579 = vadd.f32 0.0, %v2578
        %v2580 = vpop.f32.mrb[0].mxu0
        %2581 = vdwg.mxu0
        %v2582 = vadd.f32 %v2505, %v2579
        %v2583 = vld [vmem:[%s6] sm:$0x1]
        %v2584 = vadd.f32 %v2582, %v2583
        %vm2585 = vcmp.ge.f32.partialorder %v2584, 0.0
        %v2586 = vmul.f32 %v2584, 0.1
        %v2587 = vsel %vm2585, %v2584, %v2586
        %v2588 = vld [vmem:[%s7] sm:$0xff]
        %v2589 = vld [vmem:[%s7 + $0x8] sm:$0xff]
        %v2590 = vld [vmem:[%s7 + $0x10] sm:$0xff]
        %v2591 = vld [vmem:[%s7 + $0x18] sm:$0xff]
        %v2592 = vld [vmem:[%s8] sm:$0x1]
        %vm2593 = vcmask 261120
        %v2595 = vsel %vm2593, %v2587, 0
        %2597 = vmatprep.subr.mxu0 0.0
        %2598 = vmatpush1.msra.mxu0 %v2588
        %2599 = vmatprep.subr.mxu0 0.0
        %2600 = vmatpush1.msra.mxu0 %v2589
        %2601 = vmatprep.subr.mxu0 0.0
        %2602 = vmatpush1.msra.mxu0 %v2590
        %2603 = vmatprep.subr.mxu0 0.0
        %2604 = vmatpush1.msra.mxu0 %v2591
        %2605 = vmatprep.subr.mxu0 0.0
        %2606 = vmatpush1.msra.mxu0 0.0
        %2607 = vmatprep.subr.mxu0 0.0
        %2608 = vmatpush1.msra.mxu0 0.0
        %2609 = vmatprep.subr.mxu0 0.0
        %2610 = vmatpush1.msra.mxu0 0.0
        %2611 = vmatprep.subr.mxu0 0.0
        %2612 = vmatpush1.msra.mxu0 0.0
        %2613 = vmatprep.subr.mxu0 0.0
        %2614 = vmatpush1.msra.mxu0 0.0
        %2615 = vmatprep.subr.mxu0 0.0
        %2616 = vmatpush1.msra.mxu0 0.0
        %2617 = vmatprep.subr.mxu0 0.0
        %2618 = vmatpush1.msra.mxu0 0.0
        %2619 = vmatprep.subr.mxu0 0.0
        %2620 = vmatpush1.msra.mxu0 0.0
        %2621 = vmatprep.subr.mxu0 0.0
        %2622 = vmatpush1.msra.mxu0 0.0
        %2623 = vmatprep.subr.mxu0 0.0
        %2624 = vmatpush1.msra.mxu0 0.0
        %2625 = vmatprep.subr.mxu0 0.0
        %2626 = vmatpush1.msra.mxu0 0.0
        %2627 = vmatprep.subr.mxu0 0.0
        %2628 = vmatpush1.msra.mxu0 0.0
        %2629 = vmatprep.subr.mxu0 0.0
        %2630 = vmatpush1.msra.mxu0 0.0
        %2631 = vmatprep.subr.mxu0 0.0
        %2632 = vmatpush1.msra.mxu0 0.0
        %2633 = vmatprep.subr.mxu0 0.0
        %2634 = vmatpush1.msra.mxu0 0.0
        %2635 = vmatprep.subr.mxu0 0.0
        %2636 = vmatpush1.msra.mxu0 0.0
        %2637 = vmatprep.subr.mxu0 0.0
        %2638 = vmatpush1.msra.mxu0 0.0
        %2639 = vmatprep.subr.mxu0 0.0
        %2640 = vmatpush1.msra.mxu0 0.0
        %2641 = vmatprep.subr.mxu0 0.0
        %2642 = vmatpush1.msra.mxu0 0.0
        %2643 = vmatprep.subr.mxu0 0.0
        %2644 = vmatpush1.msra.mxu0 0.0
        %2645 = vmatprep.subr.mxu0 0.0
        %2646 = vmatpush1.msra.mxu0 0.0
        %2647 = vmatprep.subr.mxu0 0.0
        %2648 = vmatpush1.msra.mxu0 0.0
        %2649 = vmatprep.subr.mxu0 0.0
        %2650 = vmatpush1.msra.mxu0 0.0
        %2651 = vmatprep.subr.mxu0 0.0
        %2652 = vmatpush1.msra.mxu0 0.0
        %2653 = vmatprep.subr.mxu0 0.0
        %2654 = vmatpush1.msra.mxu0 0.0
        %2655 = vmatprep.subr.mxu0 0.0
        %2656 = vmatpush1.msra.mxu0 0.0
        %2657 = vmatprep.subr.mxu0 0.0
        %2658 = vmatpush1.msra.mxu0 0.0
        %2659 = vmatprep.subr.mxu0 0.0
        %2660 = vmatpush1.msra.mxu0 0.0
        %2661 = vmatprep.mubr.f32.mxu0 0.0
        %2662 = vmatmul.mubr.f32.gmra.mrb[0].mxu0 %v2595
        %v2663 = vpop.f32.mrb[0].mxu0
        %v2664 = vadd.f32 %v2592, %v2663
        %v2665 = vpop.f32.mrb[0].mxu0
        %2666 = vdwg.mxu0
        %vm2667 = vcmask 73728
        %2668 = vst.msk [vmem:[%s324] sm:$0x1] %vm2667, %v2664
        %s2669 = sand.u32 %s225, 1
        %s2670 = scalar_lea.sflag [#allocation4], %s2669
        %s2671 = sand.u32 %s225, 1
        %s2672 = scalar_lea.vmem [#allocation3], %s2671
        // Predicated region
        $region57: #{_lambda_.1} parent=55 // pred_check
          %p2673 = pneg %p235
        $region58: #{_lambda_.1} parent=55 // pred_check_branch
          %2675 = sbr.rel (%p2673) target = $region60
        $region59: #{_lambda_.1} parent=55 // pred_region
          %s2677 = ssub.s32 16, 16
          %2678 = vsyncadd %s2670, %s2677
          %s2679 = smul.addr %s23, 16
          %s2680 = scalar_lea.hbm %s9, %s2679
          %s2682 = sshll.u32 %s2672, 4
          %s2683 = int_to_ptr.vmem [resolvable:$true] %s2682
          %2685 = dma.vmem_to_hbm [thread:$0]  %s2683, 16, %s2680, %s2670
        $region60: #{_lambda_.1} parent=55 // pred_fallthru
          _
      $region56: #{_lambda_.1} parent=5 // pred_fallthru
        _
      %p2686 = scmp.le.s32.totalorder 2, %s18
      // Predicated region
      $region61: #{_lambda_.1} parent=5 // pred_check
        %p2687 = pneg %p2686
      $region62: #{_lambda_.1} parent=5 // pred_check_branch
        %2689 = sbr.rel (%p2687) target = $region64
      $region63: #{_lambda_.1} parent=5 // pred_region
        %s2690 = ssub.s32 %s18, 2
        // Predicated region
        $region65: #{_lambda_.1} parent=63 // pred_check
          %p2691 = pneg %p241
        $region66: #{_lambda_.1} parent=63 // pred_check_branch
          %2693 = sbr.rel (%p2691) target = $region68
        $region67: #{_lambda_.1} parent=63 // pred_region
          %s2694 = sand.u32 %s226, 1
          %s2695 = scalar_lea.sflag [#allocation4], %s2694
          %s2696 = sand.u32 %s226, 1
          %s2697 = scalar_lea.vmem [#allocation3], %s2696
          %2698 = dma.done %s2695, 16
        $region68: #{_lambda_.1} parent=63 // pred_fallthru
          _
      $region64: #{_lambda_.1} parent=5 // pred_fallthru
        _
    $region6: #{_lambda_.1} parent=1 // loop_footer
      %s22 = sadd.s32 1, %s18
    $region7: #{_lambda_.1} parent=1 // loop_footer_branch
      %17 = sbr.rel target = $region3
    $region8: #{_lambda_.1} parent=1 // loop_exit
      _
    %2699 = vsyncpa [#allocation4], 1
    %s2700 = scalar_lea.sflag [#allocation4], 1
    %2701 = vsyncpa %s2700, 1

</llo_original>
